<compile_context>
chip_gen: v7x
topology: tpu7x:2x2x1
jax: 0.10.0
libtpu: 0.0.40
codegen_flags: <defaults>
</compile_context>

<pallas_src>
import functools

import jax
import jax.numpy as jnp
from jax.experimental import pallas as pl
from jax.experimental.pallas import tpu as pltpu

O_PAD = 128  # lane-dense padded width for the FC head output


def gru_seq_kernel(x_ref, h0_ref,
                   wx_ref, whzr_ref, whh_ref, bzrh_ref,
                   wo_ref, bo_ref,
                   hid_seq_ref, out_ref,
                   xg_scr):
    """Whole-sequence GRU for one batch block (one grid step).

    1. Pre-pass: batched input-gate matmul over all T steps -> VMEM scratch.
    2. Fully unrolled serial time loop carrying h; only h-dependent matmuls.
    3. Epilogue: batched FC head over all T steps at once.
    """
    T, bb, I = x_ref.shape
    H = h0_ref.shape[1]

    # ---- 1. batched input-side gate matmul (independent of the recurrence) ----
    x_flat = x_ref[...].reshape(T * bb, I)                        # bf16 (T*bb, I)
    xg_scr[...] = (
        jnp.dot(x_flat, wx_ref[...], preferred_element_type=jnp.float32)
        + bzrh_ref[...]                                           # bias added once
    ).reshape(T, bb, 3 * H)

    # ---- 2. serial recurrence, fully unrolled (T is a trace-time constant) ----
    h = h0_ref[...]                                               # (bb, H) f32
    for t in range(T):
        xg = xg_scr[t]                                            # (bb, 3H) f32
        hg = jnp.dot(h.astype(jnp.bfloat16), whzr_ref[...],
                     preferred_element_type=jnp.float32)          # (bb, 2H)
        z = jax.nn.sigmoid(xg[:, :H] + hg[:, :H])
        r = jax.nn.sigmoid(xg[:, H:2 * H] + hg[:, H:2 * H])
        h_tilde = jnp.tanh(
            xg[:, 2 * H:]
            + jnp.dot((r * h).astype(jnp.bfloat16), whh_ref[...],
                      preferred_element_type=jnp.float32))
        h = (1.0 - z) * h + z * h_tilde                           # matches torch form
        hid_seq_ref[t] = h

    # ---- 3. batched FC head over all timesteps at once ----
    hid_flat = hid_seq_ref[...].reshape(T * bb, H).astype(jnp.bfloat16)
    o = jax.nn.sigmoid(
        jnp.dot(hid_flat, wo_ref[...], preferred_element_type=jnp.float32)
        + bo_ref[...])
    out_ref[...] = o.reshape(T, bb, O_PAD)


def ex_gru_sequence(xs, h0, kp, *, output_size, batch_block=None):
    """Run the GRU cell over a whole sequence inside a single pallas_call.

    xs: (T, B, I) float32, h0: (B, H) float32.
    Returns (outputs (T, B, output_size), final_hidden (B, H)).
    batch_block: None -> full batch per core (v5e/v6e); B//2 on v7x (2 TCs).
    """
    T, B, I = xs.shape
    H = h0.shape[1]
    bb = batch_block or B
    assert B % bb == 0 and (bb == B or bb % 8 == 0)
    nb = B // bb

    xs_bf = xs.astype(jnp.bfloat16)

    flops = 2 * T * B * (I * 3 * H + H * 2 * H + H * H + H * O_PAD)
    transcendentals = T * B * (3 * H + O_PAD)
    bytes_accessed = (xs_bf.size * 2 + h0.size * 4
                      + T * B * (H + O_PAD) * 4                    # hid_seq + padded out
                      + 2 * (I * 3 * H + 3 * H * H + H * O_PAD)    # bf16 weights
                      + 4 * (3 * H + O_PAD))                       # f32 biases

    hid_seq, out_pad = pl.pallas_call(
        gru_seq_kernel,
        grid=(nb,),
        in_specs=[
            pl.BlockSpec((T, bb, I), lambda b: (0, b, 0)),         # x, whole sequence
            pl.BlockSpec((bb, H), lambda b: (b, 0)),               # h0
            pl.BlockSpec((I, 3 * H), lambda b: (0, 0)),            # [Wz_x|Wr_x|Wh_x]
            pl.BlockSpec((H, 2 * H), lambda b: (0, 0)),            # [Wz_h|Wr_h]
            pl.BlockSpec((H, H), lambda b: (0, 0)),                # Wh_h
            pl.BlockSpec((1, 3 * H), lambda b: (0, 0)),            # [bz|br|bh]
            pl.BlockSpec((H, O_PAD), lambda b: (0, 0)),            # Wo (padded)
            pl.BlockSpec((1, O_PAD), lambda b: (0, 0)),            # bo (padded)
        ],
        out_specs=(
            pl.BlockSpec((T, bb, H), lambda b: (0, b, 0)),         # hidden, all steps
            pl.BlockSpec((T, bb, O_PAD), lambda b: (0, b, 0)),     # padded outputs
        ),
        out_shape=(
            jax.ShapeDtypeStruct((T, B, H), jnp.float32),
            jax.ShapeDtypeStruct((T, B, O_PAD), jnp.float32),
        ),
        scratch_shapes=[pltpu.VMEM((T, bb, 3 * H), jnp.float32)],  # xg for all steps
        compiler_params=pltpu.CompilerParams(
            dimension_semantics=("parallel",)),
        cost_estimate=pl.CostEstimate(
            flops=flops, transcendentals=transcendentals,
            bytes_accessed=bytes_accessed),
    )(
        xs_bf, h0,
        kp["wx_zrh"], kp["wh_zr"], kp["wh_h"], kp["b_zrh"],
        kp["wo_pad"], kp["bo_pad"],
    )
    # TODO(synk): at production T/B consider emitting hid_seq only and running the
    # 2-wide head outside the kernel to avoid the padded f32 output writeback.
    return out_pad[:, :, :output_size], hid_seq[-1]


def ex_gru_forward(x, hidden_state, kp, output_size):
    """Single-step forward matching the original PyTorch module signature."""
    out_seq, hid = ex_gru_sequence(x[None], hidden_state, kp,
                                   output_size=output_size)
    return out_seq[0], hid


def init_raw_params(key, input_size, hidden_size, output_size):
    """Deterministic synthetic parameters, stored as W.T split into (hidden, x) blocks.

    PyTorch nn.Linear(in, out) computes y = x @ W.T + b; concat order is (hidden, x).
    """
    keys = jax.random.split(key, 8)
    cat = hidden_size + input_size

    def uni(k, shape, fan_in):
        bound = 1.0 / jnp.sqrt(fan_in)
        return jax.random.uniform(k, shape, jnp.float32, -bound, bound)

    wz = uni(keys[0], (cat, hidden_size), cat)
    wr = uni(keys[1], (cat, hidden_size), cat)
    wh = uni(keys[2], (cat, hidden_size), cat)
    wo = uni(keys[3], (hidden_size, output_size), hidden_size)

    return {
        "wz_h": wz[:hidden_size, :], "wz_x": wz[hidden_size:, :],
        "bz": uni(keys[4], (1, hidden_size), cat),
        "wr_h": wr[:hidden_size, :], "wr_x": wr[hidden_size:, :],
        "br": uni(keys[5], (1, hidden_size), cat),
        "wh_h": wh[:hidden_size, :], "wh_x": wh[hidden_size:, :],
        "bh": uni(keys[6], (1, hidden_size), cat),
        "wo": wo,
        "bo": uni(keys[7], (1, output_size), hidden_size),
    }


def fuse_params(p, hidden_size, output_size):
    """Fuse gate weights along the output axis, cast to bf16, pad FC to 128 lanes."""
    bf = jnp.bfloat16
    wx_zrh = jnp.concatenate([p["wz_x"], p["wr_x"], p["wh_x"]], axis=1).astype(bf)
    wh_zr = jnp.concatenate([p["wz_h"], p["wr_h"]], axis=1).astype(bf)
    wh_h = p["wh_h"].astype(bf)
    b_zrh = jnp.concatenate([p["bz"], p["br"], p["bh"]], axis=1).astype(jnp.float32)
    wo_pad = jnp.zeros((hidden_size, O_PAD), bf).at[:, :output_size].set(
        p["wo"].astype(bf))
    bo_pad = jnp.zeros((1, O_PAD), jnp.float32).at[:, :output_size].set(p["bo"])
    return {"wx_zrh": wx_zrh, "wh_zr": wh_zr, "wh_h": wh_h, "b_zrh": b_zrh,
            "wo_pad": wo_pad, "bo_pad": bo_pad}


def ex_gru_reference_step(x, h, p):
    """Pure-JAX reference of the PyTorch forward with matching bf16/f32 numerics."""
    bf = jnp.bfloat16
    mm = lambda a, w: jnp.dot(a.astype(bf), w.astype(bf),
                              preferred_element_type=jnp.float32)
    z = jax.nn.sigmoid(mm(h, p["wz_h"]) + mm(x, p["wz_x"]) + p["bz"])
    r = jax.nn.sigmoid(mm(h, p["wr_h"]) + mm(x, p["wr_x"]) + p["br"])
    h_tilde = jnp.tanh(mm(r * h, p["wh_h"]) + mm(x, p["wh_x"]) + p["bh"])
    hidden = (1.0 - z) * h + z * h_tilde
    output = jax.nn.sigmoid(mm(hidden, p["wo"]) + p["bo"])
    return output, hidden


if __name__ == "__main__":
    input_size = 128    # embedded token width
    hidden_size = 64    # module-level hidden_size
    output_size = 2     # module-level output_size
    batch = 16
    seq_len = 12

    key = jax.random.PRNGKey(0)
    k_x, k_h, k_p = jax.random.split(key, 3)

    xs = jax.random.normal(k_x, (seq_len, batch, input_size), jnp.float32)
    # ExGRU.init_hidden returns zeros; use a nonzero h0 to exercise the gates.
    h0 = jax.random.normal(k_h, (batch, hidden_size), jnp.float32) * 0.1

    raw = init_raw_params(k_p, input_size, hidden_size, output_size)
    kp = fuse_params(raw, hidden_size, output_size)

    # Full batch per core (v5e/v6e best). On v7x pass batch_block=batch//2 to
    # split the two independent batch blocks across its two TensorCores.
    run = jax.jit(functools.partial(ex_gru_sequence,
                                    output_size=output_size,
                                    batch_block=None))
    outs, hid = jax.block_until_ready(run(xs, h0, kp))

    # Reference: unrolled per-step loop with identical bf16-operand numerics.
    h_ref = h0
    outs_ref = []
    for t in range(seq_len):
        o_t, h_ref = ex_gru_reference_step(xs[t], h_ref, raw)
        outs_ref.append(o_t)
    outs_ref = jnp.stack(outs_ref)

    assert outs.shape == (seq_len, batch, output_size)
    assert hid.shape == (batch, hidden_size)
    assert jnp.allclose(outs, outs_ref, atol=2e-3), "sequence output mismatch"
    assert jnp.allclose(hid, h_ref, atol=2e-3), "final hidden mismatch"

    # Single-step forward (original module semantics) still supported.
    out1, hid1 = ex_gru_forward(xs[0], h0, kp, output_size)
    out1_ref, hid1_ref = ex_gru_reference_step(xs[0], h0, raw)
    assert jnp.allclose(out1, out1_ref, atol=2e-3), "single-step output mismatch"
    assert jnp.allclose(hid1, hid1_ref, atol=2e-3), "single-step hidden mismatch"

    print("KERNEL_OK")
</pallas_src>

<mosaic_0001>
module attributes {stable_mosaic.version = 11 : i64} {
  func.func @gru_seq_kernel(%arg0: i32, %arg1: memref<12x16x128xbf16, #tpu.memory_space<vmem>>, %arg2: memref<16x64xf32, #tpu.memory_space<vmem>>, %arg3: memref<128x192xbf16, #tpu.memory_space<vmem>>, %arg4: memref<64x128xbf16, #tpu.memory_space<vmem>>, %arg5: memref<64x64xbf16, #tpu.memory_space<vmem>>, %arg6: memref<1x192xf32, #tpu.memory_space<vmem>>, %arg7: memref<64x128xbf16, #tpu.memory_space<vmem>>, %arg8: memref<1x128xf32, #tpu.memory_space<vmem>>, %arg9: memref<12x16x64xf32, #tpu.memory_space<vmem>>, %arg10: memref<12x16x128xf32, #tpu.memory_space<vmem>>, %arg11: memref<12x16x192xf32, #tpu.memory_space<vmem>>) attributes {dimension_semantics = [#tpu.dimension_semantics<parallel>], iteration_bounds = array<i64: 1>, scalar_prefetch = 0 : i64, scratch_operands = 1 : i64, tpu.core_type = #tpu.core_type<tc>, window_params = [{transform_indices = @transform_0, window_bounds = array<i64: 12, 16, 128>}, {transform_indices = @transform_1, window_bounds = array<i64: 16, 64>}, {pipeline_mode = #tpu.pipeline_mode<synchronous>, transform_indices = @transform_2, window_bounds = array<i64: 128, 192>}, {pipeline_mode = #tpu.pipeline_mode<synchronous>, transform_indices = @transform_3, window_bounds = array<i64: 64, 128>}, {pipeline_mode = #tpu.pipeline_mode<synchronous>, transform_indices = @transform_4, window_bounds = array<i64: 64, 64>}, {pipeline_mode = #tpu.pipeline_mode<synchronous>, transform_indices = @transform_5, window_bounds = array<i64: 1, 192>}, {pipeline_mode = #tpu.pipeline_mode<synchronous>, transform_indices = @transform_6, window_bounds = array<i64: 64, 128>}, {pipeline_mode = #tpu.pipeline_mode<synchronous>, transform_indices = @transform_7, window_bounds = array<i64: 1, 128>}, {transform_indices = @transform_8, window_bounds = array<i64: 12, 16, 64>}, {transform_indices = @transform_9, window_bounds = array<i64: 12, 16, 128>}]} {
    %c0 = arith.constant 0 : index
    %c0_0 = arith.constant 0 : index
    %c0_1 = arith.constant 0 : index
    %0 = vector.load %arg1[%c0, %c0_0, %c0_1] : memref<12x16x128xbf16, #tpu.memory_space<vmem>>, vector<12x16x128xbf16>
    %1 = vector.shape_cast %0 : vector<12x16x128xbf16> to vector<192x128xbf16>
    %c0_2 = arith.constant 0 : index
    %c0_3 = arith.constant 0 : index
    %2 = vector.load %arg3[%c0_2, %c0_3] : memref<128x192xbf16, #tpu.memory_space<vmem>>, vector<128x192xbf16>
    %cst = arith.constant dense<0.000000e+00> : vector<192x192xf32>
    %3 = tpu.matmul %1, %2, %cst {dimension_numbers = #tpu.dot_dimension_numbers<[1], [0], [0], [1], [0, 0, 1, 1], [], []>} : vector<192x128xbf16>, vector<128x192xbf16>, vector<192x192xf32> -> vector<192x192xf32>
    %c0_4 = arith.constant 0 : index
    %c0_5 = arith.constant 0 : index
    %4 = vector.load %arg6[%c0_4, %c0_5] : memref<1x192xf32, #tpu.memory_space<vmem>>, vector<1x192xf32>
    %5 = vector.broadcast %4 : vector<1x192xf32> to vector<192x192xf32>
    %6 = arith.addf %3, %5 : vector<192x192xf32>
    %7 = vector.shape_cast %6 : vector<192x192xf32> to vector<12x16x192xf32>
    %c0_6 = arith.constant 0 : index
    %c0_7 = arith.constant 0 : index
    %c0_8 = arith.constant 0 : index
    %8 = vector.load %arg11[%c0_6, %c0_7, %c0_8] : memref<12x16x192xf32, #tpu.memory_space<vmem>>, vector<12x16x192xf32>
    tpu.vector_store %arg11[%c0_6, %c0_7, %c0_8], %7 {strides = array<i32>} : memref<12x16x192xf32, #tpu.memory_space<vmem>>, vector<12x16x192xf32>,
    %c0_9 = arith.constant 0 : index
    %c0_10 = arith.constant 0 : index
    %9 = vector.load %arg2[%c0_9, %c0_10] : memref<16x64xf32, #tpu.memory_space<vmem>>, vector<16x64xf32>
    %c0_11 = arith.constant 0 : index
    %c0_12 = arith.constant 0 : index
    %c0_13 = arith.constant 0 : index
    %10 = vector.load %arg11[%c0_11, %c0_12, %c0_13] : memref<12x16x192xf32, #tpu.memory_space<vmem>>, vector<1x16x192xf32>
    %11 = vector.shape_cast %10 : vector<1x16x192xf32> to vector<16x192xf32>
    %12 = arith.truncf %9 : vector<16x64xf32> to vector<16x64xbf16>
    %c0_14 = arith.constant 0 : index
    %c0_15 = arith.constant 0 : index
    %13 = vector.load %arg4[%c0_14, %c0_15] : memref<64x128xbf16, #tpu.memory_space<vmem>>, vector<64x128xbf16>
    %cst_16 = arith.constant dense<0.000000e+00> : vector<16x128xf32>
    %14 = tpu.matmul %12, %13, %cst_16 {dimension_numbers = #tpu.dot_dimension_numbers<[1], [0], [0], [1], [0, 0, 1, 1], [], []>} : vector<16x64xbf16>, vector<64x128xbf16>, vector<16x128xf32> -> vector<16x128xf32>
    %15 = vector.extract_strided_slice %11 {offsets = [0, 0], sizes = [16, 64], strides = [1, 1]} : vector<16x192xf32> to vector<16x64xf32>
    %16 = vector.extract_strided_slice %14 {offsets = [0, 0], sizes = [16, 64], strides = [1, 1]} : vector<16x128xf32> to vector<16x64xf32>
    %17 = arith.addf %15, %16 : vector<16x64xf32>
    %18 = arith.negf %17 : vector<16x64xf32>
    %19 = math.exp %18 : vector<16x64xf32>
    %cst_17 = arith.constant 1.000000e+00 : f32
    %20 = vector.broadcast %cst_17 : f32 to vector<16x64xf32>
    %21 = arith.addf %20, %19 : vector<16x64xf32>
    %22 = arith.divf %20, %21 : vector<16x64xf32>
    %23 = vector.extract_strided_slice %11 {offsets = [0, 64], sizes = [16, 64], strides = [1, 1]} : vector<16x192xf32> to vector<16x64xf32>
    %24 = vector.extract_strided_slice %14 {offsets = [0, 64], sizes = [16, 64], strides = [1, 1]} : vector<16x128xf32> to vector<16x64xf32>
    %25 = arith.addf %23, %24 : vector<16x64xf32>
    %26 = arith.negf %25 : vector<16x64xf32>
    %27 = math.exp %26 : vector<16x64xf32>
    %cst_18 = arith.constant 1.000000e+00 : f32
    %28 = vector.broadcast %cst_18 : f32 to vector<16x64xf32>
    %29 = arith.addf %28, %27 : vector<16x64xf32>
    %30 = arith.divf %28, %29 : vector<16x64xf32>
    %31 = vector.extract_strided_slice %11 {offsets = [0, 128], sizes = [16, 64], strides = [1, 1]} : vector<16x192xf32> to vector<16x64xf32>
    %32 = arith.mulf %30, %9 : vector<16x64xf32>
    %33 = arith.truncf %32 : vector<16x64xf32> to vector<16x64xbf16>
    %c0_19 = arith.constant 0 : index
    %c0_20 = arith.constant 0 : index
    %34 = vector.load %arg5[%c0_19, %c0_20] : memref<64x64xbf16, #tpu.memory_space<vmem>>, vector<64x64xbf16>
    %cst_21 = arith.constant dense<0.000000e+00> : vector<16x64xf32>
    %35 = tpu.matmul %33, %34, %cst_21 {dimension_numbers = #tpu.dot_dimension_numbers<[1], [0], [0], [1], [0, 0, 1, 1], [], []>} : vector<16x64xbf16>, vector<64x64xbf16>, vector<16x64xf32> -> vector<16x64xf32>
    %36 = arith.addf %31, %35 : vector<16x64xf32>
    %37 = math.tanh %36 : vector<16x64xf32>
    %cst_22 = arith.constant 1.000000e+00 : f32
    %38 = vector.broadcast %cst_22 : f32 to vector<16x64xf32>
    %39 = arith.subf %38, %22 : vector<16x64xf32>
    %40 = arith.mulf %39, %9 : vector<16x64xf32>
    %41 = arith.mulf %22, %37 : vector<16x64xf32>
    %42 = arith.addf %40, %41 : vector<16x64xf32>
    %c0_23 = arith.constant 0 : index
    %c0_24 = arith.constant 0 : index
    %c0_25 = arith.constant 0 : index
    %43 = vector.load %arg9[%c0_23, %c0_24, %c0_25] : memref<12x16x64xf32, #tpu.memory_space<vmem>>, vector<1x16x64xf32>
    %44 = vector.shape_cast %43 : vector<1x16x64xf32> to vector<16x64xf32>
    %45 = vector.shape_cast %42 : vector<16x64xf32> to vector<1x16x64xf32>
    tpu.vector_store %arg9[%c0_23, %c0_24, %c0_25], %45 {strides = array<i32>} : memref<12x16x64xf32, #tpu.memory_space<vmem>>, vector<1x16x64xf32>,
    %c1 = arith.constant 1 : index
    %c0_26 = arith.constant 0 : index
    %c0_27 = arith.constant 0 : index
    %46 = vector.load %arg11[%c1, %c0_26, %c0_27] : memref<12x16x192xf32, #tpu.memory_space<vmem>>, vector<1x16x192xf32>
    %47 = vector.shape_cast %46 : vector<1x16x192xf32> to vector<16x192xf32>
    %48 = arith.truncf %42 : vector<16x64xf32> to vector<16x64xbf16>
    %c0_28 = arith.constant 0 : index
    %c0_29 = arith.constant 0 : index
    %49 = vector.load %arg4[%c0_28, %c0_29] : memref<64x128xbf16, #tpu.memory_space<vmem>>, vector<64x128xbf16>
    %cst_30 = arith.constant dense<0.000000e+00> : vector<16x128xf32>
    %50 = tpu.matmul %48, %49, %cst_30 {dimension_numbers = #tpu.dot_dimension_numbers<[1], [0], [0], [1], [0, 0, 1, 1], [], []>} : vector<16x64xbf16>, vector<64x128xbf16>, vector<16x128xf32> -> vector<16x128xf32>
    %51 = vector.extract_strided_slice %47 {offsets = [0, 0], sizes = [16, 64], strides = [1, 1]} : vector<16x192xf32> to vector<16x64xf32>
    %52 = vector.extract_strided_slice %50 {offsets = [0, 0], sizes = [16, 64], strides = [1, 1]} : vector<16x128xf32> to vector<16x64xf32>
    %53 = arith.addf %51, %52 : vector<16x64xf32>
    %54 = arith.negf %53 : vector<16x64xf32>
    %55 = math.exp %54 : vector<16x64xf32>
    %cst_31 = arith.constant 1.000000e+00 : f32
    %56 = vector.broadcast %cst_31 : f32 to vector<16x64xf32>
    %57 = arith.addf %56, %55 : vector<16x64xf32>
    %58 = arith.divf %56, %57 : vector<16x64xf32>
    %59 = vector.extract_strided_slice %47 {offsets = [0, 64], sizes = [16, 64], strides = [1, 1]} : vector<16x192xf32> to vector<16x64xf32>
    %60 = vector.extract_strided_slice %50 {offsets = [0, 64], sizes = [16, 64], strides = [1, 1]} : vector<16x128xf32> to vector<16x64xf32>
    %61 = arith.addf %59, %60 : vector<16x64xf32>
    %62 = arith.negf %61 : vector<16x64xf32>
    %63 = math.exp %62 : vector<16x64xf32>
    %cst_32 = arith.constant 1.000000e+00 : f32
    %64 = vector.broadcast %cst_32 : f32 to vector<16x64xf32>
    %65 = arith.addf %64, %63 : vector<16x64xf32>
    %66 = arith.divf %64, %65 : vector<16x64xf32>
    %67 = vector.extract_strided_slice %47 {offsets = [0, 128], sizes = [16, 64], strides = [1, 1]} : vector<16x192xf32> to vector<16x64xf32>
    %68 = arith.mulf %66, %42 : vector<16x64xf32>
    %69 = arith.truncf %68 : vector<16x64xf32> to vector<16x64xbf16>
    %c0_33 = arith.constant 0 : index
    %c0_34 = arith.constant 0 : index
    %70 = vector.load %arg5[%c0_33, %c0_34] : memref<64x64xbf16, #tpu.memory_space<vmem>>, vector<64x64xbf16>
    %cst_35 = arith.constant dense<0.000000e+00> : vector<16x64xf32>
    %71 = tpu.matmul %69, %70, %cst_35 {dimension_numbers = #tpu.dot_dimension_numbers<[1], [0], [0], [1], [0, 0, 1, 1], [], []>} : vector<16x64xbf16>, vector<64x64xbf16>, vector<16x64xf32> -> vector<16x64xf32>
    %72 = arith.addf %67, %71 : vector<16x64xf32>
    %73 = math.tanh %72 : vector<16x64xf32>
    %cst_36 = arith.constant 1.000000e+00 : f32
    %74 = vector.broadcast %cst_36 : f32 to vector<16x64xf32>
    %75 = arith.subf %74, %58 : vector<16x64xf32>
    %76 = arith.mulf %75, %42 : vector<16x64xf32>
    %77 = arith.mulf %58, %73 : vector<16x64xf32>
    %78 = arith.addf %76, %77 : vector<16x64xf32>
    %c1_37 = arith.constant 1 : index
    %c0_38 = arith.constant 0 : index
    %c0_39 = arith.constant 0 : index
    %79 = vector.load %arg9[%c1_37, %c0_38, %c0_39] : memref<12x16x64xf32, #tpu.memory_space<vmem>>, vector<1x16x64xf32>
    %80 = vector.shape_cast %79 : vector<1x16x64xf32> to vector<16x64xf32>
    %81 = vector.shape_cast %78 : vector<16x64xf32> to vector<1x16x64xf32>
    tpu.vector_store %arg9[%c1_37, %c0_38, %c0_39], %81 {strides = array<i32>} : memref<12x16x64xf32, #tpu.memory_space<vmem>>, vector<1x16x64xf32>,
    %c2 = arith.constant 2 : index
    %c0_40 = arith.constant 0 : index
    %c0_41 = arith.constant 0 : index
    %82 = vector.load %arg11[%c2, %c0_40, %c0_41] : memref<12x16x192xf32, #tpu.memory_space<vmem>>, vector<1x16x192xf32>
    %83 = vector.shape_cast %82 : vector<1x16x192xf32> to vector<16x192xf32>
    %84 = arith.truncf %78 : vector<16x64xf32> to vector<16x64xbf16>
    %c0_42 = arith.constant 0 : index
    %c0_43 = arith.constant 0 : index
    %85 = vector.load %arg4[%c0_42, %c0_43] : memref<64x128xbf16, #tpu.memory_space<vmem>>, vector<64x128xbf16>
    %cst_44 = arith.constant dense<0.000000e+00> : vector<16x128xf32>
    %86 = tpu.matmul %84, %85, %cst_44 {dimension_numbers = #tpu.dot_dimension_numbers<[1], [0], [0], [1], [0, 0, 1, 1], [], []>} : vector<16x64xbf16>, vector<64x128xbf16>, vector<16x128xf32> -> vector<16x128xf32>
    %87 = vector.extract_strided_slice %83 {offsets = [0, 0], sizes = [16, 64], strides = [1, 1]} : vector<16x192xf32> to vector<16x64xf32>
    %88 = vector.extract_strided_slice %86 {offsets = [0, 0], sizes = [16, 64], strides = [1, 1]} : vector<16x128xf32> to vector<16x64xf32>
    %89 = arith.addf %87, %88 : vector<16x64xf32>
    %90 = arith.negf %89 : vector<16x64xf32>
    %91 = math.exp %90 : vector<16x64xf32>
    %cst_45 = arith.constant 1.000000e+00 : f32
    %92 = vector.broadcast %cst_45 : f32 to vector<16x64xf32>
    %93 = arith.addf %92, %91 : vector<16x64xf32>
    %94 = arith.divf %92, %93 : vector<16x64xf32>
    %95 = vector.extract_strided_slice %83 {offsets = [0, 64], sizes = [16, 64], strides = [1, 1]} : vector<16x192xf32> to vector<16x64xf32>
    %96 = vector.extract_strided_slice %86 {offsets = [0, 64], sizes = [16, 64], strides = [1, 1]} : vector<16x128xf32> to vector<16x64xf32>
    %97 = arith.addf %95, %96 : vector<16x64xf32>
    %98 = arith.negf %97 : vector<16x64xf32>
    %99 = math.exp %98 : vector<16x64xf32>
    %cst_46 = arith.constant 1.000000e+00 : f32
    %100 = vector.broadcast %cst_46 : f32 to vector<16x64xf32>
    %101 = arith.addf %100, %99 : vector<16x64xf32>
    %102 = arith.divf %100, %101 : vector<16x64xf32>
    %103 = vector.extract_strided_slice %83 {offsets = [0, 128], sizes = [16, 64], strides = [1, 1]} : vector<16x192xf32> to vector<16x64xf32>
    %104 = arith.mulf %102, %78 : vector<16x64xf32>
    %105 = arith.truncf %104 : vector<16x64xf32> to vector<16x64xbf16>
    %c0_47 = arith.constant 0 : index
    %c0_48 = arith.constant 0 : index
    %106 = vector.load %arg5[%c0_47, %c0_48] : memref<64x64xbf16, #tpu.memory_space<vmem>>, vector<64x64xbf16>
    %cst_49 = arith.constant dense<0.000000e+00> : vector<16x64xf32>
    %107 = tpu.matmul %105, %106, %cst_49 {dimension_numbers = #tpu.dot_dimension_numbers<[1], [0], [0], [1], [0, 0, 1, 1], [], []>} : vector<16x64xbf16>, vector<64x64xbf16>, vector<16x64xf32> -> vector<16x64xf32>
    %108 = arith.addf %103, %107 : vector<16x64xf32>
    %109 = math.tanh %108 : vector<16x64xf32>
    %cst_50 = arith.constant 1.000000e+00 : f32
    %110 = vector.broadcast %cst_50 : f32 to vector<16x64xf32>
    %111 = arith.subf %110, %94 : vector<16x64xf32>
    %112 = arith.mulf %111, %78 : vector<16x64xf32>
    %113 = arith.mulf %94, %109 : vector<16x64xf32>
    %114 = arith.addf %112, %113 : vector<16x64xf32>
    %c2_51 = arith.constant 2 : index
    %c0_52 = arith.constant 0 : index
    %c0_53 = arith.constant 0 : index
    %115 = vector.load %arg9[%c2_51, %c0_52, %c0_53] : memref<12x16x64xf32, #tpu.memory_space<vmem>>, vector<1x16x64xf32>
    %116 = vector.shape_cast %115 : vector<1x16x64xf32> to vector<16x64xf32>
    %117 = vector.shape_cast %114 : vector<16x64xf32> to vector<1x16x64xf32>
    tpu.vector_store %arg9[%c2_51, %c0_52, %c0_53], %117 {strides = array<i32>} : memref<12x16x64xf32, #tpu.memory_space<vmem>>, vector<1x16x64xf32>,
    %c3 = arith.constant 3 : index
    %c0_54 = arith.constant 0 : index
    %c0_55 = arith.constant 0 : index
    %118 = vector.load %arg11[%c3, %c0_54, %c0_55] : memref<12x16x192xf32, #tpu.memory_space<vmem>>, vector<1x16x192xf32>
    %119 = vector.shape_cast %118 : vector<1x16x192xf32> to vector<16x192xf32>
    %120 = arith.truncf %114 : vector<16x64xf32> to vector<16x64xbf16>
    %c0_56 = arith.constant 0 : index
    %c0_57 = arith.constant 0 : index
    %121 = vector.load %arg4[%c0_56, %c0_57] : memref<64x128xbf16, #tpu.memory_space<vmem>>, vector<64x128xbf16>
    %cst_58 = arith.constant dense<0.000000e+00> : vector<16x128xf32>
    %122 = tpu.matmul %120, %121, %cst_58 {dimension_numbers = #tpu.dot_dimension_numbers<[1], [0], [0], [1], [0, 0, 1, 1], [], []>} : vector<16x64xbf16>, vector<64x128xbf16>, vector<16x128xf32> -> vector<16x128xf32>
    %123 = vector.extract_strided_slice %119 {offsets = [0, 0], sizes = [16, 64], strides = [1, 1]} : vector<16x192xf32> to vector<16x64xf32>
    %124 = vector.extract_strided_slice %122 {offsets = [0, 0], sizes = [16, 64], strides = [1, 1]} : vector<16x128xf32> to vector<16x64xf32>
    %125 = arith.addf %123, %124 : vector<16x64xf32>
    %126 = arith.negf %125 : vector<16x64xf32>
    %127 = math.exp %126 : vector<16x64xf32>
    %cst_59 = arith.constant 1.000000e+00 : f32
    %128 = vector.broadcast %cst_59 : f32 to vector<16x64xf32>
    %129 = arith.addf %128, %127 : vector<16x64xf32>
    %130 = arith.divf %128, %129 : vector<16x64xf32>
    %131 = vector.extract_strided_slice %119 {offsets = [0, 64], sizes = [16, 64], strides = [1, 1]} : vector<16x192xf32> to vector<16x64xf32>
    %132 = vector.extract_strided_slice %122 {offsets = [0, 64], sizes = [16, 64], strides = [1, 1]} : vector<16x128xf32> to vector<16x64xf32>
    %133 = arith.addf %131, %132 : vector<16x64xf32>
    %134 = arith.negf %133 : vector<16x64xf32>
    %135 = math.exp %134 : vector<16x64xf32>
    %cst_60 = arith.constant 1.000000e+00 : f32
    %136 = vector.broadcast %cst_60 : f32 to vector<16x64xf32>
    %137 = arith.addf %136, %135 : vector<16x64xf32>
    %138 = arith.divf %136, %137 : vector<16x64xf32>
    %139 = vector.extract_strided_slice %119 {offsets = [0, 128], sizes = [16, 64], strides = [1, 1]} : vector<16x192xf32> to vector<16x64xf32>
    %140 = arith.mulf %138, %114 : vector<16x64xf32>
    %141 = arith.truncf %140 : vector<16x64xf32> to vector<16x64xbf16>
    %c0_61 = arith.constant 0 : index
    %c0_62 = arith.constant 0 : index
    %142 = vector.load %arg5[%c0_61, %c0_62] : memref<64x64xbf16, #tpu.memory_space<vmem>>, vector<64x64xbf16>
    %cst_63 = arith.constant dense<0.000000e+00> : vector<16x64xf32>
    %143 = tpu.matmul %141, %142, %cst_63 {dimension_numbers = #tpu.dot_dimension_numbers<[1], [0], [0], [1], [0, 0, 1, 1], [], []>} : vector<16x64xbf16>, vector<64x64xbf16>, vector<16x64xf32> -> vector<16x64xf32>
    %144 = arith.addf %139, %143 : vector<16x64xf32>
    %145 = math.tanh %144 : vector<16x64xf32>
    %cst_64 = arith.constant 1.000000e+00 : f32
    %146 = vector.broadcast %cst_64 : f32 to vector<16x64xf32>
    %147 = arith.subf %146, %130 : vector<16x64xf32>
    %148 = arith.mulf %147, %114 : vector<16x64xf32>
    %149 = arith.mulf %130, %145 : vector<16x64xf32>
    %150 = arith.addf %148, %149 : vector<16x64xf32>
    %c3_65 = arith.constant 3 : index
    %c0_66 = arith.constant 0 : index
    %c0_67 = arith.constant 0 : index
    %151 = vector.load %arg9[%c3_65, %c0_66, %c0_67] : memref<12x16x64xf32, #tpu.memory_space<vmem>>, vector<1x16x64xf32>
    %152 = vector.shape_cast %151 : vector<1x16x64xf32> to vector<16x64xf32>
    %153 = vector.shape_cast %150 : vector<16x64xf32> to vector<1x16x64xf32>
    tpu.vector_store %arg9[%c3_65, %c0_66, %c0_67], %153 {strides = array<i32>} : memref<12x16x64xf32, #tpu.memory_space<vmem>>, vector<1x16x64xf32>,
    %c4 = arith.constant 4 : index
    %c0_68 = arith.constant 0 : index
    %c0_69 = arith.constant 0 : index
    %154 = vector.load %arg11[%c4, %c0_68, %c0_69] : memref<12x16x192xf32, #tpu.memory_space<vmem>>, vector<1x16x192xf32>
    %155 = vector.shape_cast %154 : vector<1x16x192xf32> to vector<16x192xf32>
    %156 = arith.truncf %150 : vector<16x64xf32> to vector<16x64xbf16>
    %c0_70 = arith.constant 0 : index
    %c0_71 = arith.constant 0 : index
    %157 = vector.load %arg4[%c0_70, %c0_71] : memref<64x128xbf16, #tpu.memory_space<vmem>>, vector<64x128xbf16>
    %cst_72 = arith.constant dense<0.000000e+00> : vector<16x128xf32>
    %158 = tpu.matmul %156, %157, %cst_72 {dimension_numbers = #tpu.dot_dimension_numbers<[1], [0], [0], [1], [0, 0, 1, 1], [], []>} : vector<16x64xbf16>, vector<64x128xbf16>, vector<16x128xf32> -> vector<16x128xf32>
    %159 = vector.extract_strided_slice %155 {offsets = [0, 0], sizes = [16, 64], strides = [1, 1]} : vector<16x192xf32> to vector<16x64xf32>
    %160 = vector.extract_strided_slice %158 {offsets = [0, 0], sizes = [16, 64], strides = [1, 1]} : vector<16x128xf32> to vector<16x64xf32>
    %161 = arith.addf %159, %160 : vector<16x64xf32>
    %162 = arith.negf %161 : vector<16x64xf32>
    %163 = math.exp %162 : vector<16x64xf32>
    %cst_73 = arith.constant 1.000000e+00 : f32
    %164 = vector.broadcast %cst_73 : f32 to vector<16x64xf32>
    %165 = arith.addf %164, %163 : vector<16x64xf32>
    %166 = arith.divf %164, %165 : vector<16x64xf32>
    %167 = vector.extract_strided_slice %155 {offsets = [0, 64], sizes = [16, 64], strides = [1, 1]} : vector<16x192xf32> to vector<16x64xf32>
    %168 = vector.extract_strided_slice %158 {offsets = [0, 64], sizes = [16, 64], strides = [1, 1]} : vector<16x128xf32> to vector<16x64xf32>
    %169 = arith.addf %167, %168 : vector<16x64xf32>
    %170 = arith.negf %169 : vector<16x64xf32>
    %171 = math.exp %170 : vector<16x64xf32>
    %cst_74 = arith.constant 1.000000e+00 : f32
    %172 = vector.broadcast %cst_74 : f32 to vector<16x64xf32>
    %173 = arith.addf %172, %171 : vector<16x64xf32>
    %174 = arith.divf %172, %173 : vector<16x64xf32>
    %175 = vector.extract_strided_slice %155 {offsets = [0, 128], sizes = [16, 64], strides = [1, 1]} : vector<16x192xf32> to vector<16x64xf32>
    %176 = arith.mulf %174, %150 : vector<16x64xf32>
    %177 = arith.truncf %176 : vector<16x64xf32> to vector<16x64xbf16>
    %c0_75 = arith.constant 0 : index
    %c0_76 = arith.constant 0 : index
    %178 = vector.load %arg5[%c0_75, %c0_76] : memref<64x64xbf16, #tpu.memory_space<vmem>>, vector<64x64xbf16>
    %cst_77 = arith.constant dense<0.000000e+00> : vector<16x64xf32>
    %179 = tpu.matmul %177, %178, %cst_77 {dimension_numbers = #tpu.dot_dimension_numbers<[1], [0], [0], [1], [0, 0, 1, 1], [], []>} : vector<16x64xbf16>, vector<64x64xbf16>, vector<16x64xf32> -> vector<16x64xf32>
    %180 = arith.addf %175, %179 : vector<16x64xf32>
    %181 = math.tanh %180 : vector<16x64xf32>
    %cst_78 = arith.constant 1.000000e+00 : f32
    %182 = vector.broadcast %cst_78 : f32 to vector<16x64xf32>
    %183 = arith.subf %182, %166 : vector<16x64xf32>
    %184 = arith.mulf %183, %150 : vector<16x64xf32>
    %185 = arith.mulf %166, %181 : vector<16x64xf32>
    %186 = arith.addf %184, %185 : vector<16x64xf32>
    %c4_79 = arith.constant 4 : index
    %c0_80 = arith.constant 0 : index
    %c0_81 = arith.constant 0 : index
    %187 = vector.load %arg9[%c4_79, %c0_80, %c0_81] : memref<12x16x64xf32, #tpu.memory_space<vmem>>, vector<1x16x64xf32>
    %188 = vector.shape_cast %187 : vector<1x16x64xf32> to vector<16x64xf32>
    %189 = vector.shape_cast %186 : vector<16x64xf32> to vector<1x16x64xf32>
    tpu.vector_store %arg9[%c4_79, %c0_80, %c0_81], %189 {strides = array<i32>} : memref<12x16x64xf32, #tpu.memory_space<vmem>>, vector<1x16x64xf32>,
    %c5 = arith.constant 5 : index
    %c0_82 = arith.constant 0 : index
    %c0_83 = arith.constant 0 : index
    %190 = vector.load %arg11[%c5, %c0_82, %c0_83] : memref<12x16x192xf32, #tpu.memory_space<vmem>>, vector<1x16x192xf32>
    %191 = vector.shape_cast %190 : vector<1x16x192xf32> to vector<16x192xf32>
    %192 = arith.truncf %186 : vector<16x64xf32> to vector<16x64xbf16>
    %c0_84 = arith.constant 0 : index
    %c0_85 = arith.constant 0 : index
    %193 = vector.load %arg4[%c0_84, %c0_85] : memref<64x128xbf16, #tpu.memory_space<vmem>>, vector<64x128xbf16>
    %cst_86 = arith.constant dense<0.000000e+00> : vector<16x128xf32>
    %194 = tpu.matmul %192, %193, %cst_86 {dimension_numbers = #tpu.dot_dimension_numbers<[1], [0], [0], [1], [0, 0, 1, 1], [], []>} : vector<16x64xbf16>, vector<64x128xbf16>, vector<16x128xf32> -> vector<16x128xf32>
    %195 = vector.extract_strided_slice %191 {offsets = [0, 0], sizes = [16, 64], strides = [1, 1]} : vector<16x192xf32> to vector<16x64xf32>
    %196 = vector.extract_strided_slice %194 {offsets = [0, 0], sizes = [16, 64], strides = [1, 1]} : vector<16x128xf32> to vector<16x64xf32>
    %197 = arith.addf %195, %196 : vector<16x64xf32>
    %198 = arith.negf %197 : vector<16x64xf32>
    %199 = math.exp %198 : vector<16x64xf32>
    %cst_87 = arith.constant 1.000000e+00 : f32
    %200 = vector.broadcast %cst_87 : f32 to vector<16x64xf32>
    %201 = arith.addf %200, %199 : vector<16x64xf32>
    %202 = arith.divf %200, %201 : vector<16x64xf32>
    %203 = vector.extract_strided_slice %191 {offsets = [0, 64], sizes = [16, 64], strides = [1, 1]} : vector<16x192xf32> to vector<16x64xf32>
    %204 = vector.extract_strided_slice %194 {offsets = [0, 64], sizes = [16, 64], strides = [1, 1]} : vector<16x128xf32> to vector<16x64xf32>
    %205 = arith.addf %203, %204 : vector<16x64xf32>
    %206 = arith.negf %205 : vector<16x64xf32>
    %207 = math.exp %206 : vector<16x64xf32>
    %cst_88 = arith.constant 1.000000e+00 : f32
    %208 = vector.broadcast %cst_88 : f32 to vector<16x64xf32>
    %209 = arith.addf %208, %207 : vector<16x64xf32>
    %210 = arith.divf %208, %209 : vector<16x64xf32>
    %211 = vector.extract_strided_slice %191 {offsets = [0, 128], sizes = [16, 64], strides = [1, 1]} : vector<16x192xf32> to vector<16x64xf32>
    %212 = arith.mulf %210, %186 : vector<16x64xf32>
    %213 = arith.truncf %212 : vector<16x64xf32> to vector<16x64xbf16>
    %c0_89 = arith.constant 0 : index
    %c0_90 = arith.constant 0 : index
    %214 = vector.load %arg5[%c0_89, %c0_90] : memref<64x64xbf16, #tpu.memory_space<vmem>>, vector<64x64xbf16>
    %cst_91 = arith.constant dense<0.000000e+00> : vector<16x64xf32>
    %215 = tpu.matmul %213, %214, %cst_91 {dimension_numbers = #tpu.dot_dimension_numbers<[1], [0], [0], [1], [0, 0, 1, 1], [], []>} : vector<16x64xbf16>, vector<64x64xbf16>, vector<16x64xf32> -> vector<16x64xf32>
    %216 = arith.addf %211, %215 : vector<16x64xf32>
    %217 = math.tanh %216 : vector<16x64xf32>
    %cst_92 = arith.constant 1.000000e+00 : f32
    %218 = vector.broadcast %cst_92 : f32 to vector<16x64xf32>
    %219 = arith.subf %218, %202 : vector<16x64xf32>
    %220 = arith.mulf %219, %186 : vector<16x64xf32>
    %221 = arith.mulf %202, %217 : vector<16x64xf32>
    %222 = arith.addf %220, %221 : vector<16x64xf32>
    %c5_93 = arith.constant 5 : index
    %c0_94 = arith.constant 0 : index
    %c0_95 = arith.constant 0 : index
    %223 = vector.load %arg9[%c5_93, %c0_94, %c0_95] : memref<12x16x64xf32, #tpu.memory_space<vmem>>, vector<1x16x64xf32>
    %224 = vector.shape_cast %223 : vector<1x16x64xf32> to vector<16x64xf32>
    %225 = vector.shape_cast %222 : vector<16x64xf32> to vector<1x16x64xf32>
    tpu.vector_store %arg9[%c5_93, %c0_94, %c0_95], %225 {strides = array<i32>} : memref<12x16x64xf32, #tpu.memory_space<vmem>>, vector<1x16x64xf32>,
    %c6 = arith.constant 6 : index
    %c0_96 = arith.constant 0 : index
    %c0_97 = arith.constant 0 : index
    %226 = vector.load %arg11[%c6, %c0_96, %c0_97] : memref<12x16x192xf32, #tpu.memory_space<vmem>>, vector<1x16x192xf32>
    %227 = vector.shape_cast %226 : vector<1x16x192xf32> to vector<16x192xf32>
    %228 = arith.truncf %222 : vector<16x64xf32> to vector<16x64xbf16>
    %c0_98 = arith.constant 0 : index
    %c0_99 = arith.constant 0 : index
    %229 = vector.load %arg4[%c0_98, %c0_99] : memref<64x128xbf16, #tpu.memory_space<vmem>>, vector<64x128xbf16>
    %cst_100 = arith.constant dense<0.000000e+00> : vector<16x128xf32>
    %230 = tpu.matmul %228, %229, %cst_100 {dimension_numbers = #tpu.dot_dimension_numbers<[1], [0], [0], [1], [0, 0, 1, 1], [], []>} : vector<16x64xbf16>, vector<64x128xbf16>, vector<16x128xf32> -> vector<16x128xf32>
    %231 = vector.extract_strided_slice %227 {offsets = [0, 0], sizes = [16, 64], strides = [1, 1]} : vector<16x192xf32> to vector<16x64xf32>
    %232 = vector.extract_strided_slice %230 {offsets = [0, 0], sizes = [16, 64], strides = [1, 1]} : vector<16x128xf32> to vector<16x64xf32>
    %233 = arith.addf %231, %232 : vector<16x64xf32>
    %234 = arith.negf %233 : vector<16x64xf32>
    %235 = math.exp %234 : vector<16x64xf32>
    %cst_101 = arith.constant 1.000000e+00 : f32
    %236 = vector.broadcast %cst_101 : f32 to vector<16x64xf32>
    %237 = arith.addf %236, %235 : vector<16x64xf32>
    %238 = arith.divf %236, %237 : vector<16x64xf32>
    %239 = vector.extract_strided_slice %227 {offsets = [0, 64], sizes = [16, 64], strides = [1, 1]} : vector<16x192xf32> to vector<16x64xf32>
    %240 = vector.extract_strided_slice %230 {offsets = [0, 64], sizes = [16, 64], strides = [1, 1]} : vector<16x128xf32> to vector<16x64xf32>
    %241 = arith.addf %239, %240 : vector<16x64xf32>
    %242 = arith.negf %241 : vector<16x64xf32>
    %243 = math.exp %242 : vector<16x64xf32>
    %cst_102 = arith.constant 1.000000e+00 : f32
    %244 = vector.broadcast %cst_102 : f32 to vector<16x64xf32>
    %245 = arith.addf %244, %243 : vector<16x64xf32>
    %246 = arith.divf %244, %245 : vector<16x64xf32>
    %247 = vector.extract_strided_slice %227 {offsets = [0, 128], sizes = [16, 64], strides = [1, 1]} : vector<16x192xf32> to vector<16x64xf32>
    %248 = arith.mulf %246, %222 : vector<16x64xf32>
    %249 = arith.truncf %248 : vector<16x64xf32> to vector<16x64xbf16>
    %c0_103 = arith.constant 0 : index
    %c0_104 = arith.constant 0 : index
    %250 = vector.load %arg5[%c0_103, %c0_104] : memref<64x64xbf16, #tpu.memory_space<vmem>>, vector<64x64xbf16>
    %cst_105 = arith.constant dense<0.000000e+00> : vector<16x64xf32>
    %251 = tpu.matmul %249, %250, %cst_105 {dimension_numbers = #tpu.dot_dimension_numbers<[1], [0], [0], [1], [0, 0, 1, 1], [], []>} : vector<16x64xbf16>, vector<64x64xbf16>, vector<16x64xf32> -> vector<16x64xf32>
    %252 = arith.addf %247, %251 : vector<16x64xf32>
    %253 = math.tanh %252 : vector<16x64xf32>
    %cst_106 = arith.constant 1.000000e+00 : f32
    %254 = vector.broadcast %cst_106 : f32 to vector<16x64xf32>
    %255 = arith.subf %254, %238 : vector<16x64xf32>
    %256 = arith.mulf %255, %222 : vector<16x64xf32>
    %257 = arith.mulf %238, %253 : vector<16x64xf32>
    %258 = arith.addf %256, %257 : vector<16x64xf32>
    %c6_107 = arith.constant 6 : index
    %c0_108 = arith.constant 0 : index
    %c0_109 = arith.constant 0 : index
    %259 = vector.load %arg9[%c6_107, %c0_108, %c0_109] : memref<12x16x64xf32, #tpu.memory_space<vmem>>, vector<1x16x64xf32>
    %260 = vector.shape_cast %259 : vector<1x16x64xf32> to vector<16x64xf32>
    %261 = vector.shape_cast %258 : vector<16x64xf32> to vector<1x16x64xf32>
    tpu.vector_store %arg9[%c6_107, %c0_108, %c0_109], %261 {strides = array<i32>} : memref<12x16x64xf32, #tpu.memory_space<vmem>>, vector<1x16x64xf32>,
    %c7 = arith.constant 7 : index
    %c0_110 = arith.constant 0 : index
    %c0_111 = arith.constant 0 : index
    %262 = vector.load %arg11[%c7, %c0_110, %c0_111] : memref<12x16x192xf32, #tpu.memory_space<vmem>>, vector<1x16x192xf32>
    %263 = vector.shape_cast %262 : vector<1x16x192xf32> to vector<16x192xf32>
    %264 = arith.truncf %258 : vector<16x64xf32> to vector<16x64xbf16>
    %c0_112 = arith.constant 0 : index
    %c0_113 = arith.constant 0 : index
    %265 = vector.load %arg4[%c0_112, %c0_113] : memref<64x128xbf16, #tpu.memory_space<vmem>>, vector<64x128xbf16>
    %cst_114 = arith.constant dense<0.000000e+00> : vector<16x128xf32>
    %266 = tpu.matmul %264, %265, %cst_114 {dimension_numbers = #tpu.dot_dimension_numbers<[1], [0], [0], [1], [0, 0, 1, 1], [], []>} : vector<16x64xbf16>, vector<64x128xbf16>, vector<16x128xf32> -> vector<16x128xf32>
    %267 = vector.extract_strided_slice %263 {offsets = [0, 0], sizes = [16, 64], strides = [1, 1]} : vector<16x192xf32> to vector<16x64xf32>
    %268 = vector.extract_strided_slice %266 {offsets = [0, 0], sizes = [16, 64], strides = [1, 1]} : vector<16x128xf32> to vector<16x64xf32>
    %269 = arith.addf %267, %268 : vector<16x64xf32>
    %270 = arith.negf %269 : vector<16x64xf32>
    %271 = math.exp %270 : vector<16x64xf32>
    %cst_115 = arith.constant 1.000000e+00 : f32
    %272 = vector.broadcast %cst_115 : f32 to vector<16x64xf32>
    %273 = arith.addf %272, %271 : vector<16x64xf32>
    %274 = arith.divf %272, %273 : vector<16x64xf32>
    %275 = vector.extract_strided_slice %263 {offsets = [0, 64], sizes = [16, 64], strides = [1, 1]} : vector<16x192xf32> to vector<16x64xf32>
    %276 = vector.extract_strided_slice %266 {offsets = [0, 64], sizes = [16, 64], strides = [1, 1]} : vector<16x128xf32> to vector<16x64xf32>
    %277 = arith.addf %275, %276 : vector<16x64xf32>
    %278 = arith.negf %277 : vector<16x64xf32>
    %279 = math.exp %278 : vector<16x64xf32>
    %cst_116 = arith.constant 1.000000e+00 : f32
    %280 = vector.broadcast %cst_116 : f32 to vector<16x64xf32>
    %281 = arith.addf %280, %279 : vector<16x64xf32>
    %282 = arith.divf %280, %281 : vector<16x64xf32>
    %283 = vector.extract_strided_slice %263 {offsets = [0, 128], sizes = [16, 64], strides = [1, 1]} : vector<16x192xf32> to vector<16x64xf32>
    %284 = arith.mulf %282, %258 : vector<16x64xf32>
    %285 = arith.truncf %284 : vector<16x64xf32> to vector<16x64xbf16>
    %c0_117 = arith.constant 0 : index
    %c0_118 = arith.constant 0 : index
    %286 = vector.load %arg5[%c0_117, %c0_118] : memref<64x64xbf16, #tpu.memory_space<vmem>>, vector<64x64xbf16>
    %cst_119 = arith.constant dense<0.000000e+00> : vector<16x64xf32>
    %287 = tpu.matmul %285, %286, %cst_119 {dimension_numbers = #tpu.dot_dimension_numbers<[1], [0], [0], [1], [0, 0, 1, 1], [], []>} : vector<16x64xbf16>, vector<64x64xbf16>, vector<16x64xf32> -> vector<16x64xf32>
    %288 = arith.addf %283, %287 : vector<16x64xf32>
    %289 = math.tanh %288 : vector<16x64xf32>
    %cst_120 = arith.constant 1.000000e+00 : f32
    %290 = vector.broadcast %cst_120 : f32 to vector<16x64xf32>
    %291 = arith.subf %290, %274 : vector<16x64xf32>
    %292 = arith.mulf %291, %258 : vector<16x64xf32>
    %293 = arith.mulf %274, %289 : vector<16x64xf32>
    %294 = arith.addf %292, %293 : vector<16x64xf32>
    %c7_121 = arith.constant 7 : index
    %c0_122 = arith.constant 0 : index
    %c0_123 = arith.constant 0 : index
    %295 = vector.load %arg9[%c7_121, %c0_122, %c0_123] : memref<12x16x64xf32, #tpu.memory_space<vmem>>, vector<1x16x64xf32>
    %296 = vector.shape_cast %295 : vector<1x16x64xf32> to vector<16x64xf32>
    %297 = vector.shape_cast %294 : vector<16x64xf32> to vector<1x16x64xf32>
    tpu.vector_store %arg9[%c7_121, %c0_122, %c0_123], %297 {strides = array<i32>} : memref<12x16x64xf32, #tpu.memory_space<vmem>>, vector<1x16x64xf32>,
    %c8 = arith.constant 8 : index
    %c0_124 = arith.constant 0 : index
    %c0_125 = arith.constant 0 : index
    %298 = vector.load %arg11[%c8, %c0_124, %c0_125] : memref<12x16x192xf32, #tpu.memory_space<vmem>>, vector<1x16x192xf32>
    %299 = vector.shape_cast %298 : vector<1x16x192xf32> to vector<16x192xf32>
    %300 = arith.truncf %294 : vector<16x64xf32> to vector<16x64xbf16>
    %c0_126 = arith.constant 0 : index
    %c0_127 = arith.constant 0 : index
    %301 = vector.load %arg4[%c0_126, %c0_127] : memref<64x128xbf16, #tpu.memory_space<vmem>>, vector<64x128xbf16>
    %cst_128 = arith.constant dense<0.000000e+00> : vector<16x128xf32>
    %302 = tpu.matmul %300, %301, %cst_128 {dimension_numbers = #tpu.dot_dimension_numbers<[1], [0], [0], [1], [0, 0, 1, 1], [], []>} : vector<16x64xbf16>, vector<64x128xbf16>, vector<16x128xf32> -> vector<16x128xf32>
    %303 = vector.extract_strided_slice %299 {offsets = [0, 0], sizes = [16, 64], strides = [1, 1]} : vector<16x192xf32> to vector<16x64xf32>
    %304 = vector.extract_strided_slice %302 {offsets = [0, 0], sizes = [16, 64], strides = [1, 1]} : vector<16x128xf32> to vector<16x64xf32>
    %305 = arith.addf %303, %304 : vector<16x64xf32>
    %306 = arith.negf %305 : vector<16x64xf32>
    %307 = math.exp %306 : vector<16x64xf32>
    %cst_129 = arith.constant 1.000000e+00 : f32
    %308 = vector.broadcast %cst_129 : f32 to vector<16x64xf32>
    %309 = arith.addf %308, %307 : vector<16x64xf32>
    %310 = arith.divf %308, %309 : vector<16x64xf32>
    %311 = vector.extract_strided_slice %299 {offsets = [0, 64], sizes = [16, 64], strides = [1, 1]} : vector<16x192xf32> to vector<16x64xf32>
    %312 = vector.extract_strided_slice %302 {offsets = [0, 64], sizes = [16, 64], strides = [1, 1]} : vector<16x128xf32> to vector<16x64xf32>
    %313 = arith.addf %311, %312 : vector<16x64xf32>
    %314 = arith.negf %313 : vector<16x64xf32>
    %315 = math.exp %314 : vector<16x64xf32>
    %cst_130 = arith.constant 1.000000e+00 : f32
    %316 = vector.broadcast %cst_130 : f32 to vector<16x64xf32>
    %317 = arith.addf %316, %315 : vector<16x64xf32>
    %318 = arith.divf %316, %317 : vector<16x64xf32>
    %319 = vector.extract_strided_slice %299 {offsets = [0, 128], sizes = [16, 64], strides = [1, 1]} : vector<16x192xf32> to vector<16x64xf32>
    %320 = arith.mulf %318, %294 : vector<16x64xf32>
    %321 = arith.truncf %320 : vector<16x64xf32> to vector<16x64xbf16>
    %c0_131 = arith.constant 0 : index
    %c0_132 = arith.constant 0 : index
    %322 = vector.load %arg5[%c0_131, %c0_132] : memref<64x64xbf16, #tpu.memory_space<vmem>>, vector<64x64xbf16>
    %cst_133 = arith.constant dense<0.000000e+00> : vector<16x64xf32>
    %323 = tpu.matmul %321, %322, %cst_133 {dimension_numbers = #tpu.dot_dimension_numbers<[1], [0], [0], [1], [0, 0, 1, 1], [], []>} : vector<16x64xbf16>, vector<64x64xbf16>, vector<16x64xf32> -> vector<16x64xf32>
    %324 = arith.addf %319, %323 : vector<16x64xf32>
    %325 = math.tanh %324 : vector<16x64xf32>
    %cst_134 = arith.constant 1.000000e+00 : f32
    %326 = vector.broadcast %cst_134 : f32 to vector<16x64xf32>
    %327 = arith.subf %326, %310 : vector<16x64xf32>
    %328 = arith.mulf %327, %294 : vector<16x64xf32>
    %329 = arith.mulf %310, %325 : vector<16x64xf32>
    %330 = arith.addf %328, %329 : vector<16x64xf32>
    %c8_135 = arith.constant 8 : index
    %c0_136 = arith.constant 0 : index
    %c0_137 = arith.constant 0 : index
    %331 = vector.load %arg9[%c8_135, %c0_136, %c0_137] : memref<12x16x64xf32, #tpu.memory_space<vmem>>, vector<1x16x64xf32>
    %332 = vector.shape_cast %331 : vector<1x16x64xf32> to vector<16x64xf32>
    %333 = vector.shape_cast %330 : vector<16x64xf32> to vector<1x16x64xf32>
    tpu.vector_store %arg9[%c8_135, %c0_136, %c0_137], %333 {strides = array<i32>} : memref<12x16x64xf32, #tpu.memory_space<vmem>>, vector<1x16x64xf32>,
    %c9 = arith.constant 9 : index
    %c0_138 = arith.constant 0 : index
    %c0_139 = arith.constant 0 : index
    %334 = vector.load %arg11[%c9, %c0_138, %c0_139] : memref<12x16x192xf32, #tpu.memory_space<vmem>>, vector<1x16x192xf32>
    %335 = vector.shape_cast %334 : vector<1x16x192xf32> to vector<16x192xf32>
    %336 = arith.truncf %330 : vector<16x64xf32> to vector<16x64xbf16>
    %c0_140 = arith.constant 0 : index
    %c0_141 = arith.constant 0 : index
    %337 = vector.load %arg4[%c0_140, %c0_141] : memref<64x128xbf16, #tpu.memory_space<vmem>>, vector<64x128xbf16>
    %cst_142 = arith.constant dense<0.000000e+00> : vector<16x128xf32>
    %338 = tpu.matmul %336, %337, %cst_142 {dimension_numbers = #tpu.dot_dimension_numbers<[1], [0], [0], [1], [0, 0, 1, 1], [], []>} : vector<16x64xbf16>, vector<64x128xbf16>, vector<16x128xf32> -> vector<16x128xf32>
    %339 = vector.extract_strided_slice %335 {offsets = [0, 0], sizes = [16, 64], strides = [1, 1]} : vector<16x192xf32> to vector<16x64xf32>
    %340 = vector.extract_strided_slice %338 {offsets = [0, 0], sizes = [16, 64], strides = [1, 1]} : vector<16x128xf32> to vector<16x64xf32>
    %341 = arith.addf %339, %340 : vector<16x64xf32>
    %342 = arith.negf %341 : vector<16x64xf32>
    %343 = math.exp %342 : vector<16x64xf32>
    %cst_143 = arith.constant 1.000000e+00 : f32
    %344 = vector.broadcast %cst_143 : f32 to vector<16x64xf32>
    %345 = arith.addf %344, %343 : vector<16x64xf32>
    %346 = arith.divf %344, %345 : vector<16x64xf32>
    %347 = vector.extract_strided_slice %335 {offsets = [0, 64], sizes = [16, 64], strides = [1, 1]} : vector<16x192xf32> to vector<16x64xf32>
    %348 = vector.extract_strided_slice %338 {offsets = [0, 64], sizes = [16, 64], strides = [1, 1]} : vector<16x128xf32> to vector<16x64xf32>
    %349 = arith.addf %347, %348 : vector<16x64xf32>
    %350 = arith.negf %349 : vector<16x64xf32>
    %351 = math.exp %350 : vector<16x64xf32>
    %cst_144 = arith.constant 1.000000e+00 : f32
    %352 = vector.broadcast %cst_144 : f32 to vector<16x64xf32>
    %353 = arith.addf %352, %351 : vector<16x64xf32>
    %354 = arith.divf %352, %353 : vector<16x64xf32>
    %355 = vector.extract_strided_slice %335 {offsets = [0, 128], sizes = [16, 64], strides = [1, 1]} : vector<16x192xf32> to vector<16x64xf32>
    %356 = arith.mulf %354, %330 : vector<16x64xf32>
    %357 = arith.truncf %356 : vector<16x64xf32> to vector<16x64xbf16>
    %c0_145 = arith.constant 0 : index
    %c0_146 = arith.constant 0 : index
    %358 = vector.load %arg5[%c0_145, %c0_146] : memref<64x64xbf16, #tpu.memory_space<vmem>>, vector<64x64xbf16>
    %cst_147 = arith.constant dense<0.000000e+00> : vector<16x64xf32>
    %359 = tpu.matmul %357, %358, %cst_147 {dimension_numbers = #tpu.dot_dimension_numbers<[1], [0], [0], [1], [0, 0, 1, 1], [], []>} : vector<16x64xbf16>, vector<64x64xbf16>, vector<16x64xf32> -> vector<16x64xf32>
    %360 = arith.addf %355, %359 : vector<16x64xf32>
    %361 = math.tanh %360 : vector<16x64xf32>
    %cst_148 = arith.constant 1.000000e+00 : f32
    %362 = vector.broadcast %cst_148 : f32 to vector<16x64xf32>
    %363 = arith.subf %362, %346 : vector<16x64xf32>
    %364 = arith.mulf %363, %330 : vector<16x64xf32>
    %365 = arith.mulf %346, %361 : vector<16x64xf32>
    %366 = arith.addf %364, %365 : vector<16x64xf32>
    %c9_149 = arith.constant 9 : index
    %c0_150 = arith.constant 0 : index
    %c0_151 = arith.constant 0 : index
    %367 = vector.load %arg9[%c9_149, %c0_150, %c0_151] : memref<12x16x64xf32, #tpu.memory_space<vmem>>, vector<1x16x64xf32>
    %368 = vector.shape_cast %367 : vector<1x16x64xf32> to vector<16x64xf32>
    %369 = vector.shape_cast %366 : vector<16x64xf32> to vector<1x16x64xf32>
    tpu.vector_store %arg9[%c9_149, %c0_150, %c0_151], %369 {strides = array<i32>} : memref<12x16x64xf32, #tpu.memory_space<vmem>>, vector<1x16x64xf32>,
    %c10 = arith.constant 10 : index
    %c0_152 = arith.constant 0 : index
    %c0_153 = arith.constant 0 : index
    %370 = vector.load %arg11[%c10, %c0_152, %c0_153] : memref<12x16x192xf32, #tpu.memory_space<vmem>>, vector<1x16x192xf32>
    %371 = vector.shape_cast %370 : vector<1x16x192xf32> to vector<16x192xf32>
    %372 = arith.truncf %366 : vector<16x64xf32> to vector<16x64xbf16>
    %c0_154 = arith.constant 0 : index
    %c0_155 = arith.constant 0 : index
    %373 = vector.load %arg4[%c0_154, %c0_155] : memref<64x128xbf16, #tpu.memory_space<vmem>>, vector<64x128xbf16>
    %cst_156 = arith.constant dense<0.000000e+00> : vector<16x128xf32>
    %374 = tpu.matmul %372, %373, %cst_156 {dimension_numbers = #tpu.dot_dimension_numbers<[1], [0], [0], [1], [0, 0, 1, 1], [], []>} : vector<16x64xbf16>, vector<64x128xbf16>, vector<16x128xf32> -> vector<16x128xf32>
    %375 = vector.extract_strided_slice %371 {offsets = [0, 0], sizes = [16, 64], strides = [1, 1]} : vector<16x192xf32> to vector<16x64xf32>
    %376 = vector.extract_strided_slice %374 {offsets = [0, 0], sizes = [16, 64], strides = [1, 1]} : vector<16x128xf32> to vector<16x64xf32>
    %377 = arith.addf %375, %376 : vector<16x64xf32>
    %378 = arith.negf %377 : vector<16x64xf32>
    %379 = math.exp %378 : vector<16x64xf32>
    %cst_157 = arith.constant 1.000000e+00 : f32
    %380 = vector.broadcast %cst_157 : f32 to vector<16x64xf32>
    %381 = arith.addf %380, %379 : vector<16x64xf32>
    %382 = arith.divf %380, %381 : vector<16x64xf32>
    %383 = vector.extract_strided_slice %371 {offsets = [0, 64], sizes = [16, 64], strides = [1, 1]} : vector<16x192xf32> to vector<16x64xf32>
    %384 = vector.extract_strided_slice %374 {offsets = [0, 64], sizes = [16, 64], strides = [1, 1]} : vector<16x128xf32> to vector<16x64xf32>
    %385 = arith.addf %383, %384 : vector<16x64xf32>
    %386 = arith.negf %385 : vector<16x64xf32>
    %387 = math.exp %386 : vector<16x64xf32>
    %cst_158 = arith.constant 1.000000e+00 : f32
    %388 = vector.broadcast %cst_158 : f32 to vector<16x64xf32>
    %389 = arith.addf %388, %387 : vector<16x64xf32>
    %390 = arith.divf %388, %389 : vector<16x64xf32>
    %391 = vector.extract_strided_slice %371 {offsets = [0, 128], sizes = [16, 64], strides = [1, 1]} : vector<16x192xf32> to vector<16x64xf32>
    %392 = arith.mulf %390, %366 : vector<16x64xf32>
    %393 = arith.truncf %392 : vector<16x64xf32> to vector<16x64xbf16>
    %c0_159 = arith.constant 0 : index
    %c0_160 = arith.constant 0 : index
    %394 = vector.load %arg5[%c0_159, %c0_160] : memref<64x64xbf16, #tpu.memory_space<vmem>>, vector<64x64xbf16>
    %cst_161 = arith.constant dense<0.000000e+00> : vector<16x64xf32>
    %395 = tpu.matmul %393, %394, %cst_161 {dimension_numbers = #tpu.dot_dimension_numbers<[1], [0], [0], [1], [0, 0, 1, 1], [], []>} : vector<16x64xbf16>, vector<64x64xbf16>, vector<16x64xf32> -> vector<16x64xf32>
    %396 = arith.addf %391, %395 : vector<16x64xf32>
    %397 = math.tanh %396 : vector<16x64xf32>
    %cst_162 = arith.constant 1.000000e+00 : f32
    %398 = vector.broadcast %cst_162 : f32 to vector<16x64xf32>
    %399 = arith.subf %398, %382 : vector<16x64xf32>
    %400 = arith.mulf %399, %366 : vector<16x64xf32>
    %401 = arith.mulf %382, %397 : vector<16x64xf32>
    %402 = arith.addf %400, %401 : vector<16x64xf32>
    %c10_163 = arith.constant 10 : index
    %c0_164 = arith.constant 0 : index
    %c0_165 = arith.constant 0 : index
    %403 = vector.load %arg9[%c10_163, %c0_164, %c0_165] : memref<12x16x64xf32, #tpu.memory_space<vmem>>, vector<1x16x64xf32>
    %404 = vector.shape_cast %403 : vector<1x16x64xf32> to vector<16x64xf32>
    %405 = vector.shape_cast %402 : vector<16x64xf32> to vector<1x16x64xf32>
    tpu.vector_store %arg9[%c10_163, %c0_164, %c0_165], %405 {strides = array<i32>} : memref<12x16x64xf32, #tpu.memory_space<vmem>>, vector<1x16x64xf32>,
    %c11 = arith.constant 11 : index
    %c0_166 = arith.constant 0 : index
    %c0_167 = arith.constant 0 : index
    %406 = vector.load %arg11[%c11, %c0_166, %c0_167] : memref<12x16x192xf32, #tpu.memory_space<vmem>>, vector<1x16x192xf32>
    %407 = vector.shape_cast %406 : vector<1x16x192xf32> to vector<16x192xf32>
    %408 = arith.truncf %402 : vector<16x64xf32> to vector<16x64xbf16>
    %c0_168 = arith.constant 0 : index
    %c0_169 = arith.constant 0 : index
    %409 = vector.load %arg4[%c0_168, %c0_169] : memref<64x128xbf16, #tpu.memory_space<vmem>>, vector<64x128xbf16>
    %cst_170 = arith.constant dense<0.000000e+00> : vector<16x128xf32>
    %410 = tpu.matmul %408, %409, %cst_170 {dimension_numbers = #tpu.dot_dimension_numbers<[1], [0], [0], [1], [0, 0, 1, 1], [], []>} : vector<16x64xbf16>, vector<64x128xbf16>, vector<16x128xf32> -> vector<16x128xf32>
    %411 = vector.extract_strided_slice %407 {offsets = [0, 0], sizes = [16, 64], strides = [1, 1]} : vector<16x192xf32> to vector<16x64xf32>
    %412 = vector.extract_strided_slice %410 {offsets = [0, 0], sizes = [16, 64], strides = [1, 1]} : vector<16x128xf32> to vector<16x64xf32>
    %413 = arith.addf %411, %412 : vector<16x64xf32>
    %414 = arith.negf %413 : vector<16x64xf32>
    %415 = math.exp %414 : vector<16x64xf32>
    %cst_171 = arith.constant 1.000000e+00 : f32
    %416 = vector.broadcast %cst_171 : f32 to vector<16x64xf32>
    %417 = arith.addf %416, %415 : vector<16x64xf32>
    %418 = arith.divf %416, %417 : vector<16x64xf32>
    %419 = vector.extract_strided_slice %407 {offsets = [0, 64], sizes = [16, 64], strides = [1, 1]} : vector<16x192xf32> to vector<16x64xf32>
    %420 = vector.extract_strided_slice %410 {offsets = [0, 64], sizes = [16, 64], strides = [1, 1]} : vector<16x128xf32> to vector<16x64xf32>
    %421 = arith.addf %419, %420 : vector<16x64xf32>
    %422 = arith.negf %421 : vector<16x64xf32>
    %423 = math.exp %422 : vector<16x64xf32>
    %cst_172 = arith.constant 1.000000e+00 : f32
    %424 = vector.broadcast %cst_172 : f32 to vector<16x64xf32>
    %425 = arith.addf %424, %423 : vector<16x64xf32>
    %426 = arith.divf %424, %425 : vector<16x64xf32>
    %427 = vector.extract_strided_slice %407 {offsets = [0, 128], sizes = [16, 64], strides = [1, 1]} : vector<16x192xf32> to vector<16x64xf32>
    %428 = arith.mulf %426, %402 : vector<16x64xf32>
    %429 = arith.truncf %428 : vector<16x64xf32> to vector<16x64xbf16>
    %c0_173 = arith.constant 0 : index
    %c0_174 = arith.constant 0 : index
    %430 = vector.load %arg5[%c0_173, %c0_174] : memref<64x64xbf16, #tpu.memory_space<vmem>>, vector<64x64xbf16>
    %cst_175 = arith.constant dense<0.000000e+00> : vector<16x64xf32>
    %431 = tpu.matmul %429, %430, %cst_175 {dimension_numbers = #tpu.dot_dimension_numbers<[1], [0], [0], [1], [0, 0, 1, 1], [], []>} : vector<16x64xbf16>, vector<64x64xbf16>, vector<16x64xf32> -> vector<16x64xf32>
    %432 = arith.addf %427, %431 : vector<16x64xf32>
    %433 = math.tanh %432 : vector<16x64xf32>
    %cst_176 = arith.constant 1.000000e+00 : f32
    %434 = vector.broadcast %cst_176 : f32 to vector<16x64xf32>
    %435 = arith.subf %434, %418 : vector<16x64xf32>
    %436 = arith.mulf %435, %402 : vector<16x64xf32>
    %437 = arith.mulf %418, %433 : vector<16x64xf32>
    %438 = arith.addf %436, %437 : vector<16x64xf32>
    %c11_177 = arith.constant 11 : index
    %c0_178 = arith.constant 0 : index
    %c0_179 = arith.constant 0 : index
    %439 = vector.load %arg9[%c11_177, %c0_178, %c0_179] : memref<12x16x64xf32, #tpu.memory_space<vmem>>, vector<1x16x64xf32>
    %440 = vector.shape_cast %439 : vector<1x16x64xf32> to vector<16x64xf32>
    %441 = vector.shape_cast %438 : vector<16x64xf32> to vector<1x16x64xf32>
    tpu.vector_store %arg9[%c11_177, %c0_178, %c0_179], %441 {strides = array<i32>} : memref<12x16x64xf32, #tpu.memory_space<vmem>>, vector<1x16x64xf32>,
    %c0_180 = arith.constant 0 : index
    %c0_181 = arith.constant 0 : index
    %c0_182 = arith.constant 0 : index
    %442 = vector.load %arg9[%c0_180, %c0_181, %c0_182] : memref<12x16x64xf32, #tpu.memory_space<vmem>>, vector<12x16x64xf32>
    %443 = vector.shape_cast %442 : vector<12x16x64xf32> to vector<192x64xf32>
    %444 = arith.truncf %443 : vector<192x64xf32> to vector<192x64xbf16>
    %c0_183 = arith.constant 0 : index
    %c0_184 = arith.constant 0 : index
    %445 = vector.load %arg7[%c0_183, %c0_184] : memref<64x128xbf16, #tpu.memory_space<vmem>>, vector<64x128xbf16>
    %cst_185 = arith.constant dense<0.000000e+00> : vector<192x128xf32>
    %446 = tpu.matmul %444, %445, %cst_185 {dimension_numbers = #tpu.dot_dimension_numbers<[1], [0], [0], [1], [0, 0, 1, 1], [], []>} : vector<192x64xbf16>, vector<64x128xbf16>, vector<192x128xf32> -> vector<192x128xf32>
    %c0_186 = arith.constant 0 : index
    %c0_187 = arith.constant 0 : index
    %447 = vector.load %arg8[%c0_186, %c0_187] : memref<1x128xf32, #tpu.memory_space<vmem>>, vector<1x128xf32>
    %448 = vector.broadcast %447 : vector<1x128xf32> to vector<192x128xf32>
    %449 = arith.addf %446, %448 : vector<192x128xf32>
    %450 = arith.negf %449 : vector<192x128xf32>
    %451 = math.exp %450 : vector<192x128xf32>
    %cst_188 = arith.constant 1.000000e+00 : f32
    %452 = vector.broadcast %cst_188 : f32 to vector<192x128xf32>
    %453 = arith.addf %452, %451 : vector<192x128xf32>
    %454 = arith.divf %452, %453 : vector<192x128xf32>
    %455 = vector.shape_cast %454 : vector<192x128xf32> to vector<12x16x128xf32>
    %c0_189 = arith.constant 0 : index
    %c0_190 = arith.constant 0 : index
    %c0_191 = arith.constant 0 : index
    %456 = vector.load %arg10[%c0_189, %c0_190, %c0_191] : memref<12x16x128xf32, #tpu.memory_space<vmem>>, vector<12x16x128xf32>
    tpu.vector_store %arg10[%c0_189, %c0_190, %c0_191], %455 {strides = array<i32>} : memref<12x16x128xf32, #tpu.memory_space<vmem>>, vector<12x16x128xf32>,
    return
  }
  func.func @transform_0(%arg0: i32) -> (i32, i32, i32) {
    %c0_i32 = arith.constant 0 : i32
    %c0_i32_0 = arith.constant 0 : i32
    %c0_i32_1 = arith.constant 0 : i32
    return %c0_i32, %arg0, %c0_i32_0 : i32, i32, i32
  }
  func.func @transform_1(%arg0: i32) -> (i32, i32) {
    %c0_i32 = arith.constant 0 : i32
    %c0_i32_0 = arith.constant 0 : i32
    return %arg0, %c0_i32 : i32, i32
  }
  func.func @transform_2(%arg0: i32) -> (i32, i32) {
    %c0_i32 = arith.constant 0 : i32
    %c0_i32_0 = arith.constant 0 : i32
    %c0_i32_1 = arith.constant 0 : i32
    return %c0_i32, %c0_i32_0 : i32, i32
  }
  func.func @transform_3(%arg0: i32) -> (i32, i32) {
    %c0_i32 = arith.constant 0 : i32
    %c0_i32_0 = arith.constant 0 : i32
    %c0_i32_1 = arith.constant 0 : i32
    return %c0_i32, %c0_i32_0 : i32, i32
  }
  func.func @transform_4(%arg0: i32) -> (i32, i32) {
    %c0_i32 = arith.constant 0 : i32
    %c0_i32_0 = arith.constant 0 : i32
    %c0_i32_1 = arith.constant 0 : i32
    return %c0_i32, %c0_i32_0 : i32, i32
  }
  func.func @transform_5(%arg0: i32) -> (i32, i32) {
    %c0_i32 = arith.constant 0 : i32
    %c0_i32_0 = arith.constant 0 : i32
    %c0_i32_1 = arith.constant 0 : i32
    return %c0_i32, %c0_i32_0 : i32, i32
  }
  func.func @transform_6(%arg0: i32) -> (i32, i32) {
    %c0_i32 = arith.constant 0 : i32
    %c0_i32_0 = arith.constant 0 : i32
    %c0_i32_1 = arith.constant 0 : i32
    return %c0_i32, %c0_i32_0 : i32, i32
  }
  func.func @transform_7(%arg0: i32) -> (i32, i32) {
    %c0_i32 = arith.constant 0 : i32
    %c0_i32_0 = arith.constant 0 : i32
    %c0_i32_1 = arith.constant 0 : i32
    return %c0_i32, %c0_i32_0 : i32, i32
  }
  func.func @transform_8(%arg0: i32) -> (i32, i32, i32) {
    %c0_i32 = arith.constant 0 : i32
    %c0_i32_0 = arith.constant 0 : i32
    %c0_i32_1 = arith.constant 0 : i32
    return %c0_i32, %arg0, %c0_i32_0 : i32, i32, i32
  }
  func.func @transform_9(%arg0: i32) -> (i32, i32, i32) {
    %c0_i32 = arith.constant 0 : i32
    %c0_i32_0 = arith.constant 0 : i32
    %c0_i32_1 = arith.constant 0 : i32
    return %c0_i32, %arg0, %c0_i32_0 : i32, i32, i32
  }
}

</mosaic_0001>

<llo_original>
// kernel: ex_gru_sequence.1
$region0: #{ex_gru_sequence.1}
  #allocation0 [shape = 'u32[]', space=smem, size = 0x4, offset = 0x4, fixed_abs, tag = 'smem constant byte address 0x4 - core index']
  #allocation1 [shape = 'u32[144,128]{1,0:T(1,128)}', space=vmem, size = 0x12000, scoped, tag = 'internal scratch']
  #allocation2 [shape = 'f32[12,16,192]{2,1,0:T(8,128)}', space=vmem, size = 0x30000, scoped, tag = 'scratch operand']
  %s0 = inlined_call_operand.vmem [shape: bf16[12,16,128], index: 0, kind: input, shape index: {}]
  %s1 = inlined_call_operand.vmem [shape: f32[16,64], index: 1, kind: input, shape index: {}]
  %s2 = inlined_call_operand.vmem [shape: bf16[128,192], index: 2, kind: input, shape index: {}]
  %s3 = inlined_call_operand.vmem [shape: bf16[64,128], index: 3, kind: input, shape index: {}]
  %s4 = inlined_call_operand.vmem [shape: bf16[64,64], index: 4, kind: input, shape index: {}]
  %s5 = inlined_call_operand.vmem [shape: f32[1,192], index: 5, kind: input, shape index: {}]
  %s6 = inlined_call_operand.vmem [shape: bf16[64,128], index: 6, kind: input, shape index: {}]
  %s7 = inlined_call_operand.vmem [shape: f32[1,128], index: 7, kind: input, shape index: {}]
  %s8 = inlined_call_operand.vmem [shape: f32[12,16,64], index: 8, kind: output, shape index: {0}]
  %s9 = inlined_call_operand.vmem [shape: f32[12,16,128], index: 9, kind: output, shape index: {1}]
  %10 = xla_tuple %s8, %s9
  %s11 = sld [smem:[#allocation0]]
  $region50: #{ex_gru_sequence.1} parent=0
    _
  %s13 = ssub.s32 1, %s11
  %s14 = scalar_select 0, %s13, %s11
  // Predicated region
  $region2: #{ex_gru_sequence.1} parent=0 // pred_check
    _
  $region3: #{ex_gru_sequence.1} parent=0 // pred_check_branch
    %16 = sbr.rel (0) target = $region5
  $region4: #{ex_gru_sequence.1} parent=0 // pred_region
    _
  $region5: #{ex_gru_sequence.1} parent=0 // pred_fallthru
    _
  // Predicated region
  $region6: #{ex_gru_sequence.1} parent=0 // pred_check
    _
  $region7: #{ex_gru_sequence.1} parent=0 // pred_check_branch
    %18 = sbr.rel (0) target = $region9
  $region8: #{ex_gru_sequence.1} parent=0 // pred_region
    _
  $region9: #{ex_gru_sequence.1} parent=0 // pred_fallthru
    _
  // Predicated region
  $region10: #{ex_gru_sequence.1} parent=0 // pred_check
    _
  $region11: #{ex_gru_sequence.1} parent=0 // pred_check_branch
    %20 = sbr.rel (0) target = $region13
  $region12: #{ex_gru_sequence.1} parent=0 // pred_region
    _
  $region13: #{ex_gru_sequence.1} parent=0 // pred_fallthru
    _
  // Predicated region
  $region14: #{ex_gru_sequence.1} parent=0 // pred_check
    _
  $region15: #{ex_gru_sequence.1} parent=0 // pred_check_branch
    %22 = sbr.rel (0) target = $region17
  $region16: #{ex_gru_sequence.1} parent=0 // pred_region
    _
  $region17: #{ex_gru_sequence.1} parent=0 // pred_fallthru
    _
  // Predicated region
  $region18: #{ex_gru_sequence.1} parent=0 // pred_check
    _
  $region19: #{ex_gru_sequence.1} parent=0 // pred_check_branch
    %24 = sbr.rel (0) target = $region21
  $region20: #{ex_gru_sequence.1} parent=0 // pred_region
    _
  $region21: #{ex_gru_sequence.1} parent=0 // pred_fallthru
    _
  // Predicated region
  $region22: #{ex_gru_sequence.1} parent=0 // pred_check
    _
  $region23: #{ex_gru_sequence.1} parent=0 // pred_check_branch
    %26 = sbr.rel (0) target = $region25
  $region24: #{ex_gru_sequence.1} parent=0 // pred_region
    _
  $region25: #{ex_gru_sequence.1} parent=0 // pred_fallthru
    _
  // Predicated region
  $region26: #{ex_gru_sequence.1} parent=0 // pred_check
    _
  $region27: #{ex_gru_sequence.1} parent=0 // pred_check_branch
    %28 = sbr.rel (0) target = $region29
  $region28: #{ex_gru_sequence.1} parent=0 // pred_region
    _
  $region29: #{ex_gru_sequence.1} parent=0 // pred_fallthru
    _
  // Predicated region
  $region30: #{ex_gru_sequence.1} parent=0 // pred_check
    _
  $region31: #{ex_gru_sequence.1} parent=0 // pred_check_branch
    %30 = sbr.rel (0) target = $region33
  $region32: #{ex_gru_sequence.1} parent=0 // pred_region
    _
  $region33: #{ex_gru_sequence.1} parent=0 // pred_fallthru
    _
  %v32 = vld [vmem:[%s0] sm:$0xf]
  %v33 = vld [vmem:[%s0 + $0x4] sm:$0xf]
  %v34 = vld [vmem:[%s0 + $0x8] sm:$0xf]
  %v35 = vld [vmem:[%s0 + $0xc] sm:$0xf]
  %v36 = vld [vmem:[%s0 + $0x10] sm:$0xf]
  %v37 = vld [vmem:[%s0 + $0x14] sm:$0xf]
  %v38 = vld [vmem:[%s0 + $0x18] sm:$0xf]
  %v39 = vld [vmem:[%s0 + $0x1c] sm:$0xf]
  %v40 = vld [vmem:[%s0 + $0x20] sm:$0xf]
  %v41 = vld [vmem:[%s0 + $0x24] sm:$0xf]
  %v42 = vld [vmem:[%s0 + $0x28] sm:$0xf]
  %v43 = vld [vmem:[%s0 + $0x2c] sm:$0xf]
  %v44 = vld [vmem:[%s0 + $0x30] sm:$0xf]
  %v45 = vld [vmem:[%s0 + $0x34] sm:$0xf]
  %v46 = vld [vmem:[%s0 + $0x38] sm:$0xf]
  %v47 = vld [vmem:[%s0 + $0x3c] sm:$0xf]
  %v48 = vld [vmem:[%s0 + $0x40] sm:$0xf]
  %v49 = vld [vmem:[%s0 + $0x44] sm:$0xf]
  %v50 = vld [vmem:[%s0 + $0x48] sm:$0xf]
  %v51 = vld [vmem:[%s0 + $0x4c] sm:$0xf]
  %v52 = vld [vmem:[%s0 + $0x50] sm:$0xf]
  %v53 = vld [vmem:[%s0 + $0x54] sm:$0xf]
  %v54 = vld [vmem:[%s0 + $0x58] sm:$0xf]
  %v55 = vld [vmem:[%s0 + $0x5c] sm:$0xf]
  %v56 = vld [vmem:[%s2] sm:$0xff]
  %v57 = vld [vmem:[%s2 + $0x8] sm:$0xff]
  %v58 = vld [vmem:[%s2 + $0x10] sm:$0xff]
  %v59 = vld [vmem:[%s2 + $0x18] sm:$0xff]
  %v60 = vld [vmem:[%s2 + $0x20] sm:$0xff]
  %v61 = vld [vmem:[%s2 + $0x28] sm:$0xff]
  %v62 = vld [vmem:[%s2 + $0x30] sm:$0xff]
  %v63 = vld [vmem:[%s2 + $0x38] sm:$0xff]
  %v64 = vld [vmem:[%s2 + $0x40] sm:$0xff]
  %v65 = vld [vmem:[%s2 + $0x48] sm:$0xff]
  %v66 = vld [vmem:[%s2 + $0x50] sm:$0xff]
  %v67 = vld [vmem:[%s2 + $0x58] sm:$0xff]
  %v68 = vld [vmem:[%s2 + $0x60] sm:$0xff]
  %v69 = vld [vmem:[%s2 + $0x68] sm:$0xff]
  %v70 = vld [vmem:[%s2 + $0x70] sm:$0xff]
  %v71 = vld [vmem:[%s2 + $0x78] sm:$0xff]
  %v72 = vld [vmem:[%s5] sm:$0x3]
  %v74 = vlaneseq
  %v75 = vshrl.u32 %v74, 7
  %v76 = vsub.s32 0, %v75
  %v77 = vrot.slane %v72, %v76
  %v78 = vlaneseq
  %v79 = vshrl.u32 %v78, 7
  %v80 = vsub.s32 1, %v79
  %v81 = vrot.slane %v72, %v80
  %v108 = vunpack.c.l.b16 %v32
  %v109 = vunpack.c.l.b16 %v33
  %v110 = vunpack.c.l.b16 %v34
  %v111 = vunpack.c.l.b16 %v35
  %v112 = vunpack.c.l.b16 %v36
  %v113 = vunpack.c.l.b16 %v37
  %v114 = vunpack.c.l.b16 %v38
  %v115 = vunpack.c.l.b16 %v39
  %v116 = vunpack.c.l.b16 %v40
  %v117 = vunpack.c.l.b16 %v41
  %v118 = vunpack.c.l.b16 %v42
  %v119 = vunpack.c.l.b16 %v43
  %v120 = vunpack.c.l.b16 %v44
  %v121 = vunpack.c.l.b16 %v45
  %v122 = vunpack.c.l.b16 %v46
  %v123 = vunpack.c.l.b16 %v47
  %v124 = vunpack.c.l.b16 %v48
  %v125 = vunpack.c.l.b16 %v49
  %v126 = vunpack.c.l.b16 %v50
  %v127 = vunpack.c.l.b16 %v51
  %v128 = vunpack.c.l.b16 %v52
  %v129 = vunpack.c.l.b16 %v53
  %v130 = vunpack.c.l.b16 %v54
  %v131 = vunpack.c.l.b16 %v55
  %v132 = vpack.c.b16 %v109, %v108
  %v133 = vpack.c.b16 %v111, %v110
  %v134 = vpack.c.b16 %v113, %v112
  %v135 = vpack.c.b16 %v115, %v114
  %v136 = vpack.c.b16 %v117, %v116
  %v137 = vpack.c.b16 %v119, %v118
  %v138 = vpack.c.b16 %v121, %v120
  %v139 = vpack.c.b16 %v123, %v122
  %v140 = vpack.c.b16 %v125, %v124
  %v141 = vpack.c.b16 %v127, %v126
  %v142 = vpack.c.b16 %v129, %v128
  %v143 = vpack.c.b16 %v131, %v130
  %v172 = vunpack.c.l.b16 %v56
  %v173 = vunpack.c.h.b16 %v56
  %v174 = vunpack.c.l.b16 %v57
  %v175 = vunpack.c.h.b16 %v57
  %v176 = vunpack.c.l.b16 %v58
  %v177 = vunpack.c.h.b16 %v58
  %v178 = vunpack.c.l.b16 %v59
  %v179 = vunpack.c.h.b16 %v59
  %v180 = vunpack.c.l.b16 %v60
  %v181 = vunpack.c.h.b16 %v60
  %v182 = vunpack.c.l.b16 %v61
  %v183 = vunpack.c.h.b16 %v61
  %v184 = vunpack.c.l.b16 %v62
  %v185 = vunpack.c.h.b16 %v62
  %v186 = vunpack.c.l.b16 %v63
  %v187 = vunpack.c.h.b16 %v63
  %v188 = vunpack.c.l.b16 %v64
  %v189 = vunpack.c.h.b16 %v64
  %v190 = vunpack.c.l.b16 %v65
  %v191 = vunpack.c.h.b16 %v65
  %v192 = vunpack.c.l.b16 %v66
  %v193 = vunpack.c.h.b16 %v66
  %v194 = vunpack.c.l.b16 %v67
  %v195 = vunpack.c.h.b16 %v67
  %v196 = vunpack.c.l.b16 %v68
  %v197 = vunpack.c.h.b16 %v68
  %v198 = vunpack.c.l.b16 %v69
  %v199 = vunpack.c.h.b16 %v69
  %v200 = vunpack.c.l.b16 %v70
  %v201 = vunpack.c.h.b16 %v70
  %v202 = vunpack.c.l.b16 %v71
  %v203 = vunpack.c.h.b16 %v71
  %v204 = vpack.c.b16 %v174, %v172
  %v205 = vpack.c.b16 %v175, %v173
  %v206 = vpack.c.b16 %v178, %v176
  %v207 = vpack.c.b16 %v179, %v177
  %v208 = vpack.c.b16 %v182, %v180
  %v209 = vpack.c.b16 %v183, %v181
  %v210 = vpack.c.b16 %v186, %v184
  %v211 = vpack.c.b16 %v187, %v185
  %v212 = vpack.c.b16 %v190, %v188
  %v213 = vpack.c.b16 %v191, %v189
  %v214 = vpack.c.b16 %v194, %v192
  %v215 = vpack.c.b16 %v195, %v193
  %v216 = vpack.c.b16 %v198, %v196
  %v217 = vpack.c.b16 %v199, %v197
  %v218 = vpack.c.b16 %v202, %v200
  %v219 = vpack.c.b16 %v203, %v201
  %236 = vmatprep.subr.bf16.mxu0 %v205
  %237 = vmatpush1.bf16.msra.mxu0 %v204
  %238 = vmatprep.subr.bf16.mxu0 %v207
  %239 = vmatpush1.bf16.msra.mxu0 %v206
  %240 = vmatprep.subr.bf16.mxu0 %v209
  %241 = vmatpush1.bf16.msra.mxu0 %v208
  %242 = vmatprep.subr.bf16.mxu0 %v211
  %243 = vmatpush1.bf16.msra.mxu0 %v210
  %244 = vmatprep.subr.bf16.mxu0 %v213
  %245 = vmatpush1.bf16.msra.mxu0 %v212
  %246 = vmatprep.subr.bf16.mxu0 %v215
  %247 = vmatpush1.bf16.msra.mxu0 %v214
  %248 = vmatprep.subr.bf16.mxu0 %v217
  %249 = vmatpush1.bf16.msra.mxu0 %v216
  %250 = vmatprep.subr.bf16.mxu0 %v219
  %251 = vmatpush1.bf16.msra.mxu0 %v218
  %252 = vmatprep.subr.bf16.mxu0 0
  %253 = vmatpush1.bf16.msra.mxu0 0
  %254 = vmatprep.subr.bf16.mxu0 0
  %255 = vmatpush1.bf16.msra.mxu0 0
  %256 = vmatprep.subr.bf16.mxu0 0
  %257 = vmatpush1.bf16.msra.mxu0 0
  %258 = vmatprep.subr.bf16.mxu0 0
  %259 = vmatpush1.bf16.msra.mxu0 0
  %260 = vmatprep.subr.bf16.mxu0 0
  %261 = vmatpush1.bf16.msra.mxu0 0
  %262 = vmatprep.subr.bf16.mxu0 0
  %263 = vmatpush1.bf16.msra.mxu0 0
  %264 = vmatprep.subr.bf16.mxu0 0
  %265 = vmatpush1.bf16.msra.mxu0 0
  %266 = vmatprep.subr.bf16.mxu0 0
  %267 = vmatpush1.bf16.msra.mxu0 0
  %268 = vmatprep.mubr.bf16.mxu0 0
  %269 = vmatmul.mubr.bf16.gmra.mrb[0].mxu0 %v132
  %v270 = vpop.f32.mrb[0].mxu0
  %v271 = vadd.f32 %v77, %v270
  %v272 = vpop.f32.mrb[0].mxu0
  %v273 = vadd.f32 %v81, %v272
  %v274 = vpop.f32.mrb[0].mxu0
  %v275 = vadd.f32 %v77, %v274
  %v276 = vpop.f32.mrb[0].mxu0
  %v277 = vadd.f32 %v81, %v276
  %278 = vmatprep.mubr.bf16.mxu0 0
  %279 = vmatmul.mubr.bf16.gmra.mrb[0].mxu0 %v133
  %v280 = vpop.f32.mrb[0].mxu0
  %v281 = vadd.f32 %v77, %v280
  %v282 = vpop.f32.mrb[0].mxu0
  %v283 = vadd.f32 %v81, %v282
  %v284 = vpop.f32.mrb[0].mxu0
  %v285 = vadd.f32 %v77, %v284
  %v286 = vpop.f32.mrb[0].mxu0
  %v287 = vadd.f32 %v81, %v286
  %288 = vmatprep.mubr.bf16.mxu0 0
  %289 = vmatmul.mubr.bf16.gmra.mrb[0].mxu0 %v134
  %v290 = vpop.f32.mrb[0].mxu0
  %v291 = vadd.f32 %v77, %v290
  %v292 = vpop.f32.mrb[0].mxu0
  %v293 = vadd.f32 %v81, %v292
  %v294 = vpop.f32.mrb[0].mxu0
  %v295 = vadd.f32 %v77, %v294
  %v296 = vpop.f32.mrb[0].mxu0
  %v297 = vadd.f32 %v81, %v296
  %298 = vmatprep.mubr.bf16.mxu0 0
  %299 = vmatmul.mubr.bf16.gmra.mrb[0].mxu0 %v135
  %v300 = vpop.f32.mrb[0].mxu0
  %v301 = vadd.f32 %v77, %v300
  %v302 = vpop.f32.mrb[0].mxu0
  %v303 = vadd.f32 %v81, %v302
  %v304 = vpop.f32.mrb[0].mxu0
  %v305 = vadd.f32 %v77, %v304
  %v306 = vpop.f32.mrb[0].mxu0
  %v307 = vadd.f32 %v81, %v306
  %308 = vmatprep.mubr.bf16.mxu0 0
  %309 = vmatmul.mubr.bf16.gmra.mrb[0].mxu0 %v136
  %v310 = vpop.f32.mrb[0].mxu0
  %v311 = vadd.f32 %v77, %v310
  %v312 = vpop.f32.mrb[0].mxu0
  %v313 = vadd.f32 %v81, %v312
  %v314 = vpop.f32.mrb[0].mxu0
  %v315 = vadd.f32 %v77, %v314
  %v316 = vpop.f32.mrb[0].mxu0
  %v317 = vadd.f32 %v81, %v316
  %318 = vmatprep.mubr.bf16.mxu0 0
  %319 = vmatmul.mubr.bf16.gmra.mrb[0].mxu0 %v137
  %v320 = vpop.f32.mrb[0].mxu0
  %v321 = vadd.f32 %v77, %v320
  %v322 = vpop.f32.mrb[0].mxu0
  %v323 = vadd.f32 %v81, %v322
  %v324 = vpop.f32.mrb[0].mxu0
  %v325 = vadd.f32 %v77, %v324
  %v326 = vpop.f32.mrb[0].mxu0
  %v327 = vadd.f32 %v81, %v326
  %328 = vmatprep.mubr.bf16.mxu0 0
  %329 = vmatmul.mubr.bf16.gmra.mrb[0].mxu0 %v138
  %v330 = vpop.f32.mrb[0].mxu0
  %v331 = vadd.f32 %v77, %v330
  %v332 = vpop.f32.mrb[0].mxu0
  %v333 = vadd.f32 %v81, %v332
  %v334 = vpop.f32.mrb[0].mxu0
  %v335 = vadd.f32 %v77, %v334
  %v336 = vpop.f32.mrb[0].mxu0
  %v337 = vadd.f32 %v81, %v336
  %338 = vmatprep.mubr.bf16.mxu0 0
  %339 = vmatmul.mubr.bf16.gmra.mrb[0].mxu0 %v139
  %v340 = vpop.f32.mrb[0].mxu0
  %v341 = vadd.f32 %v77, %v340
  %v342 = vpop.f32.mrb[0].mxu0
  %v343 = vadd.f32 %v81, %v342
  %v344 = vpop.f32.mrb[0].mxu0
  %v345 = vadd.f32 %v77, %v344
  %v346 = vpop.f32.mrb[0].mxu0
  %v347 = vadd.f32 %v81, %v346
  %348 = vmatprep.mubr.bf16.mxu0 0
  %349 = vmatmul.mubr.bf16.gmra.mrb[0].mxu0 %v140
  %v350 = vpop.f32.mrb[0].mxu0
  %v351 = vadd.f32 %v77, %v350
  %v352 = vpop.f32.mrb[0].mxu0
  %v353 = vadd.f32 %v81, %v352
  %v354 = vpop.f32.mrb[0].mxu0
  %v355 = vadd.f32 %v77, %v354
  %v356 = vpop.f32.mrb[0].mxu0
  %v357 = vadd.f32 %v81, %v356
  %358 = vmatprep.mubr.bf16.mxu0 0
  %359 = vmatmul.mubr.bf16.gmra.mrb[0].mxu0 %v141
  %v360 = vpop.f32.mrb[0].mxu0
  %v361 = vadd.f32 %v77, %v360
  %v362 = vpop.f32.mrb[0].mxu0
  %v363 = vadd.f32 %v81, %v362
  %v364 = vpop.f32.mrb[0].mxu0
  %v365 = vadd.f32 %v77, %v364
  %v366 = vpop.f32.mrb[0].mxu0
  %v367 = vadd.f32 %v81, %v366
  %368 = vmatprep.mubr.bf16.mxu0 0
  %369 = vmatmul.mubr.bf16.gmra.mrb[0].mxu0 %v142
  %v370 = vpop.f32.mrb[0].mxu0
  %v371 = vadd.f32 %v77, %v370
  %v372 = vpop.f32.mrb[0].mxu0
  %v373 = vadd.f32 %v81, %v372
  %v374 = vpop.f32.mrb[0].mxu0
  %v375 = vadd.f32 %v77, %v374
  %v376 = vpop.f32.mrb[0].mxu0
  %v377 = vadd.f32 %v81, %v376
  %378 = vmatprep.mubr.bf16.mxu0 0
  %379 = vmatmul.mubr.bf16.gmra.mrb[0].mxu0 %v143
  %v380 = vpop.f32.mrb[0].mxu0
  %v381 = vadd.f32 %v77, %v380
  %v382 = vpop.f32.mrb[0].mxu0
  %v383 = vadd.f32 %v81, %v382
  %v384 = vpop.f32.mrb[0].mxu0
  %v385 = vadd.f32 %v77, %v384
  %v386 = vpop.f32.mrb[0].mxu0
  %v387 = vadd.f32 %v81, %v386
  %388 = vdwg.mxu0
  %389 = vst [vmem:[#allocation2] sm:$0xff] %v271
  %vm390 = vcmask 523264
  %391 = vst.msk [vmem:[#allocation2 + $0x8] sm:$0xff] %vm390, %v273
  %392 = vst [vmem:[#allocation2 + $0x10] sm:$0xff] %v275
  %393 = vst.msk [vmem:[#allocation2 + $0x18] sm:$0xff] %vm390, %v277
  %394 = vst [vmem:[#allocation2 + $0x20] sm:$0xff] %v281
  %395 = vst.msk [vmem:[#allocation2 + $0x28] sm:$0xff] %vm390, %v283
  %396 = vst [vmem:[#allocation2 + $0x30] sm:$0xff] %v285
  %397 = vst.msk [vmem:[#allocation2 + $0x38] sm:$0xff] %vm390, %v287
  %398 = vst [vmem:[#allocation2 + $0x40] sm:$0xff] %v291
  %399 = vst.msk [vmem:[#allocation2 + $0x48] sm:$0xff] %vm390, %v293
  %400 = vst [vmem:[#allocation2 + $0x50] sm:$0xff] %v295
  %401 = vst.msk [vmem:[#allocation2 + $0x58] sm:$0xff] %vm390, %v297
  %402 = vst [vmem:[#allocation2 + $0x60] sm:$0xff] %v301
  %403 = vst.msk [vmem:[#allocation2 + $0x68] sm:$0xff] %vm390, %v303
  %404 = vst [vmem:[#allocation2 + $0x70] sm:$0xff] %v305
  %405 = vst.msk [vmem:[#allocation2 + $0x78] sm:$0xff] %vm390, %v307
  %406 = vst [vmem:[#allocation2 + $0x80] sm:$0xff] %v311
  %407 = vst.msk [vmem:[#allocation2 + $0x88] sm:$0xff] %vm390, %v313
  %408 = vst [vmem:[#allocation2 + $0x90] sm:$0xff] %v315
  %409 = vst.msk [vmem:[#allocation2 + $0x98] sm:$0xff] %vm390, %v317
  %410 = vst [vmem:[#allocation2 + $0xa0] sm:$0xff] %v321
  %411 = vst.msk [vmem:[#allocation2 + $0xa8] sm:$0xff] %vm390, %v323
  %412 = vst [vmem:[#allocation2 + $0xb0] sm:$0xff] %v325
  %413 = vst.msk [vmem:[#allocation2 + $0xb8] sm:$0xff] %vm390, %v327
  %414 = vst [vmem:[#allocation2 + $0xc0] sm:$0xff] %v331
  %415 = vst.msk [vmem:[#allocation2 + $0xc8] sm:$0xff] %vm390, %v333
  %416 = vst [vmem:[#allocation2 + $0xd0] sm:$0xff] %v335
  %417 = vst.msk [vmem:[#allocation2 + $0xd8] sm:$0xff] %vm390, %v337
  %418 = vst [vmem:[#allocation2 + $0xe0] sm:$0xff] %v341
  %419 = vst.msk [vmem:[#allocation2 + $0xe8] sm:$0xff] %vm390, %v343
  %420 = vst [vmem:[#allocation2 + $0xf0] sm:$0xff] %v345
  %421 = vst.msk [vmem:[#allocation2 + $0xf8] sm:$0xff] %vm390, %v347
  %422 = vst [vmem:[#allocation2 + $0x100] sm:$0xff] %v351
  %423 = vst.msk [vmem:[#allocation2 + $0x108] sm:$0xff] %vm390, %v353
  %424 = vst [vmem:[#allocation2 + $0x110] sm:$0xff] %v355
  %425 = vst.msk [vmem:[#allocation2 + $0x118] sm:$0xff] %vm390, %v357
  %426 = vst [vmem:[#allocation2 + $0x120] sm:$0xff] %v361
  %427 = vst.msk [vmem:[#allocation2 + $0x128] sm:$0xff] %vm390, %v363
  %428 = vst [vmem:[#allocation2 + $0x130] sm:$0xff] %v365
  %429 = vst.msk [vmem:[#allocation2 + $0x138] sm:$0xff] %vm390, %v367
  %430 = vst [vmem:[#allocation2 + $0x140] sm:$0xff] %v371
  %431 = vst.msk [vmem:[#allocation2 + $0x148] sm:$0xff] %vm390, %v373
  %432 = vst [vmem:[#allocation2 + $0x150] sm:$0xff] %v375
  %433 = vst.msk [vmem:[#allocation2 + $0x158] sm:$0xff] %vm390, %v377
  %434 = vst [vmem:[#allocation2 + $0x160] sm:$0xff] %v381
  %435 = vst.msk [vmem:[#allocation2 + $0x168] sm:$0xff] %vm390, %v383
  %436 = vst [vmem:[#allocation2 + $0x170] sm:$0xff] %v385
  %437 = vst.msk [vmem:[#allocation2 + $0x178] sm:$0xff] %vm390, %v387
  %v438 = vld [vmem:[%s1] sm:$0xff]
  %v439 = vld [vmem:[%s1 + $0x8] sm:$0xff]
  %v440 = vld [vmem:[#allocation2] sm:$0xff]
  %v441 = vld [vmem:[#allocation2 + $0x8] sm:$0xff]
  %v442 = vld [vmem:[#allocation2 + $0x10] sm:$0xff]
  %v443 = vld [vmem:[#allocation2 + $0x18] sm:$0xff]
  %v444 = vpack.c.bf16 %v439, %v438
  %v445 = vld [vmem:[%s3] sm:$0xf]
  %v446 = vld [vmem:[%s3 + $0x4] sm:$0xf]
  %v447 = vld [vmem:[%s3 + $0x8] sm:$0xf]
  %v448 = vld [vmem:[%s3 + $0xc] sm:$0xf]
  %v449 = vld [vmem:[%s3 + $0x10] sm:$0xf]
  %v450 = vld [vmem:[%s3 + $0x14] sm:$0xf]
  %v451 = vld [vmem:[%s3 + $0x18] sm:$0xf]
  %v452 = vld [vmem:[%s3 + $0x1c] sm:$0xf]
  %v461 = vunpack.c.l.b16 %v445
  %v462 = vunpack.c.l.b16 %v446
  %v463 = vunpack.c.l.b16 %v447
  %v464 = vunpack.c.l.b16 %v448
  %v465 = vunpack.c.l.b16 %v449
  %v466 = vunpack.c.l.b16 %v450
  %v467 = vunpack.c.l.b16 %v451
  %v468 = vunpack.c.l.b16 %v452
  %v469 = vpack.c.b16 %v462, %v461
  %v470 = vpack.c.b16 %v464, %v463
  %v471 = vpack.c.b16 %v466, %v465
  %v472 = vpack.c.b16 %v468, %v467
  %v478 = vsel %vm390, %v444, 0
  %480 = vmatprep.subr.bf16.mxu0 0
  %481 = vmatpush1.bf16.msra.mxu0 %v469
  %482 = vmatprep.subr.bf16.mxu0 0
  %483 = vmatpush1.bf16.msra.mxu0 %v470
  %484 = vmatprep.subr.bf16.mxu0 0
  %485 = vmatpush1.bf16.msra.mxu0 %v471
  %486 = vmatprep.subr.bf16.mxu0 0
  %487 = vmatpush1.bf16.msra.mxu0 %v472
  %488 = vmatprep.subr.bf16.mxu0 0
  %489 = vmatpush1.bf16.msra.mxu0 0
  %490 = vmatprep.subr.bf16.mxu0 0
  %491 = vmatpush1.bf16.msra.mxu0 0
  %492 = vmatprep.subr.bf16.mxu0 0
  %493 = vmatpush1.bf16.msra.mxu0 0
  %494 = vmatprep.subr.bf16.mxu0 0
  %495 = vmatpush1.bf16.msra.mxu0 0
  %496 = vmatprep.subr.bf16.mxu0 0
  %497 = vmatpush1.bf16.msra.mxu0 0
  %498 = vmatprep.subr.bf16.mxu0 0
  %499 = vmatpush1.bf16.msra.mxu0 0
  %500 = vmatprep.subr.bf16.mxu0 0
  %501 = vmatpush1.bf16.msra.mxu0 0
  %502 = vmatprep.subr.bf16.mxu0 0
  %503 = vmatpush1.bf16.msra.mxu0 0
  %504 = vmatprep.subr.bf16.mxu0 0
  %505 = vmatpush1.bf16.msra.mxu0 0
  %506 = vmatprep.subr.bf16.mxu0 0
  %507 = vmatpush1.bf16.msra.mxu0 0
  %508 = vmatprep.subr.bf16.mxu0 0
  %509 = vmatpush1.bf16.msra.mxu0 0
  %510 = vmatprep.subr.bf16.mxu0 0
  %511 = vmatpush1.bf16.msra.mxu0 0
  %512 = vmatprep.mubr.bf16.mxu0 0
  %513 = vmatmul.mubr.bf16.gmra.mrb[0].mxu0 %v478
  %v514 = vpop.f32.mrb[0].mxu0
  %v515 = vadd.f32 0.0, %v514
  %v516 = vpop.f32.mrb[0].mxu0
  %v517 = vpop.f32.mrb[0].mxu0
  %v518 = vadd.f32 0.0, %v517
  %v519 = vpop.f32.mrb[0].mxu0
  %520 = vdwg.mxu0
  %v521 = vadd.f32 %v440, %v515
  %v522 = vadd.f32 %v442, %v518
  %v523 = vxor.u32 %v521, 2147483648
  %v524 = vxor.u32 %v522, 2147483648
  %v525 = vmul.f32 %v523, 1.442695
  %v526 = vpow.pop %v525
  %v527 = vmul.f32 %v524, 1.442695
  %v528 = vpow.pop %v527
  %v529 = vadd.f32 %v526, 1.0
  %v530 = vadd.f32 %v528, 1.0
  %v531 = vrcp.pop %v529
  %v532 = vmul.f32 1.0, %v531
  %v533 = vrcp.pop %v530
  %v534 = vmul.f32 1.0, %v533
  %537 = vrot.lane.b32.xlu0 %v438, 64
  %v538 = vpop.permute.xlu0 %537
  %539 = vrot.lane.b32.xlu0 %v439, 64
  %v540 = vpop.permute.xlu0 %539
  %v543 = vmul.f32 %v532, %v538
  %v544 = vmul.f32 %v534, %v540
  %v545 = vpack.c.bf16 %v544, %v543
  %v546 = vld [vmem:[%s4] sm:$0xf]
  %v547 = vld [vmem:[%s4 + $0x4] sm:$0xf]
  %v548 = vld [vmem:[%s4 + $0x8] sm:$0xf]
  %v549 = vld [vmem:[%s4 + $0xc] sm:$0xf]
  %v550 = vld [vmem:[%s4 + $0x10] sm:$0xf]
  %v551 = vld [vmem:[%s4 + $0x14] sm:$0xf]
  %v552 = vld [vmem:[%s4 + $0x18] sm:$0xf]
  %v553 = vld [vmem:[%s4 + $0x1c] sm:$0xf]
  %555 = vrot.lane.b32.xlu0 %v545, 64
  %v556 = vpop.permute.xlu0 %555
  %v565 = vunpack.c.l.b16 %v546
  %v566 = vunpack.c.l.b16 %v547
  %v567 = vunpack.c.l.b16 %v548
  %v568 = vunpack.c.l.b16 %v549
  %v569 = vunpack.c.l.b16 %v550
  %v570 = vunpack.c.l.b16 %v551
  %v571 = vunpack.c.l.b16 %v552
  %v572 = vunpack.c.l.b16 %v553
  %v573 = vpack.c.b16 %v566, %v565
  %v574 = vpack.c.b16 %v568, %v567
  %v575 = vpack.c.b16 %v570, %v569
  %v576 = vpack.c.b16 %v572, %v571
  %v582 = vsel %vm390, %v556, 0
  %584 = vmatprep.subr.bf16.mxu0 0
  %585 = vmatpush1.bf16.msra.mxu0 %v573
  %586 = vmatprep.subr.bf16.mxu0 0
  %587 = vmatpush1.bf16.msra.mxu0 %v574
  %588 = vmatprep.subr.bf16.mxu0 0
  %589 = vmatpush1.bf16.msra.mxu0 %v575
  %590 = vmatprep.subr.bf16.mxu0 0
  %591 = vmatpush1.bf16.msra.mxu0 %v576
  %592 = vmatprep.subr.bf16.mxu0 0
  %593 = vmatpush1.bf16.msra.mxu0 0
  %594 = vmatprep.subr.bf16.mxu0 0
  %595 = vmatpush1.bf16.msra.mxu0 0
  %596 = vmatprep.subr.bf16.mxu0 0
  %597 = vmatpush1.bf16.msra.mxu0 0
  %598 = vmatprep.subr.bf16.mxu0 0
  %599 = vmatpush1.bf16.msra.mxu0 0
  %600 = vmatprep.subr.bf16.mxu0 0
  %601 = vmatpush1.bf16.msra.mxu0 0
  %602 = vmatprep.subr.bf16.mxu0 0
  %603 = vmatpush1.bf16.msra.mxu0 0
  %604 = vmatprep.subr.bf16.mxu0 0
  %605 = vmatpush1.bf16.msra.mxu0 0
  %606 = vmatprep.subr.bf16.mxu0 0
  %607 = vmatpush1.bf16.msra.mxu0 0
  %608 = vmatprep.subr.bf16.mxu0 0
  %609 = vmatpush1.bf16.msra.mxu0 0
  %610 = vmatprep.subr.bf16.mxu0 0
  %611 = vmatpush1.bf16.msra.mxu0 0
  %612 = vmatprep.subr.bf16.mxu0 0
  %613 = vmatpush1.bf16.msra.mxu0 0
  %614 = vmatprep.subr.bf16.mxu0 0
  %615 = vmatpush1.bf16.msra.mxu0 0
  %616 = vmatprep.mubr.bf16.mxu0 0
  %617 = vmatmul.mubr.bf16.gmra.mrb[0].mxu0 %v582
  %v618 = vpop.f32.mrb[0].mxu0
  %v619 = vadd.f32 0.0, %v618
  %v620 = vpop.f32.mrb[0].mxu0
  %v621 = vpop.f32.mrb[0].mxu0
  %v622 = vadd.f32 0.0, %v621
  %v623 = vpop.f32.mrb[0].mxu0
  %624 = vdwg.mxu0
  %v625 = vadd.f32 %v441, %v619
  %v626 = vadd.f32 %v443, %v622
  %v627 = vtanh.pop %v625
  %v628 = vtanh.pop %v626
  %v629 = vsub.f32 1.0, %v532
  %v630 = vsub.f32 1.0, %v534
  %v631 = vmul.f32 %v629, %v438
  %v632 = vmul.f32 %v630, %v439
  %v633 = vmul.f32 %v532, %v627
  %v634 = vmul.f32 %v534, %v628
  %v635 = vadd.f32 %v631, %v633
  %v636 = vadd.f32 %v632, %v634
  %637 = vst.msk [vmem:[%s8] sm:$0xff] %vm390, %v635
  %638 = vst.msk [vmem:[%s8 + $0x8] sm:$0xff] %vm390, %v636
  %s639 = scalar_lea.vmem [#allocation2], 32
  %v640 = vld [vmem:[%s639] sm:$0xff]
  %v641 = vld [vmem:[%s639 + $0x8] sm:$0xff]
  %v642 = vld [vmem:[%s639 + $0x10] sm:$0xff]
  %v643 = vld [vmem:[%s639 + $0x18] sm:$0xff]
  %v644 = vpack.c.bf16 %v636, %v635
  %v645 = vld [vmem:[%s3] sm:$0xf]
  %v646 = vld [vmem:[%s3 + $0x4] sm:$0xf]
  %v647 = vld [vmem:[%s3 + $0x8] sm:$0xf]
  %v648 = vld [vmem:[%s3 + $0xc] sm:$0xf]
  %v649 = vld [vmem:[%s3 + $0x10] sm:$0xf]
  %v650 = vld [vmem:[%s3 + $0x14] sm:$0xf]
  %v651 = vld [vmem:[%s3 + $0x18] sm:$0xf]
  %v652 = vld [vmem:[%s3 + $0x1c] sm:$0xf]
  %v661 = vunpack.c.l.b16 %v645
  %v662 = vunpack.c.l.b16 %v646
  %v663 = vunpack.c.l.b16 %v647
  %v664 = vunpack.c.l.b16 %v648
  %v665 = vunpack.c.l.b16 %v649
  %v666 = vunpack.c.l.b16 %v650
  %v667 = vunpack.c.l.b16 %v651
  %v668 = vunpack.c.l.b16 %v652
  %v669 = vpack.c.b16 %v662, %v661
  %v670 = vpack.c.b16 %v664, %v663
  %v671 = vpack.c.b16 %v666, %v665
  %v672 = vpack.c.b16 %v668, %v667
  %v678 = vsel %vm390, %v644, 0
  %680 = vmatprep.subr.bf16.mxu0 0
  %681 = vmatpush1.bf16.msra.mxu0 %v669
  %682 = vmatprep.subr.bf16.mxu0 0
  %683 = vmatpush1.bf16.msra.mxu0 %v670
  %684 = vmatprep.subr.bf16.mxu0 0
  %685 = vmatpush1.bf16.msra.mxu0 %v671
  %686 = vmatprep.subr.bf16.mxu0 0
  %687 = vmatpush1.bf16.msra.mxu0 %v672
  %688 = vmatprep.subr.bf16.mxu0 0
  %689 = vmatpush1.bf16.msra.mxu0 0
  %690 = vmatprep.subr.bf16.mxu0 0
  %691 = vmatpush1.bf16.msra.mxu0 0
  %692 = vmatprep.subr.bf16.mxu0 0
  %693 = vmatpush1.bf16.msra.mxu0 0
  %694 = vmatprep.subr.bf16.mxu0 0
  %695 = vmatpush1.bf16.msra.mxu0 0
  %696 = vmatprep.subr.bf16.mxu0 0
  %697 = vmatpush1.bf16.msra.mxu0 0
  %698 = vmatprep.subr.bf16.mxu0 0
  %699 = vmatpush1.bf16.msra.mxu0 0
  %700 = vmatprep.subr.bf16.mxu0 0
  %701 = vmatpush1.bf16.msra.mxu0 0
  %702 = vmatprep.subr.bf16.mxu0 0
  %703 = vmatpush1.bf16.msra.mxu0 0
  %704 = vmatprep.subr.bf16.mxu0 0
  %705 = vmatpush1.bf16.msra.mxu0 0
  %706 = vmatprep.subr.bf16.mxu0 0
  %707 = vmatpush1.bf16.msra.mxu0 0
  %708 = vmatprep.subr.bf16.mxu0 0
  %709 = vmatpush1.bf16.msra.mxu0 0
  %710 = vmatprep.subr.bf16.mxu0 0
  %711 = vmatpush1.bf16.msra.mxu0 0
  %712 = vmatprep.mubr.bf16.mxu0 0
  %713 = vmatmul.mubr.bf16.gmra.mrb[0].mxu0 %v678
  %v714 = vpop.f32.mrb[0].mxu0
  %v715 = vadd.f32 0.0, %v714
  %v716 = vpop.f32.mrb[0].mxu0
  %v717 = vpop.f32.mrb[0].mxu0
  %v718 = vadd.f32 0.0, %v717
  %v719 = vpop.f32.mrb[0].mxu0
  %720 = vdwg.mxu0
  %v721 = vadd.f32 %v640, %v715
  %v722 = vadd.f32 %v642, %v718
  %v723 = vxor.u32 %v721, 2147483648
  %v724 = vxor.u32 %v722, 2147483648
  %v725 = vmul.f32 %v723, 1.442695
  %v726 = vpow.pop %v725
  %v727 = vmul.f32 %v724, 1.442695
  %v728 = vpow.pop %v727
  %v729 = vadd.f32 %v726, 1.0
  %v730 = vadd.f32 %v728, 1.0
  %v731 = vrcp.pop %v729
  %v732 = vmul.f32 1.0, %v731
  %v733 = vrcp.pop %v730
  %v734 = vmul.f32 1.0, %v733
  %737 = vrot.lane.b32.xlu0 %v635, 64
  %v738 = vpop.permute.xlu0 %737
  %739 = vrot.lane.b32.xlu0 %v636, 64
  %v740 = vpop.permute.xlu0 %739
  %v743 = vmul.f32 %v732, %v738
  %v744 = vmul.f32 %v734, %v740
  %v745 = vpack.c.bf16 %v744, %v743
  %v746 = vld [vmem:[%s4] sm:$0xf]
  %v747 = vld [vmem:[%s4 + $0x4] sm:$0xf]
  %v748 = vld [vmem:[%s4 + $0x8] sm:$0xf]
  %v749 = vld [vmem:[%s4 + $0xc] sm:$0xf]
  %v750 = vld [vmem:[%s4 + $0x10] sm:$0xf]
  %v751 = vld [vmem:[%s4 + $0x14] sm:$0xf]
  %v752 = vld [vmem:[%s4 + $0x18] sm:$0xf]
  %v753 = vld [vmem:[%s4 + $0x1c] sm:$0xf]
  %755 = vrot.lane.b32.xlu0 %v745, 64
  %v756 = vpop.permute.xlu0 %755
  %v765 = vunpack.c.l.b16 %v746
  %v766 = vunpack.c.l.b16 %v747
  %v767 = vunpack.c.l.b16 %v748
  %v768 = vunpack.c.l.b16 %v749
  %v769 = vunpack.c.l.b16 %v750
  %v770 = vunpack.c.l.b16 %v751
  %v771 = vunpack.c.l.b16 %v752
  %v772 = vunpack.c.l.b16 %v753
  %v773 = vpack.c.b16 %v766, %v765
  %v774 = vpack.c.b16 %v768, %v767
  %v775 = vpack.c.b16 %v770, %v769
  %v776 = vpack.c.b16 %v772, %v771
  %v782 = vsel %vm390, %v756, 0
  %784 = vmatprep.subr.bf16.mxu0 0
  %785 = vmatpush1.bf16.msra.mxu0 %v773
  %786 = vmatprep.subr.bf16.mxu0 0
  %787 = vmatpush1.bf16.msra.mxu0 %v774
  %788 = vmatprep.subr.bf16.mxu0 0
  %789 = vmatpush1.bf16.msra.mxu0 %v775
  %790 = vmatprep.subr.bf16.mxu0 0
  %791 = vmatpush1.bf16.msra.mxu0 %v776
  %792 = vmatprep.subr.bf16.mxu0 0
  %793 = vmatpush1.bf16.msra.mxu0 0
  %794 = vmatprep.subr.bf16.mxu0 0
  %795 = vmatpush1.bf16.msra.mxu0 0
  %796 = vmatprep.subr.bf16.mxu0 0
  %797 = vmatpush1.bf16.msra.mxu0 0
  %798 = vmatprep.subr.bf16.mxu0 0
  %799 = vmatpush1.bf16.msra.mxu0 0
  %800 = vmatprep.subr.bf16.mxu0 0
  %801 = vmatpush1.bf16.msra.mxu0 0
  %802 = vmatprep.subr.bf16.mxu0 0
  %803 = vmatpush1.bf16.msra.mxu0 0
  %804 = vmatprep.subr.bf16.mxu0 0
  %805 = vmatpush1.bf16.msra.mxu0 0
  %806 = vmatprep.subr.bf16.mxu0 0
  %807 = vmatpush1.bf16.msra.mxu0 0
  %808 = vmatprep.subr.bf16.mxu0 0
  %809 = vmatpush1.bf16.msra.mxu0 0
  %810 = vmatprep.subr.bf16.mxu0 0
  %811 = vmatpush1.bf16.msra.mxu0 0
  %812 = vmatprep.subr.bf16.mxu0 0
  %813 = vmatpush1.bf16.msra.mxu0 0
  %814 = vmatprep.subr.bf16.mxu0 0
  %815 = vmatpush1.bf16.msra.mxu0 0
  %816 = vmatprep.mubr.bf16.mxu0 0
  %817 = vmatmul.mubr.bf16.gmra.mrb[0].mxu0 %v782
  %v818 = vpop.f32.mrb[0].mxu0
  %v819 = vadd.f32 0.0, %v818
  %v820 = vpop.f32.mrb[0].mxu0
  %v821 = vpop.f32.mrb[0].mxu0
  %v822 = vadd.f32 0.0, %v821
  %v823 = vpop.f32.mrb[0].mxu0
  %824 = vdwg.mxu0
  %v825 = vadd.f32 %v641, %v819
  %v826 = vadd.f32 %v643, %v822
  %v827 = vtanh.pop %v825
  %v828 = vtanh.pop %v826
  %v829 = vsub.f32 1.0, %v732
  %v830 = vsub.f32 1.0, %v734
  %v831 = vmul.f32 %v829, %v635
  %v832 = vmul.f32 %v830, %v636
  %v833 = vmul.f32 %v732, %v827
  %v834 = vmul.f32 %v734, %v828
  %v835 = vadd.f32 %v831, %v833
  %v836 = vadd.f32 %v832, %v834
  %s837 = scalar_lea.vmem %s8, 16
  %838 = vst.msk [vmem:[%s837] sm:$0xff] %vm390, %v835
  %839 = vst.msk [vmem:[%s837 + $0x8] sm:$0xff] %vm390, %v836
  %s840 = scalar_lea.vmem [#allocation2], 64
  %v841 = vld [vmem:[%s840] sm:$0xff]
  %v842 = vld [vmem:[%s840 + $0x8] sm:$0xff]
  %v843 = vld [vmem:[%s840 + $0x10] sm:$0xff]
  %v844 = vld [vmem:[%s840 + $0x18] sm:$0xff]
  %v845 = vpack.c.bf16 %v836, %v835
  %v846 = vld [vmem:[%s3] sm:$0xf]
  %v847 = vld [vmem:[%s3 + $0x4] sm:$0xf]
  %v848 = vld [vmem:[%s3 + $0x8] sm:$0xf]
  %v849 = vld [vmem:[%s3 + $0xc] sm:$0xf]
  %v850 = vld [vmem:[%s3 + $0x10] sm:$0xf]
  %v851 = vld [vmem:[%s3 + $0x14] sm:$0xf]
  %v852 = vld [vmem:[%s3 + $0x18] sm:$0xf]
  %v853 = vld [vmem:[%s3 + $0x1c] sm:$0xf]
  %v862 = vunpack.c.l.b16 %v846
  %v863 = vunpack.c.l.b16 %v847
  %v864 = vunpack.c.l.b16 %v848
  %v865 = vunpack.c.l.b16 %v849
  %v866 = vunpack.c.l.b16 %v850
  %v867 = vunpack.c.l.b16 %v851
  %v868 = vunpack.c.l.b16 %v852
  %v869 = vunpack.c.l.b16 %v853
  %v870 = vpack.c.b16 %v863, %v862
  %v871 = vpack.c.b16 %v865, %v864
  %v872 = vpack.c.b16 %v867, %v866
  %v873 = vpack.c.b16 %v869, %v868
  %v879 = vsel %vm390, %v845, 0
  %881 = vmatprep.subr.bf16.mxu0 0
  %882 = vmatpush1.bf16.msra.mxu0 %v870
  %883 = vmatprep.subr.bf16.mxu0 0
  %884 = vmatpush1.bf16.msra.mxu0 %v871
  %885 = vmatprep.subr.bf16.mxu0 0
  %886 = vmatpush1.bf16.msra.mxu0 %v872
  %887 = vmatprep.subr.bf16.mxu0 0
  %888 = vmatpush1.bf16.msra.mxu0 %v873
  %889 = vmatprep.subr.bf16.mxu0 0
  %890 = vmatpush1.bf16.msra.mxu0 0
  %891 = vmatprep.subr.bf16.mxu0 0
  %892 = vmatpush1.bf16.msra.mxu0 0
  %893 = vmatprep.subr.bf16.mxu0 0
  %894 = vmatpush1.bf16.msra.mxu0 0
  %895 = vmatprep.subr.bf16.mxu0 0
  %896 = vmatpush1.bf16.msra.mxu0 0
  %897 = vmatprep.subr.bf16.mxu0 0
  %898 = vmatpush1.bf16.msra.mxu0 0
  %899 = vmatprep.subr.bf16.mxu0 0
  %900 = vmatpush1.bf16.msra.mxu0 0
  %901 = vmatprep.subr.bf16.mxu0 0
  %902 = vmatpush1.bf16.msra.mxu0 0
  %903 = vmatprep.subr.bf16.mxu0 0
  %904 = vmatpush1.bf16.msra.mxu0 0
  %905 = vmatprep.subr.bf16.mxu0 0
  %906 = vmatpush1.bf16.msra.mxu0 0
  %907 = vmatprep.subr.bf16.mxu0 0
  %908 = vmatpush1.bf16.msra.mxu0 0
  %909 = vmatprep.subr.bf16.mxu0 0
  %910 = vmatpush1.bf16.msra.mxu0 0
  %911 = vmatprep.subr.bf16.mxu0 0
  %912 = vmatpush1.bf16.msra.mxu0 0
  %913 = vmatprep.mubr.bf16.mxu0 0
  %914 = vmatmul.mubr.bf16.gmra.mrb[0].mxu0 %v879
  %v915 = vpop.f32.mrb[0].mxu0
  %v916 = vadd.f32 0.0, %v915
  %v917 = vpop.f32.mrb[0].mxu0
  %v918 = vpop.f32.mrb[0].mxu0
  %v919 = vadd.f32 0.0, %v918
  %v920 = vpop.f32.mrb[0].mxu0
  %921 = vdwg.mxu0
  %v922 = vadd.f32 %v841, %v916
  %v923 = vadd.f32 %v843, %v919
  %v924 = vxor.u32 %v922, 2147483648
  %v925 = vxor.u32 %v923, 2147483648
  %v926 = vmul.f32 %v924, 1.442695
  %v927 = vpow.pop %v926
  %v928 = vmul.f32 %v925, 1.442695
  %v929 = vpow.pop %v928
  %v930 = vadd.f32 %v927, 1.0
  %v931 = vadd.f32 %v929, 1.0
  %v932 = vrcp.pop %v930
  %v933 = vmul.f32 1.0, %v932
  %v934 = vrcp.pop %v931
  %v935 = vmul.f32 1.0, %v934
  %938 = vrot.lane.b32.xlu0 %v835, 64
  %v939 = vpop.permute.xlu0 %938
  %940 = vrot.lane.b32.xlu0 %v836, 64
  %v941 = vpop.permute.xlu0 %940
  %v944 = vmul.f32 %v933, %v939
  %v945 = vmul.f32 %v935, %v941
  %v946 = vpack.c.bf16 %v945, %v944
  %v947 = vld [vmem:[%s4] sm:$0xf]
  %v948 = vld [vmem:[%s4 + $0x4] sm:$0xf]
  %v949 = vld [vmem:[%s4 + $0x8] sm:$0xf]
  %v950 = vld [vmem:[%s4 + $0xc] sm:$0xf]
  %v951 = vld [vmem:[%s4 + $0x10] sm:$0xf]
  %v952 = vld [vmem:[%s4 + $0x14] sm:$0xf]
  %v953 = vld [vmem:[%s4 + $0x18] sm:$0xf]
  %v954 = vld [vmem:[%s4 + $0x1c] sm:$0xf]
  %956 = vrot.lane.b32.xlu0 %v946, 64
  %v957 = vpop.permute.xlu0 %956
  %v966 = vunpack.c.l.b16 %v947
  %v967 = vunpack.c.l.b16 %v948
  %v968 = vunpack.c.l.b16 %v949
  %v969 = vunpack.c.l.b16 %v950
  %v970 = vunpack.c.l.b16 %v951
  %v971 = vunpack.c.l.b16 %v952
  %v972 = vunpack.c.l.b16 %v953
  %v973 = vunpack.c.l.b16 %v954
  %v974 = vpack.c.b16 %v967, %v966
  %v975 = vpack.c.b16 %v969, %v968
  %v976 = vpack.c.b16 %v971, %v970
  %v977 = vpack.c.b16 %v973, %v972
  %v983 = vsel %vm390, %v957, 0
  %985 = vmatprep.subr.bf16.mxu0 0
  %986 = vmatpush1.bf16.msra.mxu0 %v974
  %987 = vmatprep.subr.bf16.mxu0 0
  %988 = vmatpush1.bf16.msra.mxu0 %v975
  %989 = vmatprep.subr.bf16.mxu0 0
  %990 = vmatpush1.bf16.msra.mxu0 %v976
  %991 = vmatprep.subr.bf16.mxu0 0
  %992 = vmatpush1.bf16.msra.mxu0 %v977
  %993 = vmatprep.subr.bf16.mxu0 0
  %994 = vmatpush1.bf16.msra.mxu0 0
  %995 = vmatprep.subr.bf16.mxu0 0
  %996 = vmatpush1.bf16.msra.mxu0 0
  %997 = vmatprep.subr.bf16.mxu0 0
  %998 = vmatpush1.bf16.msra.mxu0 0
  %999 = vmatprep.subr.bf16.mxu0 0
  %1000 = vmatpush1.bf16.msra.mxu0 0
  %1001 = vmatprep.subr.bf16.mxu0 0
  %1002 = vmatpush1.bf16.msra.mxu0 0
  %1003 = vmatprep.subr.bf16.mxu0 0
  %1004 = vmatpush1.bf16.msra.mxu0 0
  %1005 = vmatprep.subr.bf16.mxu0 0
  %1006 = vmatpush1.bf16.msra.mxu0 0
  %1007 = vmatprep.subr.bf16.mxu0 0
  %1008 = vmatpush1.bf16.msra.mxu0 0
  %1009 = vmatprep.subr.bf16.mxu0 0
  %1010 = vmatpush1.bf16.msra.mxu0 0
  %1011 = vmatprep.subr.bf16.mxu0 0
  %1012 = vmatpush1.bf16.msra.mxu0 0
  %1013 = vmatprep.subr.bf16.mxu0 0
  %1014 = vmatpush1.bf16.msra.mxu0 0
  %1015 = vmatprep.subr.bf16.mxu0 0
  %1016 = vmatpush1.bf16.msra.mxu0 0
  %1017 = vmatprep.mubr.bf16.mxu0 0
  %1018 = vmatmul.mubr.bf16.gmra.mrb[0].mxu0 %v983
  %v1019 = vpop.f32.mrb[0].mxu0
  %v1020 = vadd.f32 0.0, %v1019
  %v1021 = vpop.f32.mrb[0].mxu0
  %v1022 = vpop.f32.mrb[0].mxu0
  %v1023 = vadd.f32 0.0, %v1022
  %v1024 = vpop.f32.mrb[0].mxu0
  %1025 = vdwg.mxu0
  %v1026 = vadd.f32 %v842, %v1020
  %v1027 = vadd.f32 %v844, %v1023
  %v1028 = vtanh.pop %v1026
  %v1029 = vtanh.pop %v1027
  %v1030 = vsub.f32 1.0, %v933
  %v1031 = vsub.f32 1.0, %v935
  %v1032 = vmul.f32 %v1030, %v835
  %v1033 = vmul.f32 %v1031, %v836
  %v1034 = vmul.f32 %v933, %v1028
  %v1035 = vmul.f32 %v935, %v1029
  %v1036 = vadd.f32 %v1032, %v1034
  %v1037 = vadd.f32 %v1033, %v1035
  %s1038 = scalar_lea.vmem %s8, 32
  %1039 = vst.msk [vmem:[%s1038] sm:$0xff] %vm390, %v1036
  %1040 = vst.msk [vmem:[%s1038 + $0x8] sm:$0xff] %vm390, %v1037
  %s1041 = scalar_lea.vmem [#allocation2], 96
  %v1042 = vld [vmem:[%s1041] sm:$0xff]
  %v1043 = vld [vmem:[%s1041 + $0x8] sm:$0xff]
  %v1044 = vld [vmem:[%s1041 + $0x10] sm:$0xff]
  %v1045 = vld [vmem:[%s1041 + $0x18] sm:$0xff]
  %v1046 = vpack.c.bf16 %v1037, %v1036
  %v1047 = vld [vmem:[%s3] sm:$0xf]
  %v1048 = vld [vmem:[%s3 + $0x4] sm:$0xf]
  %v1049 = vld [vmem:[%s3 + $0x8] sm:$0xf]
  %v1050 = vld [vmem:[%s3 + $0xc] sm:$0xf]
  %v1051 = vld [vmem:[%s3 + $0x10] sm:$0xf]
  %v1052 = vld [vmem:[%s3 + $0x14] sm:$0xf]
  %v1053 = vld [vmem:[%s3 + $0x18] sm:$0xf]
  %v1054 = vld [vmem:[%s3 + $0x1c] sm:$0xf]
  %v1063 = vunpack.c.l.b16 %v1047
  %v1064 = vunpack.c.l.b16 %v1048
  %v1065 = vunpack.c.l.b16 %v1049
  %v1066 = vunpack.c.l.b16 %v1050
  %v1067 = vunpack.c.l.b16 %v1051
  %v1068 = vunpack.c.l.b16 %v1052
  %v1069 = vunpack.c.l.b16 %v1053
  %v1070 = vunpack.c.l.b16 %v1054
  %v1071 = vpack.c.b16 %v1064, %v1063
  %v1072 = vpack.c.b16 %v1066, %v1065
  %v1073 = vpack.c.b16 %v1068, %v1067
  %v1074 = vpack.c.b16 %v1070, %v1069
  %v1080 = vsel %vm390, %v1046, 0
  %1082 = vmatprep.subr.bf16.mxu0 0
  %1083 = vmatpush1.bf16.msra.mxu0 %v1071
  %1084 = vmatprep.subr.bf16.mxu0 0
  %1085 = vmatpush1.bf16.msra.mxu0 %v1072
  %1086 = vmatprep.subr.bf16.mxu0 0
  %1087 = vmatpush1.bf16.msra.mxu0 %v1073
  %1088 = vmatprep.subr.bf16.mxu0 0
  %1089 = vmatpush1.bf16.msra.mxu0 %v1074
  %1090 = vmatprep.subr.bf16.mxu0 0
  %1091 = vmatpush1.bf16.msra.mxu0 0
  %1092 = vmatprep.subr.bf16.mxu0 0
  %1093 = vmatpush1.bf16.msra.mxu0 0
  %1094 = vmatprep.subr.bf16.mxu0 0
  %1095 = vmatpush1.bf16.msra.mxu0 0
  %1096 = vmatprep.subr.bf16.mxu0 0
  %1097 = vmatpush1.bf16.msra.mxu0 0
  %1098 = vmatprep.subr.bf16.mxu0 0
  %1099 = vmatpush1.bf16.msra.mxu0 0
  %1100 = vmatprep.subr.bf16.mxu0 0
  %1101 = vmatpush1.bf16.msra.mxu0 0
  %1102 = vmatprep.subr.bf16.mxu0 0
  %1103 = vmatpush1.bf16.msra.mxu0 0
  %1104 = vmatprep.subr.bf16.mxu0 0
  %1105 = vmatpush1.bf16.msra.mxu0 0
  %1106 = vmatprep.subr.bf16.mxu0 0
  %1107 = vmatpush1.bf16.msra.mxu0 0
  %1108 = vmatprep.subr.bf16.mxu0 0
  %1109 = vmatpush1.bf16.msra.mxu0 0
  %1110 = vmatprep.subr.bf16.mxu0 0
  %1111 = vmatpush1.bf16.msra.mxu0 0
  %1112 = vmatprep.subr.bf16.mxu0 0
  %1113 = vmatpush1.bf16.msra.mxu0 0
  %1114 = vmatprep.mubr.bf16.mxu0 0
  %1115 = vmatmul.mubr.bf16.gmra.mrb[0].mxu0 %v1080
  %v1116 = vpop.f32.mrb[0].mxu0
  %v1117 = vadd.f32 0.0, %v1116
  %v1118 = vpop.f32.mrb[0].mxu0
  %v1119 = vpop.f32.mrb[0].mxu0
  %v1120 = vadd.f32 0.0, %v1119
  %v1121 = vpop.f32.mrb[0].mxu0
  %1122 = vdwg.mxu0
  %v1123 = vadd.f32 %v1042, %v1117
  %v1124 = vadd.f32 %v1044, %v1120
  %v1125 = vxor.u32 %v1123, 2147483648
  %v1126 = vxor.u32 %v1124, 2147483648
  %v1127 = vmul.f32 %v1125, 1.442695
  %v1128 = vpow.pop %v1127
  %v1129 = vmul.f32 %v1126, 1.442695
  %v1130 = vpow.pop %v1129
  %v1131 = vadd.f32 %v1128, 1.0
  %v1132 = vadd.f32 %v1130, 1.0
  %v1133 = vrcp.pop %v1131
  %v1134 = vmul.f32 1.0, %v1133
  %v1135 = vrcp.pop %v1132
  %v1136 = vmul.f32 1.0, %v1135
  %1139 = vrot.lane.b32.xlu0 %v1036, 64
  %v1140 = vpop.permute.xlu0 %1139
  %1141 = vrot.lane.b32.xlu0 %v1037, 64
  %v1142 = vpop.permute.xlu0 %1141
  %v1145 = vmul.f32 %v1134, %v1140
  %v1146 = vmul.f32 %v1136, %v1142
  %v1147 = vpack.c.bf16 %v1146, %v1145
  %v1148 = vld [vmem:[%s4] sm:$0xf]
  %v1149 = vld [vmem:[%s4 + $0x4] sm:$0xf]
  %v1150 = vld [vmem:[%s4 + $0x8] sm:$0xf]
  %v1151 = vld [vmem:[%s4 + $0xc] sm:$0xf]
  %v1152 = vld [vmem:[%s4 + $0x10] sm:$0xf]
  %v1153 = vld [vmem:[%s4 + $0x14] sm:$0xf]
  %v1154 = vld [vmem:[%s4 + $0x18] sm:$0xf]
  %v1155 = vld [vmem:[%s4 + $0x1c] sm:$0xf]
  %1157 = vrot.lane.b32.xlu0 %v1147, 64
  %v1158 = vpop.permute.xlu0 %1157
  %v1167 = vunpack.c.l.b16 %v1148
  %v1168 = vunpack.c.l.b16 %v1149
  %v1169 = vunpack.c.l.b16 %v1150
  %v1170 = vunpack.c.l.b16 %v1151
  %v1171 = vunpack.c.l.b16 %v1152
  %v1172 = vunpack.c.l.b16 %v1153
  %v1173 = vunpack.c.l.b16 %v1154
  %v1174 = vunpack.c.l.b16 %v1155
  %v1175 = vpack.c.b16 %v1168, %v1167
  %v1176 = vpack.c.b16 %v1170, %v1169
  %v1177 = vpack.c.b16 %v1172, %v1171
  %v1178 = vpack.c.b16 %v1174, %v1173
  %v1184 = vsel %vm390, %v1158, 0
  %1186 = vmatprep.subr.bf16.mxu0 0
  %1187 = vmatpush1.bf16.msra.mxu0 %v1175
  %1188 = vmatprep.subr.bf16.mxu0 0
  %1189 = vmatpush1.bf16.msra.mxu0 %v1176
  %1190 = vmatprep.subr.bf16.mxu0 0
  %1191 = vmatpush1.bf16.msra.mxu0 %v1177
  %1192 = vmatprep.subr.bf16.mxu0 0
  %1193 = vmatpush1.bf16.msra.mxu0 %v1178
  %1194 = vmatprep.subr.bf16.mxu0 0
  %1195 = vmatpush1.bf16.msra.mxu0 0
  %1196 = vmatprep.subr.bf16.mxu0 0
  %1197 = vmatpush1.bf16.msra.mxu0 0
  %1198 = vmatprep.subr.bf16.mxu0 0
  %1199 = vmatpush1.bf16.msra.mxu0 0
  %1200 = vmatprep.subr.bf16.mxu0 0
  %1201 = vmatpush1.bf16.msra.mxu0 0
  %1202 = vmatprep.subr.bf16.mxu0 0
  %1203 = vmatpush1.bf16.msra.mxu0 0
  %1204 = vmatprep.subr.bf16.mxu0 0
  %1205 = vmatpush1.bf16.msra.mxu0 0
  %1206 = vmatprep.subr.bf16.mxu0 0
  %1207 = vmatpush1.bf16.msra.mxu0 0
  %1208 = vmatprep.subr.bf16.mxu0 0
  %1209 = vmatpush1.bf16.msra.mxu0 0
  %1210 = vmatprep.subr.bf16.mxu0 0
  %1211 = vmatpush1.bf16.msra.mxu0 0
  %1212 = vmatprep.subr.bf16.mxu0 0
  %1213 = vmatpush1.bf16.msra.mxu0 0
  %1214 = vmatprep.subr.bf16.mxu0 0
  %1215 = vmatpush1.bf16.msra.mxu0 0
  %1216 = vmatprep.subr.bf16.mxu0 0
  %1217 = vmatpush1.bf16.msra.mxu0 0
  %1218 = vmatprep.mubr.bf16.mxu0 0
  %1219 = vmatmul.mubr.bf16.gmra.mrb[0].mxu0 %v1184
  %v1220 = vpop.f32.mrb[0].mxu0
  %v1221 = vadd.f32 0.0, %v1220
  %v1222 = vpop.f32.mrb[0].mxu0
  %v1223 = vpop.f32.mrb[0].mxu0
  %v1224 = vadd.f32 0.0, %v1223
  %v1225 = vpop.f32.mrb[0].mxu0
  %1226 = vdwg.mxu0
  %v1227 = vadd.f32 %v1043, %v1221
  %v1228 = vadd.f32 %v1045, %v1224
  %v1229 = vtanh.pop %v1227
  %v1230 = vtanh.pop %v1228
  %v1231 = vsub.f32 1.0, %v1134
  %v1232 = vsub.f32 1.0, %v1136
  %v1233 = vmul.f32 %v1231, %v1036
  %v1234 = vmul.f32 %v1232, %v1037
  %v1235 = vmul.f32 %v1134, %v1229
  %v1236 = vmul.f32 %v1136, %v1230
  %v1237 = vadd.f32 %v1233, %v1235
  %v1238 = vadd.f32 %v1234, %v1236
  %s1239 = scalar_lea.vmem %s8, 48
  %1240 = vst.msk [vmem:[%s1239] sm:$0xff] %vm390, %v1237
  %1241 = vst.msk [vmem:[%s1239 + $0x8] sm:$0xff] %vm390, %v1238
  %s1242 = scalar_lea.vmem [#allocation2], 128
  %v1243 = vld [vmem:[%s1242] sm:$0xff]
  %v1244 = vld [vmem:[%s1242 + $0x8] sm:$0xff]
  %v1245 = vld [vmem:[%s1242 + $0x10] sm:$0xff]
  %v1246 = vld [vmem:[%s1242 + $0x18] sm:$0xff]
  %v1247 = vpack.c.bf16 %v1238, %v1237
  %v1248 = vld [vmem:[%s3] sm:$0xf]
  %v1249 = vld [vmem:[%s3 + $0x4] sm:$0xf]
  %v1250 = vld [vmem:[%s3 + $0x8] sm:$0xf]
  %v1251 = vld [vmem:[%s3 + $0xc] sm:$0xf]
  %v1252 = vld [vmem:[%s3 + $0x10] sm:$0xf]
  %v1253 = vld [vmem:[%s3 + $0x14] sm:$0xf]
  %v1254 = vld [vmem:[%s3 + $0x18] sm:$0xf]
  %v1255 = vld [vmem:[%s3 + $0x1c] sm:$0xf]
  %v1264 = vunpack.c.l.b16 %v1248
  %v1265 = vunpack.c.l.b16 %v1249
  %v1266 = vunpack.c.l.b16 %v1250
  %v1267 = vunpack.c.l.b16 %v1251
  %v1268 = vunpack.c.l.b16 %v1252
  %v1269 = vunpack.c.l.b16 %v1253
  %v1270 = vunpack.c.l.b16 %v1254
  %v1271 = vunpack.c.l.b16 %v1255
  %v1272 = vpack.c.b16 %v1265, %v1264
  %v1273 = vpack.c.b16 %v1267, %v1266
  %v1274 = vpack.c.b16 %v1269, %v1268
  %v1275 = vpack.c.b16 %v1271, %v1270
  %v1281 = vsel %vm390, %v1247, 0
  %1283 = vmatprep.subr.bf16.mxu0 0
  %1284 = vmatpush1.bf16.msra.mxu0 %v1272
  %1285 = vmatprep.subr.bf16.mxu0 0
  %1286 = vmatpush1.bf16.msra.mxu0 %v1273
  %1287 = vmatprep.subr.bf16.mxu0 0
  %1288 = vmatpush1.bf16.msra.mxu0 %v1274
  %1289 = vmatprep.subr.bf16.mxu0 0
  %1290 = vmatpush1.bf16.msra.mxu0 %v1275
  %1291 = vmatprep.subr.bf16.mxu0 0
  %1292 = vmatpush1.bf16.msra.mxu0 0
  %1293 = vmatprep.subr.bf16.mxu0 0
  %1294 = vmatpush1.bf16.msra.mxu0 0
  %1295 = vmatprep.subr.bf16.mxu0 0
  %1296 = vmatpush1.bf16.msra.mxu0 0
  %1297 = vmatprep.subr.bf16.mxu0 0
  %1298 = vmatpush1.bf16.msra.mxu0 0
  %1299 = vmatprep.subr.bf16.mxu0 0
  %1300 = vmatpush1.bf16.msra.mxu0 0
  %1301 = vmatprep.subr.bf16.mxu0 0
  %1302 = vmatpush1.bf16.msra.mxu0 0
  %1303 = vmatprep.subr.bf16.mxu0 0
  %1304 = vmatpush1.bf16.msra.mxu0 0
  %1305 = vmatprep.subr.bf16.mxu0 0
  %1306 = vmatpush1.bf16.msra.mxu0 0
  %1307 = vmatprep.subr.bf16.mxu0 0
  %1308 = vmatpush1.bf16.msra.mxu0 0
  %1309 = vmatprep.subr.bf16.mxu0 0
  %1310 = vmatpush1.bf16.msra.mxu0 0
  %1311 = vmatprep.subr.bf16.mxu0 0
  %1312 = vmatpush1.bf16.msra.mxu0 0
  %1313 = vmatprep.subr.bf16.mxu0 0
  %1314 = vmatpush1.bf16.msra.mxu0 0
  %1315 = vmatprep.mubr.bf16.mxu0 0
  %1316 = vmatmul.mubr.bf16.gmra.mrb[0].mxu0 %v1281
  %v1317 = vpop.f32.mrb[0].mxu0
  %v1318 = vadd.f32 0.0, %v1317
  %v1319 = vpop.f32.mrb[0].mxu0
  %v1320 = vpop.f32.mrb[0].mxu0
  %v1321 = vadd.f32 0.0, %v1320
  %v1322 = vpop.f32.mrb[0].mxu0
  %1323 = vdwg.mxu0
  %v1324 = vadd.f32 %v1243, %v1318
  %v1325 = vadd.f32 %v1245, %v1321
  %v1326 = vxor.u32 %v1324, 2147483648
  %v1327 = vxor.u32 %v1325, 2147483648
  %v1328 = vmul.f32 %v1326, 1.442695
  %v1329 = vpow.pop %v1328
  %v1330 = vmul.f32 %v1327, 1.442695
  %v1331 = vpow.pop %v1330
  %v1332 = vadd.f32 %v1329, 1.0
  %v1333 = vadd.f32 %v1331, 1.0
  %v1334 = vrcp.pop %v1332
  %v1335 = vmul.f32 1.0, %v1334
  %v1336 = vrcp.pop %v1333
  %v1337 = vmul.f32 1.0, %v1336
  %1340 = vrot.lane.b32.xlu0 %v1237, 64
  %v1341 = vpop.permute.xlu0 %1340
  %1342 = vrot.lane.b32.xlu0 %v1238, 64
  %v1343 = vpop.permute.xlu0 %1342
  %v1346 = vmul.f32 %v1335, %v1341
  %v1347 = vmul.f32 %v1337, %v1343
  %v1348 = vpack.c.bf16 %v1347, %v1346
  %v1349 = vld [vmem:[%s4] sm:$0xf]
  %v1350 = vld [vmem:[%s4 + $0x4] sm:$0xf]
  %v1351 = vld [vmem:[%s4 + $0x8] sm:$0xf]
  %v1352 = vld [vmem:[%s4 + $0xc] sm:$0xf]
  %v1353 = vld [vmem:[%s4 + $0x10] sm:$0xf]
  %v1354 = vld [vmem:[%s4 + $0x14] sm:$0xf]
  %v1355 = vld [vmem:[%s4 + $0x18] sm:$0xf]
  %v1356 = vld [vmem:[%s4 + $0x1c] sm:$0xf]
  %1358 = vrot.lane.b32.xlu0 %v1348, 64
  %v1359 = vpop.permute.xlu0 %1358
  %v1368 = vunpack.c.l.b16 %v1349
  %v1369 = vunpack.c.l.b16 %v1350
  %v1370 = vunpack.c.l.b16 %v1351
  %v1371 = vunpack.c.l.b16 %v1352
  %v1372 = vunpack.c.l.b16 %v1353
  %v1373 = vunpack.c.l.b16 %v1354
  %v1374 = vunpack.c.l.b16 %v1355
  %v1375 = vunpack.c.l.b16 %v1356
  %v1376 = vpack.c.b16 %v1369, %v1368
  %v1377 = vpack.c.b16 %v1371, %v1370
  %v1378 = vpack.c.b16 %v1373, %v1372
  %v1379 = vpack.c.b16 %v1375, %v1374
  %v1385 = vsel %vm390, %v1359, 0
  %1387 = vmatprep.subr.bf16.mxu0 0
  %1388 = vmatpush1.bf16.msra.mxu0 %v1376
  %1389 = vmatprep.subr.bf16.mxu0 0
  %1390 = vmatpush1.bf16.msra.mxu0 %v1377
  %1391 = vmatprep.subr.bf16.mxu0 0
  %1392 = vmatpush1.bf16.msra.mxu0 %v1378
  %1393 = vmatprep.subr.bf16.mxu0 0
  %1394 = vmatpush1.bf16.msra.mxu0 %v1379
  %1395 = vmatprep.subr.bf16.mxu0 0
  %1396 = vmatpush1.bf16.msra.mxu0 0
  %1397 = vmatprep.subr.bf16.mxu0 0
  %1398 = vmatpush1.bf16.msra.mxu0 0
  %1399 = vmatprep.subr.bf16.mxu0 0
  %1400 = vmatpush1.bf16.msra.mxu0 0
  %1401 = vmatprep.subr.bf16.mxu0 0
  %1402 = vmatpush1.bf16.msra.mxu0 0
  %1403 = vmatprep.subr.bf16.mxu0 0
  %1404 = vmatpush1.bf16.msra.mxu0 0
  %1405 = vmatprep.subr.bf16.mxu0 0
  %1406 = vmatpush1.bf16.msra.mxu0 0
  %1407 = vmatprep.subr.bf16.mxu0 0
  %1408 = vmatpush1.bf16.msra.mxu0 0
  %1409 = vmatprep.subr.bf16.mxu0 0
  %1410 = vmatpush1.bf16.msra.mxu0 0
  %1411 = vmatprep.subr.bf16.mxu0 0
  %1412 = vmatpush1.bf16.msra.mxu0 0
  %1413 = vmatprep.subr.bf16.mxu0 0
  %1414 = vmatpush1.bf16.msra.mxu0 0
  %1415 = vmatprep.subr.bf16.mxu0 0
  %1416 = vmatpush1.bf16.msra.mxu0 0
  %1417 = vmatprep.subr.bf16.mxu0 0
  %1418 = vmatpush1.bf16.msra.mxu0 0
  %1419 = vmatprep.mubr.bf16.mxu0 0
  %1420 = vmatmul.mubr.bf16.gmra.mrb[0].mxu0 %v1385
  %v1421 = vpop.f32.mrb[0].mxu0
  %v1422 = vadd.f32 0.0, %v1421
  %v1423 = vpop.f32.mrb[0].mxu0
  %v1424 = vpop.f32.mrb[0].mxu0
  %v1425 = vadd.f32 0.0, %v1424
  %v1426 = vpop.f32.mrb[0].mxu0
  %1427 = vdwg.mxu0
  %v1428 = vadd.f32 %v1244, %v1422
  %v1429 = vadd.f32 %v1246, %v1425
  %v1430 = vtanh.pop %v1428
  %v1431 = vtanh.pop %v1429
  %v1432 = vsub.f32 1.0, %v1335
  %v1433 = vsub.f32 1.0, %v1337
  %v1434 = vmul.f32 %v1432, %v1237
  %v1435 = vmul.f32 %v1433, %v1238
  %v1436 = vmul.f32 %v1335, %v1430
  %v1437 = vmul.f32 %v1337, %v1431
  %v1438 = vadd.f32 %v1434, %v1436
  %v1439 = vadd.f32 %v1435, %v1437
  %s1440 = scalar_lea.vmem %s8, 64
  %1441 = vst.msk [vmem:[%s1440] sm:$0xff] %vm390, %v1438
  %1442 = vst.msk [vmem:[%s1440 + $0x8] sm:$0xff] %vm390, %v1439
  %s1443 = scalar_lea.vmem [#allocation2], 160
  %v1444 = vld [vmem:[%s1443] sm:$0xff]
  %v1445 = vld [vmem:[%s1443 + $0x8] sm:$0xff]
  %v1446 = vld [vmem:[%s1443 + $0x10] sm:$0xff]
  %v1447 = vld [vmem:[%s1443 + $0x18] sm:$0xff]
  %v1448 = vpack.c.bf16 %v1439, %v1438
  %v1449 = vld [vmem:[%s3] sm:$0xf]
  %v1450 = vld [vmem:[%s3 + $0x4] sm:$0xf]
  %v1451 = vld [vmem:[%s3 + $0x8] sm:$0xf]
  %v1452 = vld [vmem:[%s3 + $0xc] sm:$0xf]
  %v1453 = vld [vmem:[%s3 + $0x10] sm:$0xf]
  %v1454 = vld [vmem:[%s3 + $0x14] sm:$0xf]
  %v1455 = vld [vmem:[%s3 + $0x18] sm:$0xf]
  %v1456 = vld [vmem:[%s3 + $0x1c] sm:$0xf]
  %v1465 = vunpack.c.l.b16 %v1449
  %v1466 = vunpack.c.l.b16 %v1450
  %v1467 = vunpack.c.l.b16 %v1451
  %v1468 = vunpack.c.l.b16 %v1452
  %v1469 = vunpack.c.l.b16 %v1453
  %v1470 = vunpack.c.l.b16 %v1454
  %v1471 = vunpack.c.l.b16 %v1455
  %v1472 = vunpack.c.l.b16 %v1456
  %v1473 = vpack.c.b16 %v1466, %v1465
  %v1474 = vpack.c.b16 %v1468, %v1467
  %v1475 = vpack.c.b16 %v1470, %v1469
  %v1476 = vpack.c.b16 %v1472, %v1471
  %v1482 = vsel %vm390, %v1448, 0
  %1484 = vmatprep.subr.bf16.mxu0 0
  %1485 = vmatpush1.bf16.msra.mxu0 %v1473
  %1486 = vmatprep.subr.bf16.mxu0 0
  %1487 = vmatpush1.bf16.msra.mxu0 %v1474
  %1488 = vmatprep.subr.bf16.mxu0 0
  %1489 = vmatpush1.bf16.msra.mxu0 %v1475
  %1490 = vmatprep.subr.bf16.mxu0 0
  %1491 = vmatpush1.bf16.msra.mxu0 %v1476
  %1492 = vmatprep.subr.bf16.mxu0 0
  %1493 = vmatpush1.bf16.msra.mxu0 0
  %1494 = vmatprep.subr.bf16.mxu0 0
  %1495 = vmatpush1.bf16.msra.mxu0 0
  %1496 = vmatprep.subr.bf16.mxu0 0
  %1497 = vmatpush1.bf16.msra.mxu0 0
  %1498 = vmatprep.subr.bf16.mxu0 0
  %1499 = vmatpush1.bf16.msra.mxu0 0
  %1500 = vmatprep.subr.bf16.mxu0 0
  %1501 = vmatpush1.bf16.msra.mxu0 0
  %1502 = vmatprep.subr.bf16.mxu0 0
  %1503 = vmatpush1.bf16.msra.mxu0 0
  %1504 = vmatprep.subr.bf16.mxu0 0
  %1505 = vmatpush1.bf16.msra.mxu0 0
  %1506 = vmatprep.subr.bf16.mxu0 0
  %1507 = vmatpush1.bf16.msra.mxu0 0
  %1508 = vmatprep.subr.bf16.mxu0 0
  %1509 = vmatpush1.bf16.msra.mxu0 0
  %1510 = vmatprep.subr.bf16.mxu0 0
  %1511 = vmatpush1.bf16.msra.mxu0 0
  %1512 = vmatprep.subr.bf16.mxu0 0
  %1513 = vmatpush1.bf16.msra.mxu0 0
  %1514 = vmatprep.subr.bf16.mxu0 0
  %1515 = vmatpush1.bf16.msra.mxu0 0
  %1516 = vmatprep.mubr.bf16.mxu0 0
  %1517 = vmatmul.mubr.bf16.gmra.mrb[0].mxu0 %v1482
  %v1518 = vpop.f32.mrb[0].mxu0
  %v1519 = vadd.f32 0.0, %v1518
  %v1520 = vpop.f32.mrb[0].mxu0
  %v1521 = vpop.f32.mrb[0].mxu0
  %v1522 = vadd.f32 0.0, %v1521
  %v1523 = vpop.f32.mrb[0].mxu0
  %1524 = vdwg.mxu0
  %v1525 = vadd.f32 %v1444, %v1519
  %v1526 = vadd.f32 %v1446, %v1522
  %v1527 = vxor.u32 %v1525, 2147483648
  %v1528 = vxor.u32 %v1526, 2147483648
  %v1529 = vmul.f32 %v1527, 1.442695
  %v1530 = vpow.pop %v1529
  %v1531 = vmul.f32 %v1528, 1.442695
  %v1532 = vpow.pop %v1531
  %v1533 = vadd.f32 %v1530, 1.0
  %v1534 = vadd.f32 %v1532, 1.0
  %v1535 = vrcp.pop %v1533
  %v1536 = vmul.f32 1.0, %v1535
  %v1537 = vrcp.pop %v1534
  %v1538 = vmul.f32 1.0, %v1537
  %1541 = vrot.lane.b32.xlu0 %v1438, 64
  %v1542 = vpop.permute.xlu0 %1541
  %1543 = vrot.lane.b32.xlu0 %v1439, 64
  %v1544 = vpop.permute.xlu0 %1543
  %v1547 = vmul.f32 %v1536, %v1542
  %v1548 = vmul.f32 %v1538, %v1544
  %v1549 = vpack.c.bf16 %v1548, %v1547
  %v1550 = vld [vmem:[%s4] sm:$0xf]
  %v1551 = vld [vmem:[%s4 + $0x4] sm:$0xf]
  %v1552 = vld [vmem:[%s4 + $0x8] sm:$0xf]
  %v1553 = vld [vmem:[%s4 + $0xc] sm:$0xf]
  %v1554 = vld [vmem:[%s4 + $0x10] sm:$0xf]
  %v1555 = vld [vmem:[%s4 + $0x14] sm:$0xf]
  %v1556 = vld [vmem:[%s4 + $0x18] sm:$0xf]
  %v1557 = vld [vmem:[%s4 + $0x1c] sm:$0xf]
  %1559 = vrot.lane.b32.xlu0 %v1549, 64
  %v1560 = vpop.permute.xlu0 %1559
  %v1569 = vunpack.c.l.b16 %v1550
  %v1570 = vunpack.c.l.b16 %v1551
  %v1571 = vunpack.c.l.b16 %v1552
  %v1572 = vunpack.c.l.b16 %v1553
  %v1573 = vunpack.c.l.b16 %v1554
  %v1574 = vunpack.c.l.b16 %v1555
  %v1575 = vunpack.c.l.b16 %v1556
  %v1576 = vunpack.c.l.b16 %v1557
  %v1577 = vpack.c.b16 %v1570, %v1569
  %v1578 = vpack.c.b16 %v1572, %v1571
  %v1579 = vpack.c.b16 %v1574, %v1573
  %v1580 = vpack.c.b16 %v1576, %v1575
  %v1586 = vsel %vm390, %v1560, 0
  %1588 = vmatprep.subr.bf16.mxu0 0
  %1589 = vmatpush1.bf16.msra.mxu0 %v1577
  %1590 = vmatprep.subr.bf16.mxu0 0
  %1591 = vmatpush1.bf16.msra.mxu0 %v1578
  %1592 = vmatprep.subr.bf16.mxu0 0
  %1593 = vmatpush1.bf16.msra.mxu0 %v1579
  %1594 = vmatprep.subr.bf16.mxu0 0
  %1595 = vmatpush1.bf16.msra.mxu0 %v1580
  %1596 = vmatprep.subr.bf16.mxu0 0
  %1597 = vmatpush1.bf16.msra.mxu0 0
  %1598 = vmatprep.subr.bf16.mxu0 0
  %1599 = vmatpush1.bf16.msra.mxu0 0
  %1600 = vmatprep.subr.bf16.mxu0 0
  %1601 = vmatpush1.bf16.msra.mxu0 0
  %1602 = vmatprep.subr.bf16.mxu0 0
  %1603 = vmatpush1.bf16.msra.mxu0 0
  %1604 = vmatprep.subr.bf16.mxu0 0
  %1605 = vmatpush1.bf16.msra.mxu0 0
  %1606 = vmatprep.subr.bf16.mxu0 0
  %1607 = vmatpush1.bf16.msra.mxu0 0
  %1608 = vmatprep.subr.bf16.mxu0 0
  %1609 = vmatpush1.bf16.msra.mxu0 0
  %1610 = vmatprep.subr.bf16.mxu0 0
  %1611 = vmatpush1.bf16.msra.mxu0 0
  %1612 = vmatprep.subr.bf16.mxu0 0
  %1613 = vmatpush1.bf16.msra.mxu0 0
  %1614 = vmatprep.subr.bf16.mxu0 0
  %1615 = vmatpush1.bf16.msra.mxu0 0
  %1616 = vmatprep.subr.bf16.mxu0 0
  %1617 = vmatpush1.bf16.msra.mxu0 0
  %1618 = vmatprep.subr.bf16.mxu0 0
  %1619 = vmatpush1.bf16.msra.mxu0 0
  %1620 = vmatprep.mubr.bf16.mxu0 0
  %1621 = vmatmul.mubr.bf16.gmra.mrb[0].mxu0 %v1586
  %v1622 = vpop.f32.mrb[0].mxu0
  %v1623 = vadd.f32 0.0, %v1622
  %v1624 = vpop.f32.mrb[0].mxu0
  %v1625 = vpop.f32.mrb[0].mxu0
  %v1626 = vadd.f32 0.0, %v1625
  %v1627 = vpop.f32.mrb[0].mxu0
  %1628 = vdwg.mxu0
  %v1629 = vadd.f32 %v1445, %v1623
  %v1630 = vadd.f32 %v1447, %v1626
  %v1631 = vtanh.pop %v1629
  %v1632 = vtanh.pop %v1630
  %v1633 = vsub.f32 1.0, %v1536
  %v1634 = vsub.f32 1.0, %v1538
  %v1635 = vmul.f32 %v1633, %v1438
  %v1636 = vmul.f32 %v1634, %v1439
  %v1637 = vmul.f32 %v1536, %v1631
  %v1638 = vmul.f32 %v1538, %v1632
  %v1639 = vadd.f32 %v1635, %v1637
  %v1640 = vadd.f32 %v1636, %v1638
  %s1641 = scalar_lea.vmem %s8, 80
  %1642 = vst.msk [vmem:[%s1641] sm:$0xff] %vm390, %v1639
  %1643 = vst.msk [vmem:[%s1641 + $0x8] sm:$0xff] %vm390, %v1640
  %s1644 = scalar_lea.vmem [#allocation2], 192
  %v1645 = vld [vmem:[%s1644] sm:$0xff]
  %v1646 = vld [vmem:[%s1644 + $0x8] sm:$0xff]
  %v1647 = vld [vmem:[%s1644 + $0x10] sm:$0xff]
  %v1648 = vld [vmem:[%s1644 + $0x18] sm:$0xff]
  %v1649 = vpack.c.bf16 %v1640, %v1639
  %v1650 = vld [vmem:[%s3] sm:$0xf]
  %v1651 = vld [vmem:[%s3 + $0x4] sm:$0xf]
  %v1652 = vld [vmem:[%s3 + $0x8] sm:$0xf]
  %v1653 = vld [vmem:[%s3 + $0xc] sm:$0xf]
  %v1654 = vld [vmem:[%s3 + $0x10] sm:$0xf]
  %v1655 = vld [vmem:[%s3 + $0x14] sm:$0xf]
  %v1656 = vld [vmem:[%s3 + $0x18] sm:$0xf]
  %v1657 = vld [vmem:[%s3 + $0x1c] sm:$0xf]
  %v1666 = vunpack.c.l.b16 %v1650
  %v1667 = vunpack.c.l.b16 %v1651
  %v1668 = vunpack.c.l.b16 %v1652
  %v1669 = vunpack.c.l.b16 %v1653
  %v1670 = vunpack.c.l.b16 %v1654
  %v1671 = vunpack.c.l.b16 %v1655
  %v1672 = vunpack.c.l.b16 %v1656
  %v1673 = vunpack.c.l.b16 %v1657
  %v1674 = vpack.c.b16 %v1667, %v1666
  %v1675 = vpack.c.b16 %v1669, %v1668
  %v1676 = vpack.c.b16 %v1671, %v1670
  %v1677 = vpack.c.b16 %v1673, %v1672
  %v1683 = vsel %vm390, %v1649, 0
  %1685 = vmatprep.subr.bf16.mxu0 0
  %1686 = vmatpush1.bf16.msra.mxu0 %v1674
  %1687 = vmatprep.subr.bf16.mxu0 0
  %1688 = vmatpush1.bf16.msra.mxu0 %v1675
  %1689 = vmatprep.subr.bf16.mxu0 0
  %1690 = vmatpush1.bf16.msra.mxu0 %v1676
  %1691 = vmatprep.subr.bf16.mxu0 0
  %1692 = vmatpush1.bf16.msra.mxu0 %v1677
  %1693 = vmatprep.subr.bf16.mxu0 0
  %1694 = vmatpush1.bf16.msra.mxu0 0
  %1695 = vmatprep.subr.bf16.mxu0 0
  %1696 = vmatpush1.bf16.msra.mxu0 0
  %1697 = vmatprep.subr.bf16.mxu0 0
  %1698 = vmatpush1.bf16.msra.mxu0 0
  %1699 = vmatprep.subr.bf16.mxu0 0
  %1700 = vmatpush1.bf16.msra.mxu0 0
  %1701 = vmatprep.subr.bf16.mxu0 0
  %1702 = vmatpush1.bf16.msra.mxu0 0
  %1703 = vmatprep.subr.bf16.mxu0 0
  %1704 = vmatpush1.bf16.msra.mxu0 0
  %1705 = vmatprep.subr.bf16.mxu0 0
  %1706 = vmatpush1.bf16.msra.mxu0 0
  %1707 = vmatprep.subr.bf16.mxu0 0
  %1708 = vmatpush1.bf16.msra.mxu0 0
  %1709 = vmatprep.subr.bf16.mxu0 0
  %1710 = vmatpush1.bf16.msra.mxu0 0
  %1711 = vmatprep.subr.bf16.mxu0 0
  %1712 = vmatpush1.bf16.msra.mxu0 0
  %1713 = vmatprep.subr.bf16.mxu0 0
  %1714 = vmatpush1.bf16.msra.mxu0 0
  %1715 = vmatprep.subr.bf16.mxu0 0
  %1716 = vmatpush1.bf16.msra.mxu0 0
  %1717 = vmatprep.mubr.bf16.mxu0 0
  %1718 = vmatmul.mubr.bf16.gmra.mrb[0].mxu0 %v1683
  %v1719 = vpop.f32.mrb[0].mxu0
  %v1720 = vadd.f32 0.0, %v1719
  %v1721 = vpop.f32.mrb[0].mxu0
  %v1722 = vpop.f32.mrb[0].mxu0
  %v1723 = vadd.f32 0.0, %v1722
  %v1724 = vpop.f32.mrb[0].mxu0
  %1725 = vdwg.mxu0
  %v1726 = vadd.f32 %v1645, %v1720
  %v1727 = vadd.f32 %v1647, %v1723
  %v1728 = vxor.u32 %v1726, 2147483648
  %v1729 = vxor.u32 %v1727, 2147483648
  %v1730 = vmul.f32 %v1728, 1.442695
  %v1731 = vpow.pop %v1730
  %v1732 = vmul.f32 %v1729, 1.442695
  %v1733 = vpow.pop %v1732
  %v1734 = vadd.f32 %v1731, 1.0
  %v1735 = vadd.f32 %v1733, 1.0
  %v1736 = vrcp.pop %v1734
  %v1737 = vmul.f32 1.0, %v1736
  %v1738 = vrcp.pop %v1735
  %v1739 = vmul.f32 1.0, %v1738
  %1742 = vrot.lane.b32.xlu0 %v1639, 64
  %v1743 = vpop.permute.xlu0 %1742
  %1744 = vrot.lane.b32.xlu0 %v1640, 64
  %v1745 = vpop.permute.xlu0 %1744
  %v1748 = vmul.f32 %v1737, %v1743
  %v1749 = vmul.f32 %v1739, %v1745
  %v1750 = vpack.c.bf16 %v1749, %v1748
  %v1751 = vld [vmem:[%s4] sm:$0xf]
  %v1752 = vld [vmem:[%s4 + $0x4] sm:$0xf]
  %v1753 = vld [vmem:[%s4 + $0x8] sm:$0xf]
  %v1754 = vld [vmem:[%s4 + $0xc] sm:$0xf]
  %v1755 = vld [vmem:[%s4 + $0x10] sm:$0xf]
  %v1756 = vld [vmem:[%s4 + $0x14] sm:$0xf]
  %v1757 = vld [vmem:[%s4 + $0x18] sm:$0xf]
  %v1758 = vld [vmem:[%s4 + $0x1c] sm:$0xf]
  %1760 = vrot.lane.b32.xlu0 %v1750, 64
  %v1761 = vpop.permute.xlu0 %1760
  %v1770 = vunpack.c.l.b16 %v1751
  %v1771 = vunpack.c.l.b16 %v1752
  %v1772 = vunpack.c.l.b16 %v1753
  %v1773 = vunpack.c.l.b16 %v1754
  %v1774 = vunpack.c.l.b16 %v1755
  %v1775 = vunpack.c.l.b16 %v1756
  %v1776 = vunpack.c.l.b16 %v1757
  %v1777 = vunpack.c.l.b16 %v1758
  %v1778 = vpack.c.b16 %v1771, %v1770
  %v1779 = vpack.c.b16 %v1773, %v1772
  %v1780 = vpack.c.b16 %v1775, %v1774
  %v1781 = vpack.c.b16 %v1777, %v1776
  %v1787 = vsel %vm390, %v1761, 0
  %1789 = vmatprep.subr.bf16.mxu0 0
  %1790 = vmatpush1.bf16.msra.mxu0 %v1778
  %1791 = vmatprep.subr.bf16.mxu0 0
  %1792 = vmatpush1.bf16.msra.mxu0 %v1779
  %1793 = vmatprep.subr.bf16.mxu0 0
  %1794 = vmatpush1.bf16.msra.mxu0 %v1780
  %1795 = vmatprep.subr.bf16.mxu0 0
  %1796 = vmatpush1.bf16.msra.mxu0 %v1781
  %1797 = vmatprep.subr.bf16.mxu0 0
  %1798 = vmatpush1.bf16.msra.mxu0 0
  %1799 = vmatprep.subr.bf16.mxu0 0
  %1800 = vmatpush1.bf16.msra.mxu0 0
  %1801 = vmatprep.subr.bf16.mxu0 0
  %1802 = vmatpush1.bf16.msra.mxu0 0
  %1803 = vmatprep.subr.bf16.mxu0 0
  %1804 = vmatpush1.bf16.msra.mxu0 0
  %1805 = vmatprep.subr.bf16.mxu0 0
  %1806 = vmatpush1.bf16.msra.mxu0 0
  %1807 = vmatprep.subr.bf16.mxu0 0
  %1808 = vmatpush1.bf16.msra.mxu0 0
  %1809 = vmatprep.subr.bf16.mxu0 0
  %1810 = vmatpush1.bf16.msra.mxu0 0
  %1811 = vmatprep.subr.bf16.mxu0 0
  %1812 = vmatpush1.bf16.msra.mxu0 0
  %1813 = vmatprep.subr.bf16.mxu0 0
  %1814 = vmatpush1.bf16.msra.mxu0 0
  %1815 = vmatprep.subr.bf16.mxu0 0
  %1816 = vmatpush1.bf16.msra.mxu0 0
  %1817 = vmatprep.subr.bf16.mxu0 0
  %1818 = vmatpush1.bf16.msra.mxu0 0
  %1819 = vmatprep.subr.bf16.mxu0 0
  %1820 = vmatpush1.bf16.msra.mxu0 0
  %1821 = vmatprep.mubr.bf16.mxu0 0
  %1822 = vmatmul.mubr.bf16.gmra.mrb[0].mxu0 %v1787
  %v1823 = vpop.f32.mrb[0].mxu0
  %v1824 = vadd.f32 0.0, %v1823
  %v1825 = vpop.f32.mrb[0].mxu0
  %v1826 = vpop.f32.mrb[0].mxu0
  %v1827 = vadd.f32 0.0, %v1826
  %v1828 = vpop.f32.mrb[0].mxu0
  %1829 = vdwg.mxu0
  %v1830 = vadd.f32 %v1646, %v1824
  %v1831 = vadd.f32 %v1648, %v1827
  %v1832 = vtanh.pop %v1830
  %v1833 = vtanh.pop %v1831
  %v1834 = vsub.f32 1.0, %v1737
  %v1835 = vsub.f32 1.0, %v1739
  %v1836 = vmul.f32 %v1834, %v1639
  %v1837 = vmul.f32 %v1835, %v1640
  %v1838 = vmul.f32 %v1737, %v1832
  %v1839 = vmul.f32 %v1739, %v1833
  %v1840 = vadd.f32 %v1836, %v1838
  %v1841 = vadd.f32 %v1837, %v1839
  %s1842 = scalar_lea.vmem %s8, 96
  %1843 = vst.msk [vmem:[%s1842] sm:$0xff] %vm390, %v1840
  %1844 = vst.msk [vmem:[%s1842 + $0x8] sm:$0xff] %vm390, %v1841
  %s1845 = scalar_lea.vmem [#allocation2], 224
  %v1846 = vld [vmem:[%s1845] sm:$0xff]
  %v1847 = vld [vmem:[%s1845 + $0x8] sm:$0xff]
  %v1848 = vld [vmem:[%s1845 + $0x10] sm:$0xff]
  %v1849 = vld [vmem:[%s1845 + $0x18] sm:$0xff]
  %v1850 = vpack.c.bf16 %v1841, %v1840
  %v1851 = vld [vmem:[%s3] sm:$0xf]
  %v1852 = vld [vmem:[%s3 + $0x4] sm:$0xf]
  %v1853 = vld [vmem:[%s3 + $0x8] sm:$0xf]
  %v1854 = vld [vmem:[%s3 + $0xc] sm:$0xf]
  %v1855 = vld [vmem:[%s3 + $0x10] sm:$0xf]
  %v1856 = vld [vmem:[%s3 + $0x14] sm:$0xf]
  %v1857 = vld [vmem:[%s3 + $0x18] sm:$0xf]
  %v1858 = vld [vmem:[%s3 + $0x1c] sm:$0xf]
  %v1867 = vunpack.c.l.b16 %v1851
  %v1868 = vunpack.c.l.b16 %v1852
  %v1869 = vunpack.c.l.b16 %v1853
  %v1870 = vunpack.c.l.b16 %v1854
  %v1871 = vunpack.c.l.b16 %v1855
  %v1872 = vunpack.c.l.b16 %v1856
  %v1873 = vunpack.c.l.b16 %v1857
  %v1874 = vunpack.c.l.b16 %v1858
  %v1875 = vpack.c.b16 %v1868, %v1867
  %v1876 = vpack.c.b16 %v1870, %v1869
  %v1877 = vpack.c.b16 %v1872, %v1871
  %v1878 = vpack.c.b16 %v1874, %v1873
  %v1884 = vsel %vm390, %v1850, 0
  %1886 = vmatprep.subr.bf16.mxu0 0
  %1887 = vmatpush1.bf16.msra.mxu0 %v1875
  %1888 = vmatprep.subr.bf16.mxu0 0
  %1889 = vmatpush1.bf16.msra.mxu0 %v1876
  %1890 = vmatprep.subr.bf16.mxu0 0
  %1891 = vmatpush1.bf16.msra.mxu0 %v1877
  %1892 = vmatprep.subr.bf16.mxu0 0
  %1893 = vmatpush1.bf16.msra.mxu0 %v1878
  %1894 = vmatprep.subr.bf16.mxu0 0
  %1895 = vmatpush1.bf16.msra.mxu0 0
  %1896 = vmatprep.subr.bf16.mxu0 0
  %1897 = vmatpush1.bf16.msra.mxu0 0
  %1898 = vmatprep.subr.bf16.mxu0 0
  %1899 = vmatpush1.bf16.msra.mxu0 0
  %1900 = vmatprep.subr.bf16.mxu0 0
  %1901 = vmatpush1.bf16.msra.mxu0 0
  %1902 = vmatprep.subr.bf16.mxu0 0
  %1903 = vmatpush1.bf16.msra.mxu0 0
  %1904 = vmatprep.subr.bf16.mxu0 0
  %1905 = vmatpush1.bf16.msra.mxu0 0
  %1906 = vmatprep.subr.bf16.mxu0 0
  %1907 = vmatpush1.bf16.msra.mxu0 0
  %1908 = vmatprep.subr.bf16.mxu0 0
  %1909 = vmatpush1.bf16.msra.mxu0 0
  %1910 = vmatprep.subr.bf16.mxu0 0
  %1911 = vmatpush1.bf16.msra.mxu0 0
  %1912 = vmatprep.subr.bf16.mxu0 0
  %1913 = vmatpush1.bf16.msra.mxu0 0
  %1914 = vmatprep.subr.bf16.mxu0 0
  %1915 = vmatpush1.bf16.msra.mxu0 0
  %1916 = vmatprep.subr.bf16.mxu0 0
  %1917 = vmatpush1.bf16.msra.mxu0 0
  %1918 = vmatprep.mubr.bf16.mxu0 0
  %1919 = vmatmul.mubr.bf16.gmra.mrb[0].mxu0 %v1884
  %v1920 = vpop.f32.mrb[0].mxu0
  %v1921 = vadd.f32 0.0, %v1920
  %v1922 = vpop.f32.mrb[0].mxu0
  %v1923 = vpop.f32.mrb[0].mxu0
  %v1924 = vadd.f32 0.0, %v1923
  %v1925 = vpop.f32.mrb[0].mxu0
  %1926 = vdwg.mxu0
  %v1927 = vadd.f32 %v1846, %v1921
  %v1928 = vadd.f32 %v1848, %v1924
  %v1929 = vxor.u32 %v1927, 2147483648
  %v1930 = vxor.u32 %v1928, 2147483648
  %v1931 = vmul.f32 %v1929, 1.442695
  %v1932 = vpow.pop %v1931
  %v1933 = vmul.f32 %v1930, 1.442695
  %v1934 = vpow.pop %v1933
  %v1935 = vadd.f32 %v1932, 1.0
  %v1936 = vadd.f32 %v1934, 1.0
  %v1937 = vrcp.pop %v1935
  %v1938 = vmul.f32 1.0, %v1937
  %v1939 = vrcp.pop %v1936
  %v1940 = vmul.f32 1.0, %v1939
  %1943 = vrot.lane.b32.xlu0 %v1840, 64
  %v1944 = vpop.permute.xlu0 %1943
  %1945 = vrot.lane.b32.xlu0 %v1841, 64
  %v1946 = vpop.permute.xlu0 %1945
  %v1949 = vmul.f32 %v1938, %v1944
  %v1950 = vmul.f32 %v1940, %v1946
  %v1951 = vpack.c.bf16 %v1950, %v1949
  %v1952 = vld [vmem:[%s4] sm:$0xf]
  %v1953 = vld [vmem:[%s4 + $0x4] sm:$0xf]
  %v1954 = vld [vmem:[%s4 + $0x8] sm:$0xf]
  %v1955 = vld [vmem:[%s4 + $0xc] sm:$0xf]
  %v1956 = vld [vmem:[%s4 + $0x10] sm:$0xf]
  %v1957 = vld [vmem:[%s4 + $0x14] sm:$0xf]
  %v1958 = vld [vmem:[%s4 + $0x18] sm:$0xf]
  %v1959 = vld [vmem:[%s4 + $0x1c] sm:$0xf]
  %1961 = vrot.lane.b32.xlu0 %v1951, 64
  %v1962 = vpop.permute.xlu0 %1961
  %v1971 = vunpack.c.l.b16 %v1952
  %v1972 = vunpack.c.l.b16 %v1953
  %v1973 = vunpack.c.l.b16 %v1954
  %v1974 = vunpack.c.l.b16 %v1955
  %v1975 = vunpack.c.l.b16 %v1956
  %v1976 = vunpack.c.l.b16 %v1957
  %v1977 = vunpack.c.l.b16 %v1958
  %v1978 = vunpack.c.l.b16 %v1959
  %v1979 = vpack.c.b16 %v1972, %v1971
  %v1980 = vpack.c.b16 %v1974, %v1973
  %v1981 = vpack.c.b16 %v1976, %v1975
  %v1982 = vpack.c.b16 %v1978, %v1977
  %v1988 = vsel %vm390, %v1962, 0
  %1990 = vmatprep.subr.bf16.mxu0 0
  %1991 = vmatpush1.bf16.msra.mxu0 %v1979
  %1992 = vmatprep.subr.bf16.mxu0 0
  %1993 = vmatpush1.bf16.msra.mxu0 %v1980
  %1994 = vmatprep.subr.bf16.mxu0 0
  %1995 = vmatpush1.bf16.msra.mxu0 %v1981
  %1996 = vmatprep.subr.bf16.mxu0 0
  %1997 = vmatpush1.bf16.msra.mxu0 %v1982
  %1998 = vmatprep.subr.bf16.mxu0 0
  %1999 = vmatpush1.bf16.msra.mxu0 0
  %2000 = vmatprep.subr.bf16.mxu0 0
  %2001 = vmatpush1.bf16.msra.mxu0 0
  %2002 = vmatprep.subr.bf16.mxu0 0
  %2003 = vmatpush1.bf16.msra.mxu0 0
  %2004 = vmatprep.subr.bf16.mxu0 0
  %2005 = vmatpush1.bf16.msra.mxu0 0
  %2006 = vmatprep.subr.bf16.mxu0 0
  %2007 = vmatpush1.bf16.msra.mxu0 0
  %2008 = vmatprep.subr.bf16.mxu0 0
  %2009 = vmatpush1.bf16.msra.mxu0 0
  %2010 = vmatprep.subr.bf16.mxu0 0
  %2011 = vmatpush1.bf16.msra.mxu0 0
  %2012 = vmatprep.subr.bf16.mxu0 0
  %2013 = vmatpush1.bf16.msra.mxu0 0
  %2014 = vmatprep.subr.bf16.mxu0 0
  %2015 = vmatpush1.bf16.msra.mxu0 0
  %2016 = vmatprep.subr.bf16.mxu0 0
  %2017 = vmatpush1.bf16.msra.mxu0 0
  %2018 = vmatprep.subr.bf16.mxu0 0
  %2019 = vmatpush1.bf16.msra.mxu0 0
  %2020 = vmatprep.subr.bf16.mxu0 0
  %2021 = vmatpush1.bf16.msra.mxu0 0
  %2022 = vmatprep.mubr.bf16.mxu0 0
  %2023 = vmatmul.mubr.bf16.gmra.mrb[0].mxu0 %v1988
  %v2024 = vpop.f32.mrb[0].mxu0
  %v2025 = vadd.f32 0.0, %v2024
  %v2026 = vpop.f32.mrb[0].mxu0
  %v2027 = vpop.f32.mrb[0].mxu0
  %v2028 = vadd.f32 0.0, %v2027
  %v2029 = vpop.f32.mrb[0].mxu0
  %2030 = vdwg.mxu0
  %v2031 = vadd.f32 %v1847, %v2025
  %v2032 = vadd.f32 %v1849, %v2028
  %v2033 = vtanh.pop %v2031
  %v2034 = vtanh.pop %v2032
  %v2035 = vsub.f32 1.0, %v1938
  %v2036 = vsub.f32 1.0, %v1940
  %v2037 = vmul.f32 %v2035, %v1840
  %v2038 = vmul.f32 %v2036, %v1841
  %v2039 = vmul.f32 %v1938, %v2033
  %v2040 = vmul.f32 %v1940, %v2034
  %v2041 = vadd.f32 %v2037, %v2039
  %v2042 = vadd.f32 %v2038, %v2040
  %s2043 = scalar_lea.vmem %s8, 112
  %2044 = vst.msk [vmem:[%s2043] sm:$0xff] %vm390, %v2041
  %2045 = vst.msk [vmem:[%s2043 + $0x8] sm:$0xff] %vm390, %v2042
  %s2046 = scalar_lea.vmem [#allocation2], 256
  %v2047 = vld [vmem:[%s2046] sm:$0xff]
  %v2048 = vld [vmem:[%s2046 + $0x8] sm:$0xff]
  %v2049 = vld [vmem:[%s2046 + $0x10] sm:$0xff]
  %v2050 = vld [vmem:[%s2046 + $0x18] sm:$0xff]
  %v2051 = vpack.c.bf16 %v2042, %v2041
  %v2052 = vld [vmem:[%s3] sm:$0xf]
  %v2053 = vld [vmem:[%s3 + $0x4] sm:$0xf]
  %v2054 = vld [vmem:[%s3 + $0x8] sm:$0xf]
  %v2055 = vld [vmem:[%s3 + $0xc] sm:$0xf]
  %v2056 = vld [vmem:[%s3 + $0x10] sm:$0xf]
  %v2057 = vld [vmem:[%s3 + $0x14] sm:$0xf]
  %v2058 = vld [vmem:[%s3 + $0x18] sm:$0xf]
  %v2059 = vld [vmem:[%s3 + $0x1c] sm:$0xf]
  %v2068 = vunpack.c.l.b16 %v2052
  %v2069 = vunpack.c.l.b16 %v2053
  %v2070 = vunpack.c.l.b16 %v2054
  %v2071 = vunpack.c.l.b16 %v2055
  %v2072 = vunpack.c.l.b16 %v2056
  %v2073 = vunpack.c.l.b16 %v2057
  %v2074 = vunpack.c.l.b16 %v2058
  %v2075 = vunpack.c.l.b16 %v2059
  %v2076 = vpack.c.b16 %v2069, %v2068
  %v2077 = vpack.c.b16 %v2071, %v2070
  %v2078 = vpack.c.b16 %v2073, %v2072
  %v2079 = vpack.c.b16 %v2075, %v2074
  %v2085 = vsel %vm390, %v2051, 0
  %2087 = vmatprep.subr.bf16.mxu0 0
  %2088 = vmatpush1.bf16.msra.mxu0 %v2076
  %2089 = vmatprep.subr.bf16.mxu0 0
  %2090 = vmatpush1.bf16.msra.mxu0 %v2077
  %2091 = vmatprep.subr.bf16.mxu0 0
  %2092 = vmatpush1.bf16.msra.mxu0 %v2078
  %2093 = vmatprep.subr.bf16.mxu0 0
  %2094 = vmatpush1.bf16.msra.mxu0 %v2079
  %2095 = vmatprep.subr.bf16.mxu0 0
  %2096 = vmatpush1.bf16.msra.mxu0 0
  %2097 = vmatprep.subr.bf16.mxu0 0
  %2098 = vmatpush1.bf16.msra.mxu0 0
  %2099 = vmatprep.subr.bf16.mxu0 0
  %2100 = vmatpush1.bf16.msra.mxu0 0
  %2101 = vmatprep.subr.bf16.mxu0 0
  %2102 = vmatpush1.bf16.msra.mxu0 0
  %2103 = vmatprep.subr.bf16.mxu0 0
  %2104 = vmatpush1.bf16.msra.mxu0 0
  %2105 = vmatprep.subr.bf16.mxu0 0
  %2106 = vmatpush1.bf16.msra.mxu0 0
  %2107 = vmatprep.subr.bf16.mxu0 0
  %2108 = vmatpush1.bf16.msra.mxu0 0
  %2109 = vmatprep.subr.bf16.mxu0 0
  %2110 = vmatpush1.bf16.msra.mxu0 0
  %2111 = vmatprep.subr.bf16.mxu0 0
  %2112 = vmatpush1.bf16.msra.mxu0 0
  %2113 = vmatprep.subr.bf16.mxu0 0
  %2114 = vmatpush1.bf16.msra.mxu0 0
  %2115 = vmatprep.subr.bf16.mxu0 0
  %2116 = vmatpush1.bf16.msra.mxu0 0
  %2117 = vmatprep.subr.bf16.mxu0 0
  %2118 = vmatpush1.bf16.msra.mxu0 0
  %2119 = vmatprep.mubr.bf16.mxu0 0
  %2120 = vmatmul.mubr.bf16.gmra.mrb[0].mxu0 %v2085
  %v2121 = vpop.f32.mrb[0].mxu0
  %v2122 = vadd.f32 0.0, %v2121
  %v2123 = vpop.f32.mrb[0].mxu0
  %v2124 = vpop.f32.mrb[0].mxu0
  %v2125 = vadd.f32 0.0, %v2124
  %v2126 = vpop.f32.mrb[0].mxu0
  %2127 = vdwg.mxu0
  %v2128 = vadd.f32 %v2047, %v2122
  %v2129 = vadd.f32 %v2049, %v2125
  %v2130 = vxor.u32 %v2128, 2147483648
  %v2131 = vxor.u32 %v2129, 2147483648
  %v2132 = vmul.f32 %v2130, 1.442695
  %v2133 = vpow.pop %v2132
  %v2134 = vmul.f32 %v2131, 1.442695
  %v2135 = vpow.pop %v2134
  %v2136 = vadd.f32 %v2133, 1.0
  %v2137 = vadd.f32 %v2135, 1.0
  %v2138 = vrcp.pop %v2136
  %v2139 = vmul.f32 1.0, %v2138
  %v2140 = vrcp.pop %v2137
  %v2141 = vmul.f32 1.0, %v2140
  %2144 = vrot.lane.b32.xlu0 %v2041, 64
  %v2145 = vpop.permute.xlu0 %2144
  %2146 = vrot.lane.b32.xlu0 %v2042, 64
  %v2147 = vpop.permute.xlu0 %2146
  %v2150 = vmul.f32 %v2139, %v2145
  %v2151 = vmul.f32 %v2141, %v2147
  %v2152 = vpack.c.bf16 %v2151, %v2150
  %v2153 = vld [vmem:[%s4] sm:$0xf]
  %v2154 = vld [vmem:[%s4 + $0x4] sm:$0xf]
  %v2155 = vld [vmem:[%s4 + $0x8] sm:$0xf]
  %v2156 = vld [vmem:[%s4 + $0xc] sm:$0xf]
  %v2157 = vld [vmem:[%s4 + $0x10] sm:$0xf]
  %v2158 = vld [vmem:[%s4 + $0x14] sm:$0xf]
  %v2159 = vld [vmem:[%s4 + $0x18] sm:$0xf]
  %v2160 = vld [vmem:[%s4 + $0x1c] sm:$0xf]
  %2162 = vrot.lane.b32.xlu0 %v2152, 64
  %v2163 = vpop.permute.xlu0 %2162
  %v2172 = vunpack.c.l.b16 %v2153
  %v2173 = vunpack.c.l.b16 %v2154
  %v2174 = vunpack.c.l.b16 %v2155
  %v2175 = vunpack.c.l.b16 %v2156
  %v2176 = vunpack.c.l.b16 %v2157
  %v2177 = vunpack.c.l.b16 %v2158
  %v2178 = vunpack.c.l.b16 %v2159
  %v2179 = vunpack.c.l.b16 %v2160
  %v2180 = vpack.c.b16 %v2173, %v2172
  %v2181 = vpack.c.b16 %v2175, %v2174
  %v2182 = vpack.c.b16 %v2177, %v2176
  %v2183 = vpack.c.b16 %v2179, %v2178
  %v2189 = vsel %vm390, %v2163, 0
  %2191 = vmatprep.subr.bf16.mxu0 0
  %2192 = vmatpush1.bf16.msra.mxu0 %v2180
  %2193 = vmatprep.subr.bf16.mxu0 0
  %2194 = vmatpush1.bf16.msra.mxu0 %v2181
  %2195 = vmatprep.subr.bf16.mxu0 0
  %2196 = vmatpush1.bf16.msra.mxu0 %v2182
  %2197 = vmatprep.subr.bf16.mxu0 0
  %2198 = vmatpush1.bf16.msra.mxu0 %v2183
  %2199 = vmatprep.subr.bf16.mxu0 0
  %2200 = vmatpush1.bf16.msra.mxu0 0
  %2201 = vmatprep.subr.bf16.mxu0 0
  %2202 = vmatpush1.bf16.msra.mxu0 0
  %2203 = vmatprep.subr.bf16.mxu0 0
  %2204 = vmatpush1.bf16.msra.mxu0 0
  %2205 = vmatprep.subr.bf16.mxu0 0
  %2206 = vmatpush1.bf16.msra.mxu0 0
  %2207 = vmatprep.subr.bf16.mxu0 0
  %2208 = vmatpush1.bf16.msra.mxu0 0
  %2209 = vmatprep.subr.bf16.mxu0 0
  %2210 = vmatpush1.bf16.msra.mxu0 0
  %2211 = vmatprep.subr.bf16.mxu0 0
  %2212 = vmatpush1.bf16.msra.mxu0 0
  %2213 = vmatprep.subr.bf16.mxu0 0
  %2214 = vmatpush1.bf16.msra.mxu0 0
  %2215 = vmatprep.subr.bf16.mxu0 0
  %2216 = vmatpush1.bf16.msra.mxu0 0
  %2217 = vmatprep.subr.bf16.mxu0 0
  %2218 = vmatpush1.bf16.msra.mxu0 0
  %2219 = vmatprep.subr.bf16.mxu0 0
  %2220 = vmatpush1.bf16.msra.mxu0 0
  %2221 = vmatprep.subr.bf16.mxu0 0
  %2222 = vmatpush1.bf16.msra.mxu0 0
  %2223 = vmatprep.mubr.bf16.mxu0 0
  %2224 = vmatmul.mubr.bf16.gmra.mrb[0].mxu0 %v2189
  %v2225 = vpop.f32.mrb[0].mxu0
  %v2226 = vadd.f32 0.0, %v2225
  %v2227 = vpop.f32.mrb[0].mxu0
  %v2228 = vpop.f32.mrb[0].mxu0
  %v2229 = vadd.f32 0.0, %v2228
  %v2230 = vpop.f32.mrb[0].mxu0
  %2231 = vdwg.mxu0
  %v2232 = vadd.f32 %v2048, %v2226
  %v2233 = vadd.f32 %v2050, %v2229
  %v2234 = vtanh.pop %v2232
  %v2235 = vtanh.pop %v2233
  %v2236 = vsub.f32 1.0, %v2139
  %v2237 = vsub.f32 1.0, %v2141
  %v2238 = vmul.f32 %v2236, %v2041
  %v2239 = vmul.f32 %v2237, %v2042
  %v2240 = vmul.f32 %v2139, %v2234
  %v2241 = vmul.f32 %v2141, %v2235
  %v2242 = vadd.f32 %v2238, %v2240
  %v2243 = vadd.f32 %v2239, %v2241
  %s2244 = scalar_lea.vmem %s8, 128
  %2245 = vst.msk [vmem:[%s2244] sm:$0xff] %vm390, %v2242
  %2246 = vst.msk [vmem:[%s2244 + $0x8] sm:$0xff] %vm390, %v2243
  %s2247 = scalar_lea.vmem [#allocation2], 288
  %v2248 = vld [vmem:[%s2247] sm:$0xff]
  %v2249 = vld [vmem:[%s2247 + $0x8] sm:$0xff]
  %v2250 = vld [vmem:[%s2247 + $0x10] sm:$0xff]
  %v2251 = vld [vmem:[%s2247 + $0x18] sm:$0xff]
  %v2252 = vpack.c.bf16 %v2243, %v2242
  %v2253 = vld [vmem:[%s3] sm:$0xf]
  %v2254 = vld [vmem:[%s3 + $0x4] sm:$0xf]
  %v2255 = vld [vmem:[%s3 + $0x8] sm:$0xf]
  %v2256 = vld [vmem:[%s3 + $0xc] sm:$0xf]
  %v2257 = vld [vmem:[%s3 + $0x10] sm:$0xf]
  %v2258 = vld [vmem:[%s3 + $0x14] sm:$0xf]
  %v2259 = vld [vmem:[%s3 + $0x18] sm:$0xf]
  %v2260 = vld [vmem:[%s3 + $0x1c] sm:$0xf]
  %v2269 = vunpack.c.l.b16 %v2253
  %v2270 = vunpack.c.l.b16 %v2254
  %v2271 = vunpack.c.l.b16 %v2255
  %v2272 = vunpack.c.l.b16 %v2256
  %v2273 = vunpack.c.l.b16 %v2257
  %v2274 = vunpack.c.l.b16 %v2258
  %v2275 = vunpack.c.l.b16 %v2259
  %v2276 = vunpack.c.l.b16 %v2260
  %v2277 = vpack.c.b16 %v2270, %v2269
  %v2278 = vpack.c.b16 %v2272, %v2271
  %v2279 = vpack.c.b16 %v2274, %v2273
  %v2280 = vpack.c.b16 %v2276, %v2275
  %v2286 = vsel %vm390, %v2252, 0
  %2288 = vmatprep.subr.bf16.mxu0 0
  %2289 = vmatpush1.bf16.msra.mxu0 %v2277
  %2290 = vmatprep.subr.bf16.mxu0 0
  %2291 = vmatpush1.bf16.msra.mxu0 %v2278
  %2292 = vmatprep.subr.bf16.mxu0 0
  %2293 = vmatpush1.bf16.msra.mxu0 %v2279
  %2294 = vmatprep.subr.bf16.mxu0 0
  %2295 = vmatpush1.bf16.msra.mxu0 %v2280
  %2296 = vmatprep.subr.bf16.mxu0 0
  %2297 = vmatpush1.bf16.msra.mxu0 0
  %2298 = vmatprep.subr.bf16.mxu0 0
  %2299 = vmatpush1.bf16.msra.mxu0 0
  %2300 = vmatprep.subr.bf16.mxu0 0
  %2301 = vmatpush1.bf16.msra.mxu0 0
  %2302 = vmatprep.subr.bf16.mxu0 0
  %2303 = vmatpush1.bf16.msra.mxu0 0
  %2304 = vmatprep.subr.bf16.mxu0 0
  %2305 = vmatpush1.bf16.msra.mxu0 0
  %2306 = vmatprep.subr.bf16.mxu0 0
  %2307 = vmatpush1.bf16.msra.mxu0 0
  %2308 = vmatprep.subr.bf16.mxu0 0
  %2309 = vmatpush1.bf16.msra.mxu0 0
  %2310 = vmatprep.subr.bf16.mxu0 0
  %2311 = vmatpush1.bf16.msra.mxu0 0
  %2312 = vmatprep.subr.bf16.mxu0 0
  %2313 = vmatpush1.bf16.msra.mxu0 0
  %2314 = vmatprep.subr.bf16.mxu0 0
  %2315 = vmatpush1.bf16.msra.mxu0 0
  %2316 = vmatprep.subr.bf16.mxu0 0
  %2317 = vmatpush1.bf16.msra.mxu0 0
  %2318 = vmatprep.subr.bf16.mxu0 0
  %2319 = vmatpush1.bf16.msra.mxu0 0
  %2320 = vmatprep.mubr.bf16.mxu0 0
  %2321 = vmatmul.mubr.bf16.gmra.mrb[0].mxu0 %v2286
  %v2322 = vpop.f32.mrb[0].mxu0
  %v2323 = vadd.f32 0.0, %v2322
  %v2324 = vpop.f32.mrb[0].mxu0
  %v2325 = vpop.f32.mrb[0].mxu0
  %v2326 = vadd.f32 0.0, %v2325
  %v2327 = vpop.f32.mrb[0].mxu0
  %2328 = vdwg.mxu0
  %v2329 = vadd.f32 %v2248, %v2323
  %v2330 = vadd.f32 %v2250, %v2326
  %v2331 = vxor.u32 %v2329, 2147483648
  %v2332 = vxor.u32 %v2330, 2147483648
  %v2333 = vmul.f32 %v2331, 1.442695
  %v2334 = vpow.pop %v2333
  %v2335 = vmul.f32 %v2332, 1.442695
  %v2336 = vpow.pop %v2335
  %v2337 = vadd.f32 %v2334, 1.0
  %v2338 = vadd.f32 %v2336, 1.0
  %v2339 = vrcp.pop %v2337
  %v2340 = vmul.f32 1.0, %v2339
  %v2341 = vrcp.pop %v2338
  %v2342 = vmul.f32 1.0, %v2341
  %2345 = vrot.lane.b32.xlu0 %v2242, 64
  %v2346 = vpop.permute.xlu0 %2345
  %2347 = vrot.lane.b32.xlu0 %v2243, 64
  %v2348 = vpop.permute.xlu0 %2347
  %v2351 = vmul.f32 %v2340, %v2346
  %v2352 = vmul.f32 %v2342, %v2348
  %v2353 = vpack.c.bf16 %v2352, %v2351
  %v2354 = vld [vmem:[%s4] sm:$0xf]
  %v2355 = vld [vmem:[%s4 + $0x4] sm:$0xf]
  %v2356 = vld [vmem:[%s4 + $0x8] sm:$0xf]
  %v2357 = vld [vmem:[%s4 + $0xc] sm:$0xf]
  %v2358 = vld [vmem:[%s4 + $0x10] sm:$0xf]
  %v2359 = vld [vmem:[%s4 + $0x14] sm:$0xf]
  %v2360 = vld [vmem:[%s4 + $0x18] sm:$0xf]
  %v2361 = vld [vmem:[%s4 + $0x1c] sm:$0xf]
  %2363 = vrot.lane.b32.xlu0 %v2353, 64
  %v2364 = vpop.permute.xlu0 %2363
  %v2373 = vunpack.c.l.b16 %v2354
  %v2374 = vunpack.c.l.b16 %v2355
  %v2375 = vunpack.c.l.b16 %v2356
  %v2376 = vunpack.c.l.b16 %v2357
  %v2377 = vunpack.c.l.b16 %v2358
  %v2378 = vunpack.c.l.b16 %v2359
  %v2379 = vunpack.c.l.b16 %v2360
  %v2380 = vunpack.c.l.b16 %v2361
  %v2381 = vpack.c.b16 %v2374, %v2373
  %v2382 = vpack.c.b16 %v2376, %v2375
  %v2383 = vpack.c.b16 %v2378, %v2377
  %v2384 = vpack.c.b16 %v2380, %v2379
  %v2390 = vsel %vm390, %v2364, 0
  %2392 = vmatprep.subr.bf16.mxu0 0
  %2393 = vmatpush1.bf16.msra.mxu0 %v2381
  %2394 = vmatprep.subr.bf16.mxu0 0
  %2395 = vmatpush1.bf16.msra.mxu0 %v2382
  %2396 = vmatprep.subr.bf16.mxu0 0
  %2397 = vmatpush1.bf16.msra.mxu0 %v2383
  %2398 = vmatprep.subr.bf16.mxu0 0
  %2399 = vmatpush1.bf16.msra.mxu0 %v2384
  %2400 = vmatprep.subr.bf16.mxu0 0
  %2401 = vmatpush1.bf16.msra.mxu0 0
  %2402 = vmatprep.subr.bf16.mxu0 0
  %2403 = vmatpush1.bf16.msra.mxu0 0
  %2404 = vmatprep.subr.bf16.mxu0 0
  %2405 = vmatpush1.bf16.msra.mxu0 0
  %2406 = vmatprep.subr.bf16.mxu0 0
  %2407 = vmatpush1.bf16.msra.mxu0 0
  %2408 = vmatprep.subr.bf16.mxu0 0
  %2409 = vmatpush1.bf16.msra.mxu0 0
  %2410 = vmatprep.subr.bf16.mxu0 0
  %2411 = vmatpush1.bf16.msra.mxu0 0
  %2412 = vmatprep.subr.bf16.mxu0 0
  %2413 = vmatpush1.bf16.msra.mxu0 0
  %2414 = vmatprep.subr.bf16.mxu0 0
  %2415 = vmatpush1.bf16.msra.mxu0 0
  %2416 = vmatprep.subr.bf16.mxu0 0
  %2417 = vmatpush1.bf16.msra.mxu0 0
  %2418 = vmatprep.subr.bf16.mxu0 0
  %2419 = vmatpush1.bf16.msra.mxu0 0
  %2420 = vmatprep.subr.bf16.mxu0 0
  %2421 = vmatpush1.bf16.msra.mxu0 0
  %2422 = vmatprep.subr.bf16.mxu0 0
  %2423 = vmatpush1.bf16.msra.mxu0 0
  %2424 = vmatprep.mubr.bf16.mxu0 0
  %2425 = vmatmul.mubr.bf16.gmra.mrb[0].mxu0 %v2390
  %v2426 = vpop.f32.mrb[0].mxu0
  %v2427 = vadd.f32 0.0, %v2426
  %v2428 = vpop.f32.mrb[0].mxu0
  %v2429 = vpop.f32.mrb[0].mxu0
  %v2430 = vadd.f32 0.0, %v2429
  %v2431 = vpop.f32.mrb[0].mxu0
  %2432 = vdwg.mxu0
  %v2433 = vadd.f32 %v2249, %v2427
  %v2434 = vadd.f32 %v2251, %v2430
  %v2435 = vtanh.pop %v2433
  %v2436 = vtanh.pop %v2434
  %v2437 = vsub.f32 1.0, %v2340
  %v2438 = vsub.f32 1.0, %v2342
  %v2439 = vmul.f32 %v2437, %v2242
  %v2440 = vmul.f32 %v2438, %v2243
  %v2441 = vmul.f32 %v2340, %v2435
  %v2442 = vmul.f32 %v2342, %v2436
  %v2443 = vadd.f32 %v2439, %v2441
  %v2444 = vadd.f32 %v2440, %v2442
  %s2445 = scalar_lea.vmem %s8, 144
  %2446 = vst.msk [vmem:[%s2445] sm:$0xff] %vm390, %v2443
  %2447 = vst.msk [vmem:[%s2445 + $0x8] sm:$0xff] %vm390, %v2444
  %s2448 = scalar_lea.vmem [#allocation2], 320
  %v2449 = vld [vmem:[%s2448] sm:$0xff]
  %v2450 = vld [vmem:[%s2448 + $0x8] sm:$0xff]
  %v2451 = vld [vmem:[%s2448 + $0x10] sm:$0xff]
  %v2452 = vld [vmem:[%s2448 + $0x18] sm:$0xff]
  %v2453 = vpack.c.bf16 %v2444, %v2443
  %v2454 = vld [vmem:[%s3] sm:$0xf]
  %v2455 = vld [vmem:[%s3 + $0x4] sm:$0xf]
  %v2456 = vld [vmem:[%s3 + $0x8] sm:$0xf]
  %v2457 = vld [vmem:[%s3 + $0xc] sm:$0xf]
  %v2458 = vld [vmem:[%s3 + $0x10] sm:$0xf]
  %v2459 = vld [vmem:[%s3 + $0x14] sm:$0xf]
  %v2460 = vld [vmem:[%s3 + $0x18] sm:$0xf]
  %v2461 = vld [vmem:[%s3 + $0x1c] sm:$0xf]
  %v2470 = vunpack.c.l.b16 %v2454
  %v2471 = vunpack.c.l.b16 %v2455
  %v2472 = vunpack.c.l.b16 %v2456
  %v2473 = vunpack.c.l.b16 %v2457
  %v2474 = vunpack.c.l.b16 %v2458
  %v2475 = vunpack.c.l.b16 %v2459
  %v2476 = vunpack.c.l.b16 %v2460
  %v2477 = vunpack.c.l.b16 %v2461
  %v2478 = vpack.c.b16 %v2471, %v2470
  %v2479 = vpack.c.b16 %v2473, %v2472
  %v2480 = vpack.c.b16 %v2475, %v2474
  %v2481 = vpack.c.b16 %v2477, %v2476
  %v2487 = vsel %vm390, %v2453, 0
  %2489 = vmatprep.subr.bf16.mxu0 0
  %2490 = vmatpush1.bf16.msra.mxu0 %v2478
  %2491 = vmatprep.subr.bf16.mxu0 0
  %2492 = vmatpush1.bf16.msra.mxu0 %v2479
  %2493 = vmatprep.subr.bf16.mxu0 0
  %2494 = vmatpush1.bf16.msra.mxu0 %v2480
  %2495 = vmatprep.subr.bf16.mxu0 0
  %2496 = vmatpush1.bf16.msra.mxu0 %v2481
  %2497 = vmatprep.subr.bf16.mxu0 0
  %2498 = vmatpush1.bf16.msra.mxu0 0
  %2499 = vmatprep.subr.bf16.mxu0 0
  %2500 = vmatpush1.bf16.msra.mxu0 0
  %2501 = vmatprep.subr.bf16.mxu0 0
  %2502 = vmatpush1.bf16.msra.mxu0 0
  %2503 = vmatprep.subr.bf16.mxu0 0
  %2504 = vmatpush1.bf16.msra.mxu0 0
  %2505 = vmatprep.subr.bf16.mxu0 0
  %2506 = vmatpush1.bf16.msra.mxu0 0
  %2507 = vmatprep.subr.bf16.mxu0 0
  %2508 = vmatpush1.bf16.msra.mxu0 0
  %2509 = vmatprep.subr.bf16.mxu0 0
  %2510 = vmatpush1.bf16.msra.mxu0 0
  %2511 = vmatprep.subr.bf16.mxu0 0
  %2512 = vmatpush1.bf16.msra.mxu0 0
  %2513 = vmatprep.subr.bf16.mxu0 0
  %2514 = vmatpush1.bf16.msra.mxu0 0
  %2515 = vmatprep.subr.bf16.mxu0 0
  %2516 = vmatpush1.bf16.msra.mxu0 0
  %2517 = vmatprep.subr.bf16.mxu0 0
  %2518 = vmatpush1.bf16.msra.mxu0 0
  %2519 = vmatprep.subr.bf16.mxu0 0
  %2520 = vmatpush1.bf16.msra.mxu0 0
  %2521 = vmatprep.mubr.bf16.mxu0 0
  %2522 = vmatmul.mubr.bf16.gmra.mrb[0].mxu0 %v2487
  %v2523 = vpop.f32.mrb[0].mxu0
  %v2524 = vadd.f32 0.0, %v2523
  %v2525 = vpop.f32.mrb[0].mxu0
  %v2526 = vpop.f32.mrb[0].mxu0
  %v2527 = vadd.f32 0.0, %v2526
  %v2528 = vpop.f32.mrb[0].mxu0
  %2529 = vdwg.mxu0
  %v2530 = vadd.f32 %v2449, %v2524
  %v2531 = vadd.f32 %v2451, %v2527
  %v2532 = vxor.u32 %v2530, 2147483648
  %v2533 = vxor.u32 %v2531, 2147483648
  %v2534 = vmul.f32 %v2532, 1.442695
  %v2535 = vpow.pop %v2534
  %v2536 = vmul.f32 %v2533, 1.442695
  %v2537 = vpow.pop %v2536
  %v2538 = vadd.f32 %v2535, 1.0
  %v2539 = vadd.f32 %v2537, 1.0
  %v2540 = vrcp.pop %v2538
  %v2541 = vmul.f32 1.0, %v2540
  %v2542 = vrcp.pop %v2539
  %v2543 = vmul.f32 1.0, %v2542
  %2546 = vrot.lane.b32.xlu0 %v2443, 64
  %v2547 = vpop.permute.xlu0 %2546
  %2548 = vrot.lane.b32.xlu0 %v2444, 64
  %v2549 = vpop.permute.xlu0 %2548
  %v2552 = vmul.f32 %v2541, %v2547
  %v2553 = vmul.f32 %v2543, %v2549
  %v2554 = vpack.c.bf16 %v2553, %v2552
  %v2555 = vld [vmem:[%s4] sm:$0xf]
  %v2556 = vld [vmem:[%s4 + $0x4] sm:$0xf]
  %v2557 = vld [vmem:[%s4 + $0x8] sm:$0xf]
  %v2558 = vld [vmem:[%s4 + $0xc] sm:$0xf]
  %v2559 = vld [vmem:[%s4 + $0x10] sm:$0xf]
  %v2560 = vld [vmem:[%s4 + $0x14] sm:$0xf]
  %v2561 = vld [vmem:[%s4 + $0x18] sm:$0xf]
  %v2562 = vld [vmem:[%s4 + $0x1c] sm:$0xf]
  %2564 = vrot.lane.b32.xlu0 %v2554, 64
  %v2565 = vpop.permute.xlu0 %2564
  %v2574 = vunpack.c.l.b16 %v2555
  %v2575 = vunpack.c.l.b16 %v2556
  %v2576 = vunpack.c.l.b16 %v2557
  %v2577 = vunpack.c.l.b16 %v2558
  %v2578 = vunpack.c.l.b16 %v2559
  %v2579 = vunpack.c.l.b16 %v2560
  %v2580 = vunpack.c.l.b16 %v2561
  %v2581 = vunpack.c.l.b16 %v2562
  %v2582 = vpack.c.b16 %v2575, %v2574
  %v2583 = vpack.c.b16 %v2577, %v2576
  %v2584 = vpack.c.b16 %v2579, %v2578
  %v2585 = vpack.c.b16 %v2581, %v2580
  %v2591 = vsel %vm390, %v2565, 0
  %2593 = vmatprep.subr.bf16.mxu0 0
  %2594 = vmatpush1.bf16.msra.mxu0 %v2582
  %2595 = vmatprep.subr.bf16.mxu0 0
  %2596 = vmatpush1.bf16.msra.mxu0 %v2583
  %2597 = vmatprep.subr.bf16.mxu0 0
  %2598 = vmatpush1.bf16.msra.mxu0 %v2584
  %2599 = vmatprep.subr.bf16.mxu0 0
  %2600 = vmatpush1.bf16.msra.mxu0 %v2585
  %2601 = vmatprep.subr.bf16.mxu0 0
  %2602 = vmatpush1.bf16.msra.mxu0 0
  %2603 = vmatprep.subr.bf16.mxu0 0
  %2604 = vmatpush1.bf16.msra.mxu0 0
  %2605 = vmatprep.subr.bf16.mxu0 0
  %2606 = vmatpush1.bf16.msra.mxu0 0
  %2607 = vmatprep.subr.bf16.mxu0 0
  %2608 = vmatpush1.bf16.msra.mxu0 0
  %2609 = vmatprep.subr.bf16.mxu0 0
  %2610 = vmatpush1.bf16.msra.mxu0 0
  %2611 = vmatprep.subr.bf16.mxu0 0
  %2612 = vmatpush1.bf16.msra.mxu0 0
  %2613 = vmatprep.subr.bf16.mxu0 0
  %2614 = vmatpush1.bf16.msra.mxu0 0
  %2615 = vmatprep.subr.bf16.mxu0 0
  %2616 = vmatpush1.bf16.msra.mxu0 0
  %2617 = vmatprep.subr.bf16.mxu0 0
  %2618 = vmatpush1.bf16.msra.mxu0 0
  %2619 = vmatprep.subr.bf16.mxu0 0
  %2620 = vmatpush1.bf16.msra.mxu0 0
  %2621 = vmatprep.subr.bf16.mxu0 0
  %2622 = vmatpush1.bf16.msra.mxu0 0
  %2623 = vmatprep.subr.bf16.mxu0 0
  %2624 = vmatpush1.bf16.msra.mxu0 0
  %2625 = vmatprep.mubr.bf16.mxu0 0
  %2626 = vmatmul.mubr.bf16.gmra.mrb[0].mxu0 %v2591
  %v2627 = vpop.f32.mrb[0].mxu0
  %v2628 = vadd.f32 0.0, %v2627
  %v2629 = vpop.f32.mrb[0].mxu0
  %v2630 = vpop.f32.mrb[0].mxu0
  %v2631 = vadd.f32 0.0, %v2630
  %v2632 = vpop.f32.mrb[0].mxu0
  %2633 = vdwg.mxu0
  %v2634 = vadd.f32 %v2450, %v2628
  %v2635 = vadd.f32 %v2452, %v2631
  %v2636 = vtanh.pop %v2634
  %v2637 = vtanh.pop %v2635
  %v2638 = vsub.f32 1.0, %v2541
  %v2639 = vsub.f32 1.0, %v2543
  %v2640 = vmul.f32 %v2638, %v2443
  %v2641 = vmul.f32 %v2639, %v2444
  %v2642 = vmul.f32 %v2541, %v2636
  %v2643 = vmul.f32 %v2543, %v2637
  %v2644 = vadd.f32 %v2640, %v2642
  %v2645 = vadd.f32 %v2641, %v2643
  %s2646 = scalar_lea.vmem %s8, 160
  %2647 = vst.msk [vmem:[%s2646] sm:$0xff] %vm390, %v2644
  %2648 = vst.msk [vmem:[%s2646 + $0x8] sm:$0xff] %vm390, %v2645
  %s2649 = scalar_lea.vmem [#allocation2], 352
  %v2650 = vld [vmem:[%s2649] sm:$0xff]
  %v2651 = vld [vmem:[%s2649 + $0x8] sm:$0xff]
  %v2652 = vld [vmem:[%s2649 + $0x10] sm:$0xff]
  %v2653 = vld [vmem:[%s2649 + $0x18] sm:$0xff]
  %v2654 = vpack.c.bf16 %v2645, %v2644
  %v2655 = vld [vmem:[%s3] sm:$0xf]
  %v2656 = vld [vmem:[%s3 + $0x4] sm:$0xf]
  %v2657 = vld [vmem:[%s3 + $0x8] sm:$0xf]
  %v2658 = vld [vmem:[%s3 + $0xc] sm:$0xf]
  %v2659 = vld [vmem:[%s3 + $0x10] sm:$0xf]
  %v2660 = vld [vmem:[%s3 + $0x14] sm:$0xf]
  %v2661 = vld [vmem:[%s3 + $0x18] sm:$0xf]
  %v2662 = vld [vmem:[%s3 + $0x1c] sm:$0xf]
  %v2671 = vunpack.c.l.b16 %v2655
  %v2672 = vunpack.c.l.b16 %v2656
  %v2673 = vunpack.c.l.b16 %v2657
  %v2674 = vunpack.c.l.b16 %v2658
  %v2675 = vunpack.c.l.b16 %v2659
  %v2676 = vunpack.c.l.b16 %v2660
  %v2677 = vunpack.c.l.b16 %v2661
  %v2678 = vunpack.c.l.b16 %v2662
  %v2679 = vpack.c.b16 %v2672, %v2671
  %v2680 = vpack.c.b16 %v2674, %v2673
  %v2681 = vpack.c.b16 %v2676, %v2675
  %v2682 = vpack.c.b16 %v2678, %v2677
  %v2688 = vsel %vm390, %v2654, 0
  %2690 = vmatprep.subr.bf16.mxu0 0
  %2691 = vmatpush1.bf16.msra.mxu0 %v2679
  %2692 = vmatprep.subr.bf16.mxu0 0
  %2693 = vmatpush1.bf16.msra.mxu0 %v2680
  %2694 = vmatprep.subr.bf16.mxu0 0
  %2695 = vmatpush1.bf16.msra.mxu0 %v2681
  %2696 = vmatprep.subr.bf16.mxu0 0
  %2697 = vmatpush1.bf16.msra.mxu0 %v2682
  %2698 = vmatprep.subr.bf16.mxu0 0
  %2699 = vmatpush1.bf16.msra.mxu0 0
  %2700 = vmatprep.subr.bf16.mxu0 0
  %2701 = vmatpush1.bf16.msra.mxu0 0
  %2702 = vmatprep.subr.bf16.mxu0 0
  %2703 = vmatpush1.bf16.msra.mxu0 0
  %2704 = vmatprep.subr.bf16.mxu0 0
  %2705 = vmatpush1.bf16.msra.mxu0 0
  %2706 = vmatprep.subr.bf16.mxu0 0
  %2707 = vmatpush1.bf16.msra.mxu0 0
  %2708 = vmatprep.subr.bf16.mxu0 0
  %2709 = vmatpush1.bf16.msra.mxu0 0
  %2710 = vmatprep.subr.bf16.mxu0 0
  %2711 = vmatpush1.bf16.msra.mxu0 0
  %2712 = vmatprep.subr.bf16.mxu0 0
  %2713 = vmatpush1.bf16.msra.mxu0 0
  %2714 = vmatprep.subr.bf16.mxu0 0
  %2715 = vmatpush1.bf16.msra.mxu0 0
  %2716 = vmatprep.subr.bf16.mxu0 0
  %2717 = vmatpush1.bf16.msra.mxu0 0
  %2718 = vmatprep.subr.bf16.mxu0 0
  %2719 = vmatpush1.bf16.msra.mxu0 0
  %2720 = vmatprep.subr.bf16.mxu0 0
  %2721 = vmatpush1.bf16.msra.mxu0 0
  %2722 = vmatprep.mubr.bf16.mxu0 0
  %2723 = vmatmul.mubr.bf16.gmra.mrb[0].mxu0 %v2688
  %v2724 = vpop.f32.mrb[0].mxu0
  %v2725 = vadd.f32 0.0, %v2724
  %v2726 = vpop.f32.mrb[0].mxu0
  %v2727 = vpop.f32.mrb[0].mxu0
  %v2728 = vadd.f32 0.0, %v2727
  %v2729 = vpop.f32.mrb[0].mxu0
  %2730 = vdwg.mxu0
  %v2731 = vadd.f32 %v2650, %v2725
  %v2732 = vadd.f32 %v2652, %v2728
  %v2733 = vxor.u32 %v2731, 2147483648
  %v2734 = vxor.u32 %v2732, 2147483648
  %v2735 = vmul.f32 %v2733, 1.442695
  %v2736 = vpow.pop %v2735
  %v2737 = vmul.f32 %v2734, 1.442695
  %v2738 = vpow.pop %v2737
  %v2739 = vadd.f32 %v2736, 1.0
  %v2740 = vadd.f32 %v2738, 1.0
  %v2741 = vrcp.pop %v2739
  %v2742 = vmul.f32 1.0, %v2741
  %v2743 = vrcp.pop %v2740
  %v2744 = vmul.f32 1.0, %v2743
  %2747 = vrot.lane.b32.xlu0 %v2644, 64
  %v2748 = vpop.permute.xlu0 %2747
  %2749 = vrot.lane.b32.xlu0 %v2645, 64
  %v2750 = vpop.permute.xlu0 %2749
  %v2753 = vmul.f32 %v2742, %v2748
  %v2754 = vmul.f32 %v2744, %v2750
  %v2755 = vpack.c.bf16 %v2754, %v2753
  %v2756 = vld [vmem:[%s4] sm:$0xf]
  %v2757 = vld [vmem:[%s4 + $0x4] sm:$0xf]
  %v2758 = vld [vmem:[%s4 + $0x8] sm:$0xf]
  %v2759 = vld [vmem:[%s4 + $0xc] sm:$0xf]
  %v2760 = vld [vmem:[%s4 + $0x10] sm:$0xf]
  %v2761 = vld [vmem:[%s4 + $0x14] sm:$0xf]
  %v2762 = vld [vmem:[%s4 + $0x18] sm:$0xf]
  %v2763 = vld [vmem:[%s4 + $0x1c] sm:$0xf]
  %2765 = vrot.lane.b32.xlu0 %v2755, 64
  %v2766 = vpop.permute.xlu0 %2765
  %v2775 = vunpack.c.l.b16 %v2756
  %v2776 = vunpack.c.l.b16 %v2757
  %v2777 = vunpack.c.l.b16 %v2758
  %v2778 = vunpack.c.l.b16 %v2759
  %v2779 = vunpack.c.l.b16 %v2760
  %v2780 = vunpack.c.l.b16 %v2761
  %v2781 = vunpack.c.l.b16 %v2762
  %v2782 = vunpack.c.l.b16 %v2763
  %v2783 = vpack.c.b16 %v2776, %v2775
  %v2784 = vpack.c.b16 %v2778, %v2777
  %v2785 = vpack.c.b16 %v2780, %v2779
  %v2786 = vpack.c.b16 %v2782, %v2781
  %v2792 = vsel %vm390, %v2766, 0
  %2794 = vmatprep.subr.bf16.mxu0 0
  %2795 = vmatpush1.bf16.msra.mxu0 %v2783
  %2796 = vmatprep.subr.bf16.mxu0 0
  %2797 = vmatpush1.bf16.msra.mxu0 %v2784
  %2798 = vmatprep.subr.bf16.mxu0 0
  %2799 = vmatpush1.bf16.msra.mxu0 %v2785
  %2800 = vmatprep.subr.bf16.mxu0 0
  %2801 = vmatpush1.bf16.msra.mxu0 %v2786
  %2802 = vmatprep.subr.bf16.mxu0 0
  %2803 = vmatpush1.bf16.msra.mxu0 0
  %2804 = vmatprep.subr.bf16.mxu0 0
  %2805 = vmatpush1.bf16.msra.mxu0 0
  %2806 = vmatprep.subr.bf16.mxu0 0
  %2807 = vmatpush1.bf16.msra.mxu0 0
  %2808 = vmatprep.subr.bf16.mxu0 0
  %2809 = vmatpush1.bf16.msra.mxu0 0
  %2810 = vmatprep.subr.bf16.mxu0 0
  %2811 = vmatpush1.bf16.msra.mxu0 0
  %2812 = vmatprep.subr.bf16.mxu0 0
  %2813 = vmatpush1.bf16.msra.mxu0 0
  %2814 = vmatprep.subr.bf16.mxu0 0
  %2815 = vmatpush1.bf16.msra.mxu0 0
  %2816 = vmatprep.subr.bf16.mxu0 0
  %2817 = vmatpush1.bf16.msra.mxu0 0
  %2818 = vmatprep.subr.bf16.mxu0 0
  %2819 = vmatpush1.bf16.msra.mxu0 0
  %2820 = vmatprep.subr.bf16.mxu0 0
  %2821 = vmatpush1.bf16.msra.mxu0 0
  %2822 = vmatprep.subr.bf16.mxu0 0
  %2823 = vmatpush1.bf16.msra.mxu0 0
  %2824 = vmatprep.subr.bf16.mxu0 0
  %2825 = vmatpush1.bf16.msra.mxu0 0
  %2826 = vmatprep.mubr.bf16.mxu0 0
  %2827 = vmatmul.mubr.bf16.gmra.mrb[0].mxu0 %v2792
  %v2828 = vpop.f32.mrb[0].mxu0
  %v2829 = vadd.f32 0.0, %v2828
  %v2830 = vpop.f32.mrb[0].mxu0
  %v2831 = vpop.f32.mrb[0].mxu0
  %v2832 = vadd.f32 0.0, %v2831
  %v2833 = vpop.f32.mrb[0].mxu0
  %2834 = vdwg.mxu0
  %v2835 = vadd.f32 %v2651, %v2829
  %v2836 = vadd.f32 %v2653, %v2832
  %v2837 = vtanh.pop %v2835
  %v2838 = vtanh.pop %v2836
  %v2839 = vsub.f32 1.0, %v2742
  %v2840 = vsub.f32 1.0, %v2744
  %v2841 = vmul.f32 %v2839, %v2644
  %v2842 = vmul.f32 %v2840, %v2645
  %v2843 = vmul.f32 %v2742, %v2837
  %v2844 = vmul.f32 %v2744, %v2838
  %v2845 = vadd.f32 %v2841, %v2843
  %v2846 = vadd.f32 %v2842, %v2844
  %s2847 = scalar_lea.vmem %s8, 176
  %2848 = vst.msk [vmem:[%s2847] sm:$0xff] %vm390, %v2845
  %2849 = vst.msk [vmem:[%s2847 + $0x8] sm:$0xff] %vm390, %v2846
  %v2850 = vld [vmem:[%s8] sm:$0xff]
  %v2851 = vld [vmem:[%s8 + $0x8] sm:$0xff]
  %v2852 = vld [vmem:[%s8 + $0x10] sm:$0xff]
  %v2853 = vld [vmem:[%s8 + $0x18] sm:$0xff]
  %v2854 = vld [vmem:[%s8 + $0x20] sm:$0xff]
  %v2855 = vld [vmem:[%s8 + $0x28] sm:$0xff]
  %v2856 = vld [vmem:[%s8 + $0x30] sm:$0xff]
  %v2857 = vld [vmem:[%s8 + $0x38] sm:$0xff]
  %v2858 = vld [vmem:[%s8 + $0x40] sm:$0xff]
  %v2859 = vld [vmem:[%s8 + $0x48] sm:$0xff]
  %v2860 = vld [vmem:[%s8 + $0x50] sm:$0xff]
  %v2861 = vld [vmem:[%s8 + $0x58] sm:$0xff]
  %v2862 = vld [vmem:[%s8 + $0x60] sm:$0xff]
  %v2863 = vld [vmem:[%s8 + $0x68] sm:$0xff]
  %v2864 = vld [vmem:[%s8 + $0x70] sm:$0xff]
  %v2865 = vld [vmem:[%s8 + $0x78] sm:$0xff]
  %v2866 = vld [vmem:[%s8 + $0x80] sm:$0xff]
  %v2867 = vld [vmem:[%s8 + $0x88] sm:$0xff]
  %v2868 = vld [vmem:[%s8 + $0x90] sm:$0xff]
  %v2869 = vld [vmem:[%s8 + $0x98] sm:$0xff]
  %v2870 = vld [vmem:[%s8 + $0xa0] sm:$0xff]
  %v2871 = vld [vmem:[%s8 + $0xa8] sm:$0xff]
  %v2872 = vld [vmem:[%s8 + $0xb0] sm:$0xff]
  %v2873 = vld [vmem:[%s8 + $0xb8] sm:$0xff]
  %v2874 = vpack.c.bf16 %v2851, %v2850
  %v2875 = vpack.c.bf16 %v2853, %v2852
  %v2876 = vpack.c.bf16 %v2855, %v2854
  %v2877 = vpack.c.bf16 %v2857, %v2856
  %v2878 = vpack.c.bf16 %v2859, %v2858
  %v2879 = vpack.c.bf16 %v2861, %v2860
  %v2880 = vpack.c.bf16 %v2863, %v2862
  %v2881 = vpack.c.bf16 %v2865, %v2864
  %v2882 = vpack.c.bf16 %v2867, %v2866
  %v2883 = vpack.c.bf16 %v2869, %v2868
  %v2884 = vpack.c.bf16 %v2871, %v2870
  %v2885 = vpack.c.bf16 %v2873, %v2872
  %v2886 = vld [vmem:[%s6] sm:$0xf]
  %v2887 = vld [vmem:[%s6 + $0x4] sm:$0xf]
  %v2888 = vld [vmem:[%s6 + $0x8] sm:$0xf]
  %v2889 = vld [vmem:[%s6 + $0xc] sm:$0xf]
  %v2890 = vld [vmem:[%s6 + $0x10] sm:$0xf]
  %v2891 = vld [vmem:[%s6 + $0x14] sm:$0xf]
  %v2892 = vld [vmem:[%s6 + $0x18] sm:$0xf]
  %v2893 = vld [vmem:[%s6 + $0x1c] sm:$0xf]
  %v2894 = vld [vmem:[%s7] sm:$0x1]
  %v2896 = vlaneseq
  %v2897 = vshrl.u32 %v2896, 7
  %v2898 = vsub.s32 0, %v2897
  %v2899 = vrot.slane %v2894, %v2898
  %v2909 = vunpack.c.l.b16 %v2886
  %v2910 = vunpack.c.l.b16 %v2887
  %v2911 = vunpack.c.l.b16 %v2888
  %v2912 = vunpack.c.l.b16 %v2889
  %v2913 = vunpack.c.l.b16 %v2890
  %v2914 = vunpack.c.l.b16 %v2891
  %v2915 = vunpack.c.l.b16 %v2892
  %v2916 = vunpack.c.l.b16 %v2893
  %v2917 = vpack.c.b16 %v2910, %v2909
  %v2918 = vpack.c.b16 %v2912, %v2911
  %v2919 = vpack.c.b16 %v2914, %v2913
  %v2920 = vpack.c.b16 %v2916, %v2915
  %v2926 = vsel %vm390, %v2874, 0
  %v2929 = vsel %vm390, %v2875, 0
  %v2932 = vsel %vm390, %v2876, 0
  %v2935 = vsel %vm390, %v2877, 0
  %v2938 = vsel %vm390, %v2878, 0
  %v2941 = vsel %vm390, %v2879, 0
  %v2944 = vsel %vm390, %v2880, 0
  %v2947 = vsel %vm390, %v2881, 0
  %v2950 = vsel %vm390, %v2882, 0
  %v2953 = vsel %vm390, %v2883, 0
  %v2956 = vsel %vm390, %v2884, 0
  %v2959 = vsel %vm390, %v2885, 0
  %2961 = vmatprep.subr.bf16.mxu0 0
  %2962 = vmatpush1.bf16.msra.mxu0 %v2917
  %2963 = vmatprep.subr.bf16.mxu0 0
  %2964 = vmatpush1.bf16.msra.mxu0 %v2918
  %2965 = vmatprep.subr.bf16.mxu0 0
  %2966 = vmatpush1.bf16.msra.mxu0 %v2919
  %2967 = vmatprep.subr.bf16.mxu0 0
  %2968 = vmatpush1.bf16.msra.mxu0 %v2920
  %2969 = vmatprep.subr.bf16.mxu0 0
  %2970 = vmatpush1.bf16.msra.mxu0 0
  %2971 = vmatprep.subr.bf16.mxu0 0
  %2972 = vmatpush1.bf16.msra.mxu0 0
  %2973 = vmatprep.subr.bf16.mxu0 0
  %2974 = vmatpush1.bf16.msra.mxu0 0
  %2975 = vmatprep.subr.bf16.mxu0 0
  %2976 = vmatpush1.bf16.msra.mxu0 0
  %2977 = vmatprep.subr.bf16.mxu0 0
  %2978 = vmatpush1.bf16.msra.mxu0 0
  %2979 = vmatprep.subr.bf16.mxu0 0
  %2980 = vmatpush1.bf16.msra.mxu0 0
  %2981 = vmatprep.subr.bf16.mxu0 0
  %2982 = vmatpush1.bf16.msra.mxu0 0
  %2983 = vmatprep.subr.bf16.mxu0 0
  %2984 = vmatpush1.bf16.msra.mxu0 0
  %2985 = vmatprep.subr.bf16.mxu0 0
  %2986 = vmatpush1.bf16.msra.mxu0 0
  %2987 = vmatprep.subr.bf16.mxu0 0
  %2988 = vmatpush1.bf16.msra.mxu0 0
  %2989 = vmatprep.subr.bf16.mxu0 0
  %2990 = vmatpush1.bf16.msra.mxu0 0
  %2991 = vmatprep.subr.bf16.mxu0 0
  %2992 = vmatpush1.bf16.msra.mxu0 0
  %2993 = vmatprep.mubr.bf16.mxu0 0
  %2994 = vmatmul.mubr.bf16.gmra.mrb[0].mxu0 %v2926
  %v2995 = vpop.f32.mrb[0].mxu0
  %v2996 = vadd.f32 %v2899, %v2995
  %v2997 = vpop.f32.mrb[0].mxu0
  %v2998 = vpop.f32.mrb[0].mxu0
  %v2999 = vadd.f32 %v2899, %v2998
  %v3000 = vpop.f32.mrb[0].mxu0
  %3001 = vmatprep.mubr.bf16.mxu0 0
  %3002 = vmatmul.mubr.bf16.gmra.mrb[0].mxu0 %v2929
  %v3003 = vpop.f32.mrb[0].mxu0
  %v3004 = vadd.f32 %v2899, %v3003
  %v3005 = vpop.f32.mrb[0].mxu0
  %v3006 = vpop.f32.mrb[0].mxu0
  %v3007 = vadd.f32 %v2899, %v3006
  %v3008 = vpop.f32.mrb[0].mxu0
  %3009 = vmatprep.mubr.bf16.mxu0 0
  %3010 = vmatmul.mubr.bf16.gmra.mrb[0].mxu0 %v2932
  %v3011 = vpop.f32.mrb[0].mxu0
  %v3012 = vadd.f32 %v2899, %v3011
  %v3013 = vpop.f32.mrb[0].mxu0
  %v3014 = vpop.f32.mrb[0].mxu0
  %v3015 = vadd.f32 %v2899, %v3014
  %v3016 = vpop.f32.mrb[0].mxu0
  %3017 = vmatprep.mubr.bf16.mxu0 0
  %3018 = vmatmul.mubr.bf16.gmra.mrb[0].mxu0 %v2935
  %v3019 = vpop.f32.mrb[0].mxu0
  %v3020 = vadd.f32 %v2899, %v3019
  %v3021 = vpop.f32.mrb[0].mxu0
  %v3022 = vpop.f32.mrb[0].mxu0
  %v3023 = vadd.f32 %v2899, %v3022
  %v3024 = vpop.f32.mrb[0].mxu0
  %3025 = vmatprep.mubr.bf16.mxu0 0
  %3026 = vmatmul.mubr.bf16.gmra.mrb[0].mxu0 %v2938
  %v3027 = vpop.f32.mrb[0].mxu0
  %v3028 = vadd.f32 %v2899, %v3027
  %v3029 = vpop.f32.mrb[0].mxu0
  %v3030 = vpop.f32.mrb[0].mxu0
  %v3031 = vadd.f32 %v2899, %v3030
  %v3032 = vpop.f32.mrb[0].mxu0
  %3033 = vmatprep.mubr.bf16.mxu0 0
  %3034 = vmatmul.mubr.bf16.gmra.mrb[0].mxu0 %v2941
  %v3035 = vpop.f32.mrb[0].mxu0
  %v3036 = vadd.f32 %v2899, %v3035
  %v3037 = vpop.f32.mrb[0].mxu0
  %v3038 = vpop.f32.mrb[0].mxu0
  %v3039 = vadd.f32 %v2899, %v3038
  %v3040 = vpop.f32.mrb[0].mxu0
  %3041 = vmatprep.mubr.bf16.mxu0 0
  %3042 = vmatmul.mubr.bf16.gmra.mrb[0].mxu0 %v2944
  %v3043 = vpop.f32.mrb[0].mxu0
  %v3044 = vadd.f32 %v2899, %v3043
  %v3045 = vpop.f32.mrb[0].mxu0
  %v3046 = vpop.f32.mrb[0].mxu0
  %v3047 = vadd.f32 %v2899, %v3046
  %v3048 = vpop.f32.mrb[0].mxu0
  %3049 = vmatprep.mubr.bf16.mxu0 0
  %3050 = vmatmul.mubr.bf16.gmra.mrb[0].mxu0 %v2947
  %v3051 = vpop.f32.mrb[0].mxu0
  %v3052 = vadd.f32 %v2899, %v3051
  %v3053 = vpop.f32.mrb[0].mxu0
  %v3054 = vpop.f32.mrb[0].mxu0
  %v3055 = vadd.f32 %v2899, %v3054
  %v3056 = vpop.f32.mrb[0].mxu0
  %3057 = vmatprep.mubr.bf16.mxu0 0
  %3058 = vmatmul.mubr.bf16.gmra.mrb[0].mxu0 %v2950
  %v3059 = vpop.f32.mrb[0].mxu0
  %v3060 = vadd.f32 %v2899, %v3059
  %v3061 = vpop.f32.mrb[0].mxu0
  %v3062 = vpop.f32.mrb[0].mxu0
  %v3063 = vadd.f32 %v2899, %v3062
  %v3064 = vpop.f32.mrb[0].mxu0
  %3065 = vmatprep.mubr.bf16.mxu0 0
  %3066 = vmatmul.mubr.bf16.gmra.mrb[0].mxu0 %v2953
  %v3067 = vpop.f32.mrb[0].mxu0
  %v3068 = vadd.f32 %v2899, %v3067
  %v3069 = vpop.f32.mrb[0].mxu0
  %v3070 = vpop.f32.mrb[0].mxu0
  %v3071 = vadd.f32 %v2899, %v3070
  %v3072 = vpop.f32.mrb[0].mxu0
  %3073 = vmatprep.mubr.bf16.mxu0 0
  %3074 = vmatmul.mubr.bf16.gmra.mrb[0].mxu0 %v2956
  %v3075 = vpop.f32.mrb[0].mxu0
  %v3076 = vadd.f32 %v2899, %v3075
  %v3077 = vpop.f32.mrb[0].mxu0
  %v3078 = vpop.f32.mrb[0].mxu0
  %v3079 = vadd.f32 %v2899, %v3078
  %v3080 = vpop.f32.mrb[0].mxu0
  %3081 = vmatprep.mubr.bf16.mxu0 0
  %3082 = vmatmul.mubr.bf16.gmra.mrb[0].mxu0 %v2959
  %v3083 = vpop.f32.mrb[0].mxu0
  %v3084 = vadd.f32 %v2899, %v3083
  %v3085 = vpop.f32.mrb[0].mxu0
  %v3086 = vpop.f32.mrb[0].mxu0
  %v3087 = vadd.f32 %v2899, %v3086
  %v3088 = vpop.f32.mrb[0].mxu0
  %3089 = vdwg.mxu0
  %v3090 = vxor.u32 %v2996, 2147483648
  %v3091 = vxor.u32 %v2999, 2147483648
  %v3092 = vxor.u32 %v3004, 2147483648
  %v3093 = vxor.u32 %v3007, 2147483648
  %v3094 = vxor.u32 %v3012, 2147483648
  %v3095 = vxor.u32 %v3015, 2147483648
  %v3096 = vxor.u32 %v3020, 2147483648
  %v3097 = vxor.u32 %v3023, 2147483648
  %v3098 = vxor.u32 %v3028, 2147483648
  %v3099 = vxor.u32 %v3031, 2147483648
  %v3100 = vxor.u32 %v3036, 2147483648
  %v3101 = vxor.u32 %v3039, 2147483648
  %v3102 = vxor.u32 %v3044, 2147483648
  %v3103 = vxor.u32 %v3047, 2147483648
  %v3104 = vxor.u32 %v3052, 2147483648
  %v3105 = vxor.u32 %v3055, 2147483648
  %v3106 = vxor.u32 %v3060, 2147483648
  %v3107 = vxor.u32 %v3063, 2147483648
  %v3108 = vxor.u32 %v3068, 2147483648
  %v3109 = vxor.u32 %v3071, 2147483648
  %v3110 = vxor.u32 %v3076, 2147483648
  %v3111 = vxor.u32 %v3079, 2147483648
  %v3112 = vxor.u32 %v3084, 2147483648
  %v3113 = vxor.u32 %v3087, 2147483648
  %v3114 = vmul.f32 %v3090, 1.442695
  %v3115 = vpow.pop %v3114
  %v3116 = vmul.f32 %v3091, 1.442695
  %v3117 = vpow.pop %v3116
  %v3118 = vmul.f32 %v3092, 1.442695
  %v3119 = vpow.pop %v3118
  %v3120 = vmul.f32 %v3093, 1.442695
  %v3121 = vpow.pop %v3120
  %v3122 = vmul.f32 %v3094, 1.442695
  %v3123 = vpow.pop %v3122
  %v3124 = vmul.f32 %v3095, 1.442695
  %v3125 = vpow.pop %v3124
  %v3126 = vmul.f32 %v3096, 1.442695
  %v3127 = vpow.pop %v3126
  %v3128 = vmul.f32 %v3097, 1.442695
  %v3129 = vpow.pop %v3128
  %v3130 = vmul.f32 %v3098, 1.442695
  %v3131 = vpow.pop %v3130
  %v3132 = vmul.f32 %v3099, 1.442695
  %v3133 = vpow.pop %v3132
  %v3134 = vmul.f32 %v3100, 1.442695
  %v3135 = vpow.pop %v3134
  %v3136 = vmul.f32 %v3101, 1.442695
  %v3137 = vpow.pop %v3136
  %v3138 = vmul.f32 %v3102, 1.442695
  %v3139 = vpow.pop %v3138
  %v3140 = vmul.f32 %v3103, 1.442695
  %v3141 = vpow.pop %v3140
  %v3142 = vmul.f32 %v3104, 1.442695
  %v3143 = vpow.pop %v3142
  %v3144 = vmul.f32 %v3105, 1.442695
  %v3145 = vpow.pop %v3144
  %v3146 = vmul.f32 %v3106, 1.442695
  %v3147 = vpow.pop %v3146
  %v3148 = vmul.f32 %v3107, 1.442695
  %v3149 = vpow.pop %v3148
  %v3150 = vmul.f32 %v3108, 1.442695
  %v3151 = vpow.pop %v3150
  %v3152 = vmul.f32 %v3109, 1.442695
  %v3153 = vpow.pop %v3152
  %v3154 = vmul.f32 %v3110, 1.442695
  %v3155 = vpow.pop %v3154
  %v3156 = vmul.f32 %v3111, 1.442695
  %v3157 = vpow.pop %v3156
  %v3158 = vmul.f32 %v3112, 1.442695
  %v3159 = vpow.pop %v3158
  %v3160 = vmul.f32 %v3113, 1.442695
  %v3161 = vpow.pop %v3160
  %v3162 = vadd.f32 %v3115, 1.0
  %v3163 = vadd.f32 %v3117, 1.0
  %v3164 = vadd.f32 %v3119, 1.0
  %v3165 = vadd.f32 %v3121, 1.0
  %v3166 = vadd.f32 %v3123, 1.0
  %v3167 = vadd.f32 %v3125, 1.0
  %v3168 = vadd.f32 %v3127, 1.0
  %v3169 = vadd.f32 %v3129, 1.0
  %v3170 = vadd.f32 %v3131, 1.0
  %v3171 = vadd.f32 %v3133, 1.0
  %v3172 = vadd.f32 %v3135, 1.0
  %v3173 = vadd.f32 %v3137, 1.0
  %v3174 = vadd.f32 %v3139, 1.0
  %v3175 = vadd.f32 %v3141, 1.0
  %v3176 = vadd.f32 %v3143, 1.0
  %v3177 = vadd.f32 %v3145, 1.0
  %v3178 = vadd.f32 %v3147, 1.0
  %v3179 = vadd.f32 %v3149, 1.0
  %v3180 = vadd.f32 %v3151, 1.0
  %v3181 = vadd.f32 %v3153, 1.0
  %v3182 = vadd.f32 %v3155, 1.0
  %v3183 = vadd.f32 %v3157, 1.0
  %v3184 = vadd.f32 %v3159, 1.0
  %v3185 = vadd.f32 %v3161, 1.0
  %v3186 = vrcp.pop %v3162
  %v3187 = vmul.f32 1.0, %v3186
  %v3188 = vrcp.pop %v3163
  %v3189 = vmul.f32 1.0, %v3188
  %v3190 = vrcp.pop %v3164
  %v3191 = vmul.f32 1.0, %v3190
  %v3192 = vrcp.pop %v3165
  %v3193 = vmul.f32 1.0, %v3192
  %v3194 = vrcp.pop %v3166
  %v3195 = vmul.f32 1.0, %v3194
  %v3196 = vrcp.pop %v3167
  %v3197 = vmul.f32 1.0, %v3196
  %v3198 = vrcp.pop %v3168
  %v3199 = vmul.f32 1.0, %v3198
  %v3200 = vrcp.pop %v3169
  %v3201 = vmul.f32 1.0, %v3200
  %v3202 = vrcp.pop %v3170
  %v3203 = vmul.f32 1.0, %v3202
  %v3204 = vrcp.pop %v3171
  %v3205 = vmul.f32 1.0, %v3204
  %v3206 = vrcp.pop %v3172
  %v3207 = vmul.f32 1.0, %v3206
  %v3208 = vrcp.pop %v3173
  %v3209 = vmul.f32 1.0, %v3208
  %v3210 = vrcp.pop %v3174
  %v3211 = vmul.f32 1.0, %v3210
  %v3212 = vrcp.pop %v3175
  %v3213 = vmul.f32 1.0, %v3212
  %v3214 = vrcp.pop %v3176
  %v3215 = vmul.f32 1.0, %v3214
  %v3216 = vrcp.pop %v3177
  %v3217 = vmul.f32 1.0, %v3216
  %v3218 = vrcp.pop %v3178
  %v3219 = vmul.f32 1.0, %v3218
  %v3220 = vrcp.pop %v3179
  %v3221 = vmul.f32 1.0, %v3220
  %v3222 = vrcp.pop %v3180
  %v3223 = vmul.f32 1.0, %v3222
  %v3224 = vrcp.pop %v3181
  %v3225 = vmul.f32 1.0, %v3224
  %v3226 = vrcp.pop %v3182
  %v3227 = vmul.f32 1.0, %v3226
  %v3228 = vrcp.pop %v3183
  %v3229 = vmul.f32 1.0, %v3228
  %v3230 = vrcp.pop %v3184
  %v3231 = vmul.f32 1.0, %v3230
  %v3232 = vrcp.pop %v3185
  %v3233 = vmul.f32 1.0, %v3232
  %3234 = vst [vmem:[%s9] sm:$0xff] %v3187
  %3235 = vst [vmem:[%s9 + $0x8] sm:$0xff] %v3189
  %3236 = vst [vmem:[%s9 + $0x10] sm:$0xff] %v3191
  %3237 = vst [vmem:[%s9 + $0x18] sm:$0xff] %v3193
  %3238 = vst [vmem:[%s9 + $0x20] sm:$0xff] %v3195
  %3239 = vst [vmem:[%s9 + $0x28] sm:$0xff] %v3197
  %3240 = vst [vmem:[%s9 + $0x30] sm:$0xff] %v3199
  %3241 = vst [vmem:[%s9 + $0x38] sm:$0xff] %v3201
  %3242 = vst [vmem:[%s9 + $0x40] sm:$0xff] %v3203
  %3243 = vst [vmem:[%s9 + $0x48] sm:$0xff] %v3205
  %3244 = vst [vmem:[%s9 + $0x50] sm:$0xff] %v3207
  %3245 = vst [vmem:[%s9 + $0x58] sm:$0xff] %v3209
  %3246 = vst [vmem:[%s9 + $0x60] sm:$0xff] %v3211
  %3247 = vst [vmem:[%s9 + $0x68] sm:$0xff] %v3213
  %3248 = vst [vmem:[%s9 + $0x70] sm:$0xff] %v3215
  %3249 = vst [vmem:[%s9 + $0x78] sm:$0xff] %v3217
  %3250 = vst [vmem:[%s9 + $0x80] sm:$0xff] %v3219
  %3251 = vst [vmem:[%s9 + $0x88] sm:$0xff] %v3221
  %3252 = vst [vmem:[%s9 + $0x90] sm:$0xff] %v3223
  %3253 = vst [vmem:[%s9 + $0x98] sm:$0xff] %v3225
  %3254 = vst [vmem:[%s9 + $0xa0] sm:$0xff] %v3227
  %3255 = vst [vmem:[%s9 + $0xa8] sm:$0xff] %v3229
  %3256 = vst [vmem:[%s9 + $0xb0] sm:$0xff] %v3231
  %3257 = vst [vmem:[%s9 + $0xb8] sm:$0xff] %v3233
  // Predicated region
  $region34: #{ex_gru_sequence.1} parent=0 // pred_check
    _
  $region35: #{ex_gru_sequence.1} parent=0 // pred_check_branch
    %3259 = sbr.rel (0) target = $region37
  $region36: #{ex_gru_sequence.1} parent=0 // pred_region
    _
  $region37: #{ex_gru_sequence.1} parent=0 // pred_fallthru
    _
  // Predicated region
  $region38: #{ex_gru_sequence.1} parent=0 // pred_check
    _
  $region39: #{ex_gru_sequence.1} parent=0 // pred_check_branch
    %3261 = sbr.rel (0) target = $region41
  $region40: #{ex_gru_sequence.1} parent=0 // pred_region
    _
  $region41: #{ex_gru_sequence.1} parent=0 // pred_fallthru
    _
  // Predicated region
  $region42: #{ex_gru_sequence.1} parent=0 // pred_check
    _
  $region43: #{ex_gru_sequence.1} parent=0 // pred_check_branch
    %3263 = sbr.rel (0) target = $region45
  $region44: #{ex_gru_sequence.1} parent=0 // pred_region
    _
  $region45: #{ex_gru_sequence.1} parent=0 // pred_fallthru
    _
  // Predicated region
  $region46: #{ex_gru_sequence.1} parent=0 // pred_check
    _
  $region47: #{ex_gru_sequence.1} parent=0 // pred_check_branch
    %3265 = sbr.rel (0) target = $region49
  $region48: #{ex_gru_sequence.1} parent=0 // pred_region
    _
  $region49: #{ex_gru_sequence.1} parent=0 // pred_fallthru
    _

</llo_original>
